<compile_context>
chip_gen: v7x
topology: tpu7x:2x2x1
jax: 0.10.0
libtpu: 0.0.40
codegen_flags: <defaults>
</compile_context>

<pallas_src>
import math
from functools import partial

import jax
import jax.numpy as jnp
from jax.experimental import pallas as pl
from jax.experimental.pallas import tpu as pltpu


# ------------------------------ fused kernel --------------------------------

def _conv_mixer_kernel(x_ref, dww_ref, dwb_ref, g_ref, bt_ref,
                       w1_ref, b1_ref, w2_ref, b2_ref,
                       o_ref, slab_ref, *,
                       H, W, C, K, eps, h_chunk, lane_dense):
    """Per-image fused ConvMixer: dwconv5x5 -> LayerNorm -> pwconv1 -> GELU ->
    pwconv2, computed chunk-by-chunk over H so nothing full-image stays live.

    x_ref   : (H, W, C)          input image (one batch element)
    dww_ref : (K*K, C)           depthwise weights, row k = kh*K + kw
    dwb_ref : (1, C)             depthwise bias
    g/bt    : (1, C)             LayerNorm gamma / beta (f32)
    w1_ref  : (C, 4C) bf16, b1_ref: (1, 4C) f32
    w2_ref  : (4C, C) bf16, b2_ref: (1, C)  f32
    o_ref   : (H, W*C) if lane_dense else (H*W, C)
    slab_ref: (h_chunk + 2*pad, W, C) f32 VMEM halo slab (zero-padded rows)
    """
    pad = K // 2
    hc = h_chunk
    slab_h = hc + 2 * pad
    n_chunks = H // hc
    rows = hc * W

    # ---- resident parameters, hoisted once and reused by every chunk --------
    dww = dww_ref[...].astype(jnp.float32)                     # (K*K, C)
    gamma = g_ref[...]                                          # (1, C)
    beta = bt_ref[...]
    w1 = w1_ref[...]                                            # (C, 4C) bf16
    w2 = w2_ref[...]                                            # (4C, C) bf16
    # Hoisted broadcasts (JAX does not CSE broadcast_in_dim across the loop).
    acc0 = jnp.broadcast_to(dwb_ref[...].astype(jnp.float32), (hc, W, C))
    b1_b = jnp.broadcast_to(b1_ref[...], (rows, 4 * C))
    b2_b = jnp.broadcast_to(b2_ref[...], (rows, C))
    w_idx = jax.lax.broadcasted_iota(jnp.int32, (W, 1), 0)      # (W, 1)
    inv_sqrt2 = 1.0 / math.sqrt(2.0)

    def process_chunk(r0):
        """Conv + LN + MLP for output rows [r0, r0 + hc).  slab_ref holds the
        (already zero-padded) input rows [r0 - pad, r0 + hc + pad)."""
        slab = slab_ref[...]                                    # (slab_h, W, C)

        # K W-shifts of the halo slab: one XLU roll + boundary mask per kw,
        # shared by all kh taps of this chunk (bounded live-value footprint).
        xs = []
        for kw in range(K):
            d = kw - pad
            if d == 0:
                xs.append(slab)
            else:
                rolled = pltpu.roll(slab, shift=(-d) % W, axis=1)   # [w] <- [w+d]
                valid = jnp.logical_and(w_idx + d >= 0, w_idx + d < W)
                xs.append(jnp.where(valid, rolled, 0.0))

        # Depthwise 5x5 conv: pure value accumulation (no scratch RMW passes),
        # depthwise bias folded into the accumulator init.
        acc = acc0
        for kh in range(K):
            k0 = kh * K
            term = xs[0][kh:kh + hc] * dww[k0:k0 + 1, :]
            for kw in range(1, K):
                term = term + xs[kw][kh:kh + hc] * dww[k0 + kw:k0 + kw + 1, :]
            acc = acc + term

        # LayerNorm -> Linear(C,4C) -> GELU(erf) -> Linear(4C,C).
        y = acc.reshape(rows, C)
        mu = jnp.mean(y, axis=-1, keepdims=True)
        var = jnp.maximum(jnp.mean(y * y, axis=-1, keepdims=True) - mu * mu, 0.0)
        yn = (y - mu) * jax.lax.rsqrt(var + eps) * gamma + beta

        h = jnp.dot(yn.astype(jnp.bfloat16), w1,
                    preferred_element_type=jnp.float32) + b1_b
        # PyTorch nn.GELU() default: exact erf formulation (kept for parity).
        h = 0.5 * h * (1.0 + jax.lax.erf(h * inv_sqrt2))
        o = jnp.dot(h.astype(jnp.bfloat16), w2,
                    preferred_element_type=jnp.float32) + b2_b

        row0 = r0 * W
        if not isinstance(r0, int):            # dynamic (fori) chunk: add hints
            r0 = pl.multiple_of(r0, hc)
            row0 = pl.multiple_of(row0, rows)
        if lane_dense:
            o_ref[pl.ds(r0, hc), :] = o.reshape(hc, W * C).astype(o_ref.dtype)
        else:
            o_ref[pl.ds(row0, rows), :] = o.astype(o_ref.dtype)

    def fill_slab_static(ci):
        """Boundary chunks (static bounds): zero the halo rows that fall
        outside the image, copy the valid input rows into the slab."""
        r0 = ci * hc
        lo = max(0, r0 - pad)
        hi = min(H, r0 + hc + pad)
        top = lo - (r0 - pad)
        bot = (r0 + hc + pad) - hi
        if top > 0:
            slab_ref[0:top] = jnp.zeros((top, W, C), jnp.float32)
        if bot > 0:
            slab_ref[slab_h - bot:slab_h] = jnp.zeros((bot, W, C), jnp.float32)
        slab_ref[top:top + (hi - lo)] = x_ref[lo:hi].astype(jnp.float32)
        return r0

    # First chunk (and last, if distinct) touch the image boundary -> static.
    process_chunk(fill_slab_static(0))
    if n_chunks > 1:
        if n_chunks > 2 and hc >= pad:
            # Interior chunks never cross the boundary: one fori_loop body
            # (bounds live ranges / code size vs. a Python-unrolled loop).
            def body(ci, carry):
                r0 = ci * hc
                slab_ref[...] = x_ref[pl.ds(r0 - pad, slab_h)].astype(jnp.float32)
                process_chunk(r0)
                return carry
            jax.lax.fori_loop(1, n_chunks - 1, body, 0)
        elif n_chunks > 2:
            # Degenerate tiny h_chunk (< pad): keep everything static.
            for ci in range(1, n_chunks - 1):
                process_chunk(fill_slab_static(ci))
        process_chunk(fill_slab_static(n_chunks - 1))


# ------------------------------- JAX wrapper ---------------------------------

def _pick_h_chunk(H, W, max_rows=1024):
    """Largest divisor hc of H with hc*W <= max_rows (falls back to 1).
    Guidance: 1024-2048 rows on v5e/v6e, ~512 on v7x (64 MiB VMEM)."""
    best = 1
    for d in range(1, H + 1):
        if H % d == 0 and d * W <= max_rows:
            best = d
    return best


def conv_mixer_forward(x, H, W, params, *, K=5, mlp_max_rows=1024):
    """x: (B, N, C) with N == H*W. Returns (B, N, C)."""
    B, N, C = x.shape
    assert N == H * W
    pad = K // 2
    h_chunk = _pick_h_chunk(H, W, mlp_max_rows)

    # Lane-dense output presentation (same row-major memory order) only when it
    # buys full 128-lane stores AND C alone would be masked.  At C % 128 == 0
    # the plain layout is already dense; at tiny/unaligned W*C (like the test)
    # we keep the plain layout to avoid a minor-dim-merging relayout.
    lane_dense = ((W * C) % 128 == 0) and (C % 128 != 0)
    out_cols = W * C if lane_dense else C
    out_rows_per_img = H if lane_dense else N

    # (B, N, C) -> (B*H, W, C): identical memory order, NHWC spatial view.
    xs = x.reshape(B * H, W, C)

    kernel = partial(_conv_mixer_kernel, H=H, W=W, C=C, K=K, eps=1e-5,
                     h_chunk=h_chunk, lane_dense=lane_dense)

    # --- VMEM budget: double-buffered I/O blocks + resident params (also
    #     double-buffered) + per-chunk working set, plus headroom.  Raise the
    #     scoped limit (v5e default 16 MiB) but stay under physical VMEM (v7x).
    itemsize = jnp.dtype(x.dtype).itemsize
    in_blk = H * W * C * itemsize
    out_blk = N * C * itemsize
    param_bytes = ((K * K + 8) * C + 4 * C) * 4 + (8 * C * C) * 2
    chunk_ws = ((K + 3) * (h_chunk + 2 * pad) * W * C * 4
                + 3 * h_chunk * W * 4 * C * 4)
    need = 2 * (in_blk + out_blk) + 2 * param_bytes + chunk_ws + (4 << 20)
    try:
        phys = int(pltpu.get_tpu_info().vmem_capacity_bytes)
    except Exception:
        phys = 64 << 20
    vmem_limit = int(min(max(need, 32 << 20), int(phys * 0.9)))

    out = pl.pallas_call(
        kernel,
        out_shape=jax.ShapeDtypeStruct((B * out_rows_per_img, out_cols), x.dtype),
        grid=(B,),
        in_specs=[
            pl.BlockSpec((H, W, C), lambda b: (b, 0, 0)),     # per-image input
            pl.BlockSpec((K * K, C), lambda b: (0, 0)),       # dw weights
            pl.BlockSpec((1, C), lambda b: (0, 0)),           # dw bias
            pl.BlockSpec((1, C), lambda b: (0, 0)),           # gamma
            pl.BlockSpec((1, C), lambda b: (0, 0)),           # beta
            pl.BlockSpec((C, 4 * C), lambda b: (0, 0)),       # w1 (bf16)
            pl.BlockSpec((1, 4 * C), lambda b: (0, 0)),       # b1
            pl.BlockSpec((4 * C, C), lambda b: (0, 0)),       # w2 (bf16)
            pl.BlockSpec((1, C), lambda b: (0, 0)),           # b2
        ],
        out_specs=pl.BlockSpec((out_rows_per_img, out_cols), lambda b: (b, 0)),
        scratch_shapes=[pltpu.VMEM((h_chunk + 2 * pad, W, C), jnp.float32)],
        compiler_params=pltpu.CompilerParams(
            dimension_semantics=("parallel",),
            vmem_limit_bytes=vmem_limit),
    )(xs,
      params["dw_w_kkc"], params["dw_b"].reshape(1, C),
      params["gamma"].reshape(1, C), params["beta"].reshape(1, C),
      params["w1_bf16"], params["b1"].reshape(1, 4 * C),
      params["w2_bf16"], params["b2"].reshape(1, C))

    return out.reshape(B, N, C)


# --------------------------- params & reference ------------------------------

def init_params(key, C, K=5):
    ks = jax.random.split(key, 8)
    dw_w = 0.1 * jax.random.normal(ks[0], (C, 1, K, K), jnp.float32)  # torch layout
    dw_b = 0.1 * jax.random.normal(ks[1], (C,), jnp.float32)
    gamma = 1.0 + 0.1 * jax.random.normal(ks[2], (C,), jnp.float32)
    beta = 0.1 * jax.random.normal(ks[3], (C,), jnp.float32)
    w1 = jax.random.normal(ks[4], (C, 4 * C), jnp.float32) / math.sqrt(C)
    b1 = 0.1 * jax.random.normal(ks[5], (4 * C,), jnp.float32)
    w2 = jax.random.normal(ks[6], (4 * C, C), jnp.float32) / math.sqrt(4 * C)
    b2 = 0.1 * jax.random.normal(ks[7], (C,), jnp.float32)
    # repack depthwise weights (C,1,K,K) -> (K*K, C) for the NHWC kernel
    dw_w_kkc = jnp.transpose(dw_w[:, 0], (1, 2, 0)).reshape(K * K, C)
    return dict(dw_w=dw_w, dw_b=dw_b, dw_w_kkc=dw_w_kkc, gamma=gamma, beta=beta,
                w1=w1, b1=b1, w2=w2, b2=b2,
                w1_bf16=w1.astype(jnp.bfloat16), w2_bf16=w2.astype(jnp.bfloat16))


def reference_forward(x, H, W, params, *, K=5, matmul_dtype=jnp.float32):
    """Pure-JAX reference mirroring the PyTorch module (optionally with the
    kernel's bf16-operand / f32-accumulate matmul policy)."""
    B, N, C = x.shape
    xs = jnp.transpose(x, (0, 2, 1)).reshape(B, C, H, W)          # NCHW
    out = jax.lax.conv_general_dilated(
        xs, params["dw_w"], window_strides=(1, 1), padding="SAME",
        feature_group_count=C, dimension_numbers=("NCHW", "OIHW", "NCHW"))
    out = out + params["dw_b"][None, :, None, None]
    y = jnp.transpose(out.reshape(B, C, N), (0, 2, 1))            # (B, N, C)
    mu = y.mean(-1, keepdims=True)
    var = ((y - mu) ** 2).mean(-1, keepdims=True)
    yn = (y - mu) * jax.lax.rsqrt(var + 1e-5) * params["gamma"] + params["beta"]
    h = jnp.dot(yn.astype(matmul_dtype), params["w1"].astype(matmul_dtype),
                preferred_element_type=jnp.float32) + params["b1"]
    h = 0.5 * h * (1.0 + jax.lax.erf(h / math.sqrt(2.0)))
    o = jnp.dot(h.astype(matmul_dtype), params["w2"].astype(matmul_dtype),
                preferred_element_type=jnp.float32) + params["b2"]
    return o


# ----------------------------------- main ------------------------------------

if __name__ == "__main__":
    B, C, H, W = 2, 4, 16, 16
    N = H * W
    key = jax.random.PRNGKey(0)
    kx, kp = jax.random.split(key)
    x = jax.random.normal(kx, (B, N, C), jnp.float32)
    params = init_params(kp, C, K=5)

    out = jax.block_until_ready(conv_mixer_forward(x, H, W, params, K=5))
    assert out.shape == (B, N, C)

    # Reference with the same bf16-matmul / f32-accumulate policy as the kernel.
    ref = jax.block_until_ready(
        reference_forward(x, H, W, params, K=5, matmul_dtype=jnp.bfloat16))
    assert jnp.allclose(out, ref, rtol=1e-2, atol=1e-2), (
        "mismatch vs reference, max abs err = %f" % float(jnp.max(jnp.abs(out - ref))))

    print("KERNEL_OK")
</pallas_src>

<mosaic_0001>
module attributes {stable_mosaic.version = 11 : i64} {
  func.func @_conv_mixer_kernel(%arg0: i32, %arg1: memref<16x16x4xf32, #tpu.memory_space<vmem>>, %arg2: memref<25x4xf32, #tpu.memory_space<vmem>>, %arg3: memref<1x4xf32, #tpu.memory_space<vmem>>, %arg4: memref<1x4xf32, #tpu.memory_space<vmem>>, %arg5: memref<1x4xf32, #tpu.memory_space<vmem>>, %arg6: memref<4x16xbf16, #tpu.memory_space<vmem>>, %arg7: memref<1x16xf32, #tpu.memory_space<vmem>>, %arg8: memref<16x4xbf16, #tpu.memory_space<vmem>>, %arg9: memref<1x4xf32, #tpu.memory_space<vmem>>, %arg10: memref<256x4xf32, #tpu.memory_space<vmem>>, %arg11: memref<20x16x4xf32, #tpu.memory_space<vmem>>) attributes {dimension_semantics = [#tpu.dimension_semantics<parallel>], iteration_bounds = array<i64: 2>, scalar_prefetch = 0 : i64, scratch_operands = 1 : i64, tpu.core_type = #tpu.core_type<tc>, window_params = [{transform_indices = @transform_0, window_bounds = array<i64: 16, 16, 4>}, {pipeline_mode = #tpu.pipeline_mode<synchronous>, transform_indices = @transform_1, window_bounds = array<i64: 25, 4>}, {pipeline_mode = #tpu.pipeline_mode<synchronous>, transform_indices = @transform_2, window_bounds = array<i64: 1, 4>}, {pipeline_mode = #tpu.pipeline_mode<synchronous>, transform_indices = @transform_3, window_bounds = array<i64: 1, 4>}, {pipeline_mode = #tpu.pipeline_mode<synchronous>, transform_indices = @transform_4, window_bounds = array<i64: 1, 4>}, {pipeline_mode = #tpu.pipeline_mode<synchronous>, transform_indices = @transform_5, window_bounds = array<i64: 4, 16>}, {pipeline_mode = #tpu.pipeline_mode<synchronous>, transform_indices = @transform_6, window_bounds = array<i64: 1, 16>}, {pipeline_mode = #tpu.pipeline_mode<synchronous>, transform_indices = @transform_7, window_bounds = array<i64: 16, 4>}, {pipeline_mode = #tpu.pipeline_mode<synchronous>, transform_indices = @transform_8, window_bounds = array<i64: 1, 4>}, {transform_indices = @transform_9, window_bounds = array<i64: 256, 4>}]} {
    %c0 = arith.constant 0 : index
    %c0_0 = arith.constant 0 : index
    %0 = vector.load %arg2[%c0, %c0_0] : memref<25x4xf32, #tpu.memory_space<vmem>>, vector<25x4xf32>
    %c0_1 = arith.constant 0 : index
    %c0_2 = arith.constant 0 : index
    %1 = vector.load %arg4[%c0_1, %c0_2] : memref<1x4xf32, #tpu.memory_space<vmem>>, vector<1x4xf32>
    %c0_3 = arith.constant 0 : index
    %c0_4 = arith.constant 0 : index
    %2 = vector.load %arg5[%c0_3, %c0_4] : memref<1x4xf32, #tpu.memory_space<vmem>>, vector<1x4xf32>
    %c0_5 = arith.constant 0 : index
    %c0_6 = arith.constant 0 : index
    %3 = vector.load %arg6[%c0_5, %c0_6] : memref<4x16xbf16, #tpu.memory_space<vmem>>, vector<4x16xbf16>
    %c0_7 = arith.constant 0 : index
    %c0_8 = arith.constant 0 : index
    %4 = vector.load %arg8[%c0_7, %c0_8] : memref<16x4xbf16, #tpu.memory_space<vmem>>, vector<16x4xbf16>
    %c0_9 = arith.constant 0 : index
    %c0_10 = arith.constant 0 : index
    %5 = vector.load %arg3[%c0_9, %c0_10] : memref<1x4xf32, #tpu.memory_space<vmem>>, vector<1x4xf32>
    %6 = vector.shape_cast %5 : vector<1x4xf32> to vector<1x1x4xf32>
    %7 = vector.broadcast %6 : vector<1x1x4xf32> to vector<16x16x4xf32>
    %c0_11 = arith.constant 0 : index
    %c0_12 = arith.constant 0 : index
    %8 = vector.load %arg7[%c0_11, %c0_12] : memref<1x16xf32, #tpu.memory_space<vmem>>, vector<1x16xf32>
    %9 = vector.shape_cast %8 : vector<1x16xf32> to vector<1x16xf32>
    %10 = vector.broadcast %9 : vector<1x16xf32> to vector<256x16xf32>
    %c0_13 = arith.constant 0 : index
    %c0_14 = arith.constant 0 : index
    %11 = vector.load %arg9[%c0_13, %c0_14] : memref<1x4xf32, #tpu.memory_space<vmem>>, vector<1x4xf32>
    %12 = vector.shape_cast %11 : vector<1x4xf32> to vector<1x4xf32>
    %13 = vector.broadcast %12 : vector<1x4xf32> to vector<256x4xf32>
    %14 = tpu.iota {dimensions = array<i32: 0>} : vector<16x1xi32>
    %cst = arith.constant 0.000000e+00 : f32
    %15 = vector.broadcast %cst : f32 to vector<2x16x4xf32>
    %c0_15 = arith.constant 0 : index
    %c0_16 = arith.constant 0 : index
    %c0_17 = arith.constant 0 : index
    %16 = vector.load %arg11[%c0_15, %c0_16, %c0_17] : memref<20x16x4xf32, #tpu.memory_space<vmem>>, vector<2x16x4xf32>
    tpu.vector_store %arg11[%c0_15, %c0_16, %c0_17], %15 {strides = array<i32>} : memref<20x16x4xf32, #tpu.memory_space<vmem>>, vector<2x16x4xf32>,
    %cst_18 = arith.constant 0.000000e+00 : f32
    %17 = vector.broadcast %cst_18 : f32 to vector<2x16x4xf32>
    %c18 = arith.constant 18 : index
    %c0_19 = arith.constant 0 : index
    %c0_20 = arith.constant 0 : index
    %18 = vector.load %arg11[%c18, %c0_19, %c0_20] : memref<20x16x4xf32, #tpu.memory_space<vmem>>, vector<2x16x4xf32>
    tpu.vector_store %arg11[%c18, %c0_19, %c0_20], %17 {strides = array<i32>} : memref<20x16x4xf32, #tpu.memory_space<vmem>>, vector<2x16x4xf32>,
    %c0_21 = arith.constant 0 : index
    %c0_22 = arith.constant 0 : index
    %c0_23 = arith.constant 0 : index
    %19 = vector.load %arg1[%c0_21, %c0_22, %c0_23] : memref<16x16x4xf32, #tpu.memory_space<vmem>>, vector<16x16x4xf32>
    %c2 = arith.constant 2 : index
    %c0_24 = arith.constant 0 : index
    %c0_25 = arith.constant 0 : index
    %20 = vector.load %arg11[%c2, %c0_24, %c0_25] : memref<20x16x4xf32, #tpu.memory_space<vmem>>, vector<16x16x4xf32>
    tpu.vector_store %arg11[%c2, %c0_24, %c0_25], %19 {strides = array<i32>} : memref<20x16x4xf32, #tpu.memory_space<vmem>>, vector<16x16x4xf32>,
    %c0_26 = arith.constant 0 : index
    %c0_27 = arith.constant 0 : index
    %c0_28 = arith.constant 0 : index
    %21 = vector.load %arg11[%c0_26, %c0_27, %c0_28] : memref<20x16x4xf32, #tpu.memory_space<vmem>>, vector<20x16x4xf32>
    %c2_i32 = arith.constant 2 : i32
    %22 = tpu.dynamic_rotate %21 by %c2_i32 dim 1 : vector<20x16x4xf32>, i32 -> vector<20x16x4xf32>
    %c-2_i32 = arith.constant -2 : i32
    %23 = vector.broadcast %c-2_i32 : i32 to vector<16x1xi32>
    %24 = arith.addi %14, %23 : vector<16x1xi32>
    %c0_i32 = arith.constant 0 : i32
    %25 = vector.broadcast %c0_i32 : i32 to vector<16x1xi32>
    %26 = arith.cmpi sge, %24, %25 : vector<16x1xi32>
    %c-2_i32_29 = arith.constant -2 : i32
    %27 = vector.broadcast %c-2_i32_29 : i32 to vector<16x1xi32>
    %28 = arith.addi %14, %27 : vector<16x1xi32>
    %c16_i32 = arith.constant 16 : i32
    %29 = vector.broadcast %c16_i32 : i32 to vector<16x1xi32>
    %30 = arith.cmpi slt, %28, %29 : vector<16x1xi32>
    %31 = arith.andi %26, %30 : vector<16x1xi1>
    %cst_30 = arith.constant 0.000000e+00 : f32
    %32 = vector.shape_cast %31 : vector<16x1xi1> to vector<1x16x1xi1>
    %33 = vector.broadcast %32 : vector<1x16x1xi1> to vector<20x16x4xi1>
    %34 = vector.broadcast %cst_30 : f32 to vector<20x16x4xf32>
    %35 = arith.select %33, %22, %34 : vector<20x16x4xi1>, vector<20x16x4xf32>
    %c1_i32 = arith.constant 1 : i32
    %36 = tpu.dynamic_rotate %21 by %c1_i32 dim 1 : vector<20x16x4xf32>, i32 -> vector<20x16x4xf32>
    %c-1_i32 = arith.constant -1 : i32
    %37 = vector.broadcast %c-1_i32 : i32 to vector<16x1xi32>
    %38 = arith.addi %14, %37 : vector<16x1xi32>
    %c0_i32_31 = arith.constant 0 : i32
    %39 = vector.broadcast %c0_i32_31 : i32 to vector<16x1xi32>
    %40 = arith.cmpi sge, %38, %39 : vector<16x1xi32>
    %c-1_i32_32 = arith.constant -1 : i32
    %41 = vector.broadcast %c-1_i32_32 : i32 to vector<16x1xi32>
    %42 = arith.addi %14, %41 : vector<16x1xi32>
    %c16_i32_33 = arith.constant 16 : i32
    %43 = vector.broadcast %c16_i32_33 : i32 to vector<16x1xi32>
    %44 = arith.cmpi slt, %42, %43 : vector<16x1xi32>
    %45 = arith.andi %40, %44 : vector<16x1xi1>
    %cst_34 = arith.constant 0.000000e+00 : f32
    %46 = vector.shape_cast %45 : vector<16x1xi1> to vector<1x16x1xi1>
    %47 = vector.broadcast %46 : vector<1x16x1xi1> to vector<20x16x4xi1>
    %48 = vector.broadcast %cst_34 : f32 to vector<20x16x4xf32>
    %49 = arith.select %47, %36, %48 : vector<20x16x4xi1>, vector<20x16x4xf32>
    %c15_i32 = arith.constant 15 : i32
    %50 = tpu.dynamic_rotate %21 by %c15_i32 dim 1 : vector<20x16x4xf32>, i32 -> vector<20x16x4xf32>
    %c1_i32_35 = arith.constant 1 : i32
    %51 = vector.broadcast %c1_i32_35 : i32 to vector<16x1xi32>
    %52 = arith.addi %14, %51 : vector<16x1xi32>
    %c0_i32_36 = arith.constant 0 : i32
    %53 = vector.broadcast %c0_i32_36 : i32 to vector<16x1xi32>
    %54 = arith.cmpi sge, %52, %53 : vector<16x1xi32>
    %c1_i32_37 = arith.constant 1 : i32
    %55 = vector.broadcast %c1_i32_37 : i32 to vector<16x1xi32>
    %56 = arith.addi %14, %55 : vector<16x1xi32>
    %c16_i32_38 = arith.constant 16 : i32
    %57 = vector.broadcast %c16_i32_38 : i32 to vector<16x1xi32>
    %58 = arith.cmpi slt, %56, %57 : vector<16x1xi32>
    %59 = arith.andi %54, %58 : vector<16x1xi1>
    %cst_39 = arith.constant 0.000000e+00 : f32
    %60 = vector.shape_cast %59 : vector<16x1xi1> to vector<1x16x1xi1>
    %61 = vector.broadcast %60 : vector<1x16x1xi1> to vector<20x16x4xi1>
    %62 = vector.broadcast %cst_39 : f32 to vector<20x16x4xf32>
    %63 = arith.select %61, %50, %62 : vector<20x16x4xi1>, vector<20x16x4xf32>
    %c14_i32 = arith.constant 14 : i32
    %64 = tpu.dynamic_rotate %21 by %c14_i32 dim 1 : vector<20x16x4xf32>, i32 -> vector<20x16x4xf32>
    %c2_i32_40 = arith.constant 2 : i32
    %65 = vector.broadcast %c2_i32_40 : i32 to vector<16x1xi32>
    %66 = arith.addi %14, %65 : vector<16x1xi32>
    %c0_i32_41 = arith.constant 0 : i32
    %67 = vector.broadcast %c0_i32_41 : i32 to vector<16x1xi32>
    %68 = arith.cmpi sge, %66, %67 : vector<16x1xi32>
    %c2_i32_42 = arith.constant 2 : i32
    %69 = vector.broadcast %c2_i32_42 : i32 to vector<16x1xi32>
    %70 = arith.addi %14, %69 : vector<16x1xi32>
    %c16_i32_43 = arith.constant 16 : i32
    %71 = vector.broadcast %c16_i32_43 : i32 to vector<16x1xi32>
    %72 = arith.cmpi slt, %70, %71 : vector<16x1xi32>
    %73 = arith.andi %68, %72 : vector<16x1xi1>
    %cst_44 = arith.constant 0.000000e+00 : f32
    %74 = vector.shape_cast %73 : vector<16x1xi1> to vector<1x16x1xi1>
    %75 = vector.broadcast %74 : vector<1x16x1xi1> to vector<20x16x4xi1>
    %76 = vector.broadcast %cst_44 : f32 to vector<20x16x4xf32>
    %77 = arith.select %75, %64, %76 : vector<20x16x4xi1>, vector<20x16x4xf32>
    %78 = vector.extract_strided_slice %35 {offsets = [0, 0, 0], sizes = [16, 16, 4], strides = [1, 1, 1]} : vector<20x16x4xf32> to vector<16x16x4xf32>
    %79 = vector.extract_strided_slice %0 {offsets = [0, 0], sizes = [1, 4], strides = [1, 1]} : vector<25x4xf32> to vector<1x4xf32>
    %80 = vector.shape_cast %79 : vector<1x4xf32> to vector<1x1x4xf32>
    %81 = vector.broadcast %80 : vector<1x1x4xf32> to vector<16x16x4xf32>
    %82 = arith.mulf %78, %81 : vector<16x16x4xf32>
    %83 = vector.extract_strided_slice %49 {offsets = [0, 0, 0], sizes = [16, 16, 4], strides = [1, 1, 1]} : vector<20x16x4xf32> to vector<16x16x4xf32>
    %84 = vector.extract_strided_slice %0 {offsets = [1, 0], sizes = [1, 4], strides = [1, 1]} : vector<25x4xf32> to vector<1x4xf32>
    %85 = vector.shape_cast %84 : vector<1x4xf32> to vector<1x1x4xf32>
    %86 = vector.broadcast %85 : vector<1x1x4xf32> to vector<16x16x4xf32>
    %87 = arith.mulf %83, %86 : vector<16x16x4xf32>
    %88 = arith.addf %82, %87 : vector<16x16x4xf32>
    %89 = vector.extract_strided_slice %21 {offsets = [0, 0, 0], sizes = [16, 16, 4], strides = [1, 1, 1]} : vector<20x16x4xf32> to vector<16x16x4xf32>
    %90 = vector.extract_strided_slice %0 {offsets = [2, 0], sizes = [1, 4], strides = [1, 1]} : vector<25x4xf32> to vector<1x4xf32>
    %91 = vector.shape_cast %90 : vector<1x4xf32> to vector<1x1x4xf32>
    %92 = vector.broadcast %91 : vector<1x1x4xf32> to vector<16x16x4xf32>
    %93 = arith.mulf %89, %92 : vector<16x16x4xf32>
    %94 = arith.addf %88, %93 : vector<16x16x4xf32>
    %95 = vector.extract_strided_slice %63 {offsets = [0, 0, 0], sizes = [16, 16, 4], strides = [1, 1, 1]} : vector<20x16x4xf32> to vector<16x16x4xf32>
    %96 = vector.extract_strided_slice %0 {offsets = [3, 0], sizes = [1, 4], strides = [1, 1]} : vector<25x4xf32> to vector<1x4xf32>
    %97 = vector.shape_cast %96 : vector<1x4xf32> to vector<1x1x4xf32>
    %98 = vector.broadcast %97 : vector<1x1x4xf32> to vector<16x16x4xf32>
    %99 = arith.mulf %95, %98 : vector<16x16x4xf32>
    %100 = arith.addf %94, %99 : vector<16x16x4xf32>
    %101 = vector.extract_strided_slice %77 {offsets = [0, 0, 0], sizes = [16, 16, 4], strides = [1, 1, 1]} : vector<20x16x4xf32> to vector<16x16x4xf32>
    %102 = vector.extract_strided_slice %0 {offsets = [4, 0], sizes = [1, 4], strides = [1, 1]} : vector<25x4xf32> to vector<1x4xf32>
    %103 = vector.shape_cast %102 : vector<1x4xf32> to vector<1x1x4xf32>
    %104 = vector.broadcast %103 : vector<1x1x4xf32> to vector<16x16x4xf32>
    %105 = arith.mulf %101, %104 : vector<16x16x4xf32>
    %106 = arith.addf %100, %105 : vector<16x16x4xf32>
    %107 = arith.addf %7, %106 : vector<16x16x4xf32>
    %108 = vector.extract_strided_slice %35 {offsets = [1, 0, 0], sizes = [16, 16, 4], strides = [1, 1, 1]} : vector<20x16x4xf32> to vector<16x16x4xf32>
    %109 = vector.extract_strided_slice %0 {offsets = [5, 0], sizes = [1, 4], strides = [1, 1]} : vector<25x4xf32> to vector<1x4xf32>
    %110 = vector.shape_cast %109 : vector<1x4xf32> to vector<1x1x4xf32>
    %111 = vector.broadcast %110 : vector<1x1x4xf32> to vector<16x16x4xf32>
    %112 = arith.mulf %108, %111 : vector<16x16x4xf32>
    %113 = vector.extract_strided_slice %49 {offsets = [1, 0, 0], sizes = [16, 16, 4], strides = [1, 1, 1]} : vector<20x16x4xf32> to vector<16x16x4xf32>
    %114 = vector.extract_strided_slice %0 {offsets = [6, 0], sizes = [1, 4], strides = [1, 1]} : vector<25x4xf32> to vector<1x4xf32>
    %115 = vector.shape_cast %114 : vector<1x4xf32> to vector<1x1x4xf32>
    %116 = vector.broadcast %115 : vector<1x1x4xf32> to vector<16x16x4xf32>
    %117 = arith.mulf %113, %116 : vector<16x16x4xf32>
    %118 = arith.addf %112, %117 : vector<16x16x4xf32>
    %119 = vector.extract_strided_slice %21 {offsets = [1, 0, 0], sizes = [16, 16, 4], strides = [1, 1, 1]} : vector<20x16x4xf32> to vector<16x16x4xf32>
    %120 = vector.extract_strided_slice %0 {offsets = [7, 0], sizes = [1, 4], strides = [1, 1]} : vector<25x4xf32> to vector<1x4xf32>
    %121 = vector.shape_cast %120 : vector<1x4xf32> to vector<1x1x4xf32>
    %122 = vector.broadcast %121 : vector<1x1x4xf32> to vector<16x16x4xf32>
    %123 = arith.mulf %119, %122 : vector<16x16x4xf32>
    %124 = arith.addf %118, %123 : vector<16x16x4xf32>
    %125 = vector.extract_strided_slice %63 {offsets = [1, 0, 0], sizes = [16, 16, 4], strides = [1, 1, 1]} : vector<20x16x4xf32> to vector<16x16x4xf32>
    %126 = vector.extract_strided_slice %0 {offsets = [8, 0], sizes = [1, 4], strides = [1, 1]} : vector<25x4xf32> to vector<1x4xf32>
    %127 = vector.shape_cast %126 : vector<1x4xf32> to vector<1x1x4xf32>
    %128 = vector.broadcast %127 : vector<1x1x4xf32> to vector<16x16x4xf32>
    %129 = arith.mulf %125, %128 : vector<16x16x4xf32>
    %130 = arith.addf %124, %129 : vector<16x16x4xf32>
    %131 = vector.extract_strided_slice %77 {offsets = [1, 0, 0], sizes = [16, 16, 4], strides = [1, 1, 1]} : vector<20x16x4xf32> to vector<16x16x4xf32>
    %132 = vector.extract_strided_slice %0 {offsets = [9, 0], sizes = [1, 4], strides = [1, 1]} : vector<25x4xf32> to vector<1x4xf32>
    %133 = vector.shape_cast %132 : vector<1x4xf32> to vector<1x1x4xf32>
    %134 = vector.broadcast %133 : vector<1x1x4xf32> to vector<16x16x4xf32>
    %135 = arith.mulf %131, %134 : vector<16x16x4xf32>
    %136 = arith.addf %130, %135 : vector<16x16x4xf32>
    %137 = arith.addf %107, %136 : vector<16x16x4xf32>
    %138 = vector.extract_strided_slice %35 {offsets = [2, 0, 0], sizes = [16, 16, 4], strides = [1, 1, 1]} : vector<20x16x4xf32> to vector<16x16x4xf32>
    %139 = vector.extract_strided_slice %0 {offsets = [10, 0], sizes = [1, 4], strides = [1, 1]} : vector<25x4xf32> to vector<1x4xf32>
    %140 = vector.shape_cast %139 : vector<1x4xf32> to vector<1x1x4xf32>
    %141 = vector.broadcast %140 : vector<1x1x4xf32> to vector<16x16x4xf32>
    %142 = arith.mulf %138, %141 : vector<16x16x4xf32>
    %143 = vector.extract_strided_slice %49 {offsets = [2, 0, 0], sizes = [16, 16, 4], strides = [1, 1, 1]} : vector<20x16x4xf32> to vector<16x16x4xf32>
    %144 = vector.extract_strided_slice %0 {offsets = [11, 0], sizes = [1, 4], strides = [1, 1]} : vector<25x4xf32> to vector<1x4xf32>
    %145 = vector.shape_cast %144 : vector<1x4xf32> to vector<1x1x4xf32>
    %146 = vector.broadcast %145 : vector<1x1x4xf32> to vector<16x16x4xf32>
    %147 = arith.mulf %143, %146 : vector<16x16x4xf32>
    %148 = arith.addf %142, %147 : vector<16x16x4xf32>
    %149 = vector.extract_strided_slice %21 {offsets = [2, 0, 0], sizes = [16, 16, 4], strides = [1, 1, 1]} : vector<20x16x4xf32> to vector<16x16x4xf32>
    %150 = vector.extract_strided_slice %0 {offsets = [12, 0], sizes = [1, 4], strides = [1, 1]} : vector<25x4xf32> to vector<1x4xf32>
    %151 = vector.shape_cast %150 : vector<1x4xf32> to vector<1x1x4xf32>
    %152 = vector.broadcast %151 : vector<1x1x4xf32> to vector<16x16x4xf32>
    %153 = arith.mulf %149, %152 : vector<16x16x4xf32>
    %154 = arith.addf %148, %153 : vector<16x16x4xf32>
    %155 = vector.extract_strided_slice %63 {offsets = [2, 0, 0], sizes = [16, 16, 4], strides = [1, 1, 1]} : vector<20x16x4xf32> to vector<16x16x4xf32>
    %156 = vector.extract_strided_slice %0 {offsets = [13, 0], sizes = [1, 4], strides = [1, 1]} : vector<25x4xf32> to vector<1x4xf32>
    %157 = vector.shape_cast %156 : vector<1x4xf32> to vector<1x1x4xf32>
    %158 = vector.broadcast %157 : vector<1x1x4xf32> to vector<16x16x4xf32>
    %159 = arith.mulf %155, %158 : vector<16x16x4xf32>
    %160 = arith.addf %154, %159 : vector<16x16x4xf32>
    %161 = vector.extract_strided_slice %77 {offsets = [2, 0, 0], sizes = [16, 16, 4], strides = [1, 1, 1]} : vector<20x16x4xf32> to vector<16x16x4xf32>
    %162 = vector.extract_strided_slice %0 {offsets = [14, 0], sizes = [1, 4], strides = [1, 1]} : vector<25x4xf32> to vector<1x4xf32>
    %163 = vector.shape_cast %162 : vector<1x4xf32> to vector<1x1x4xf32>
    %164 = vector.broadcast %163 : vector<1x1x4xf32> to vector<16x16x4xf32>
    %165 = arith.mulf %161, %164 : vector<16x16x4xf32>
    %166 = arith.addf %160, %165 : vector<16x16x4xf32>
    %167 = arith.addf %137, %166 : vector<16x16x4xf32>
    %168 = vector.extract_strided_slice %35 {offsets = [3, 0, 0], sizes = [16, 16, 4], strides = [1, 1, 1]} : vector<20x16x4xf32> to vector<16x16x4xf32>
    %169 = vector.extract_strided_slice %0 {offsets = [15, 0], sizes = [1, 4], strides = [1, 1]} : vector<25x4xf32> to vector<1x4xf32>
    %170 = vector.shape_cast %169 : vector<1x4xf32> to vector<1x1x4xf32>
    %171 = vector.broadcast %170 : vector<1x1x4xf32> to vector<16x16x4xf32>
    %172 = arith.mulf %168, %171 : vector<16x16x4xf32>
    %173 = vector.extract_strided_slice %49 {offsets = [3, 0, 0], sizes = [16, 16, 4], strides = [1, 1, 1]} : vector<20x16x4xf32> to vector<16x16x4xf32>
    %174 = vector.extract_strided_slice %0 {offsets = [16, 0], sizes = [1, 4], strides = [1, 1]} : vector<25x4xf32> to vector<1x4xf32>
    %175 = vector.shape_cast %174 : vector<1x4xf32> to vector<1x1x4xf32>
    %176 = vector.broadcast %175 : vector<1x1x4xf32> to vector<16x16x4xf32>
    %177 = arith.mulf %173, %176 : vector<16x16x4xf32>
    %178 = arith.addf %172, %177 : vector<16x16x4xf32>
    %179 = vector.extract_strided_slice %21 {offsets = [3, 0, 0], sizes = [16, 16, 4], strides = [1, 1, 1]} : vector<20x16x4xf32> to vector<16x16x4xf32>
    %180 = vector.extract_strided_slice %0 {offsets = [17, 0], sizes = [1, 4], strides = [1, 1]} : vector<25x4xf32> to vector<1x4xf32>
    %181 = vector.shape_cast %180 : vector<1x4xf32> to vector<1x1x4xf32>
    %182 = vector.broadcast %181 : vector<1x1x4xf32> to vector<16x16x4xf32>
    %183 = arith.mulf %179, %182 : vector<16x16x4xf32>
    %184 = arith.addf %178, %183 : vector<16x16x4xf32>
    %185 = vector.extract_strided_slice %63 {offsets = [3, 0, 0], sizes = [16, 16, 4], strides = [1, 1, 1]} : vector<20x16x4xf32> to vector<16x16x4xf32>
    %186 = vector.extract_strided_slice %0 {offsets = [18, 0], sizes = [1, 4], strides = [1, 1]} : vector<25x4xf32> to vector<1x4xf32>
    %187 = vector.shape_cast %186 : vector<1x4xf32> to vector<1x1x4xf32>
    %188 = vector.broadcast %187 : vector<1x1x4xf32> to vector<16x16x4xf32>
    %189 = arith.mulf %185, %188 : vector<16x16x4xf32>
    %190 = arith.addf %184, %189 : vector<16x16x4xf32>
    %191 = vector.extract_strided_slice %77 {offsets = [3, 0, 0], sizes = [16, 16, 4], strides = [1, 1, 1]} : vector<20x16x4xf32> to vector<16x16x4xf32>
    %192 = vector.extract_strided_slice %0 {offsets = [19, 0], sizes = [1, 4], strides = [1, 1]} : vector<25x4xf32> to vector<1x4xf32>
    %193 = vector.shape_cast %192 : vector<1x4xf32> to vector<1x1x4xf32>
    %194 = vector.broadcast %193 : vector<1x1x4xf32> to vector<16x16x4xf32>
    %195 = arith.mulf %191, %194 : vector<16x16x4xf32>
    %196 = arith.addf %190, %195 : vector<16x16x4xf32>
    %197 = arith.addf %167, %196 : vector<16x16x4xf32>
    %198 = vector.extract_strided_slice %35 {offsets = [4, 0, 0], sizes = [16, 16, 4], strides = [1, 1, 1]} : vector<20x16x4xf32> to vector<16x16x4xf32>
    %199 = vector.extract_strided_slice %0 {offsets = [20, 0], sizes = [1, 4], strides = [1, 1]} : vector<25x4xf32> to vector<1x4xf32>
    %200 = vector.shape_cast %199 : vector<1x4xf32> to vector<1x1x4xf32>
    %201 = vector.broadcast %200 : vector<1x1x4xf32> to vector<16x16x4xf32>
    %202 = arith.mulf %198, %201 : vector<16x16x4xf32>
    %203 = vector.extract_strided_slice %49 {offsets = [4, 0, 0], sizes = [16, 16, 4], strides = [1, 1, 1]} : vector<20x16x4xf32> to vector<16x16x4xf32>
    %204 = vector.extract_strided_slice %0 {offsets = [21, 0], sizes = [1, 4], strides = [1, 1]} : vector<25x4xf32> to vector<1x4xf32>
    %205 = vector.shape_cast %204 : vector<1x4xf32> to vector<1x1x4xf32>
    %206 = vector.broadcast %205 : vector<1x1x4xf32> to vector<16x16x4xf32>
    %207 = arith.mulf %203, %206 : vector<16x16x4xf32>
    %208 = arith.addf %202, %207 : vector<16x16x4xf32>
    %209 = vector.extract_strided_slice %21 {offsets = [4, 0, 0], sizes = [16, 16, 4], strides = [1, 1, 1]} : vector<20x16x4xf32> to vector<16x16x4xf32>
    %210 = vector.extract_strided_slice %0 {offsets = [22, 0], sizes = [1, 4], strides = [1, 1]} : vector<25x4xf32> to vector<1x4xf32>
    %211 = vector.shape_cast %210 : vector<1x4xf32> to vector<1x1x4xf32>
    %212 = vector.broadcast %211 : vector<1x1x4xf32> to vector<16x16x4xf32>
    %213 = arith.mulf %209, %212 : vector<16x16x4xf32>
    %214 = arith.addf %208, %213 : vector<16x16x4xf32>
    %215 = vector.extract_strided_slice %63 {offsets = [4, 0, 0], sizes = [16, 16, 4], strides = [1, 1, 1]} : vector<20x16x4xf32> to vector<16x16x4xf32>
    %216 = vector.extract_strided_slice %0 {offsets = [23, 0], sizes = [1, 4], strides = [1, 1]} : vector<25x4xf32> to vector<1x4xf32>
    %217 = vector.shape_cast %216 : vector<1x4xf32> to vector<1x1x4xf32>
    %218 = vector.broadcast %217 : vector<1x1x4xf32> to vector<16x16x4xf32>
    %219 = arith.mulf %215, %218 : vector<16x16x4xf32>
    %220 = arith.addf %214, %219 : vector<16x16x4xf32>
    %221 = vector.extract_strided_slice %77 {offsets = [4, 0, 0], sizes = [16, 16, 4], strides = [1, 1, 1]} : vector<20x16x4xf32> to vector<16x16x4xf32>
    %222 = vector.extract_strided_slice %0 {offsets = [24, 0], sizes = [1, 4], strides = [1, 1]} : vector<25x4xf32> to vector<1x4xf32>
    %223 = vector.shape_cast %222 : vector<1x4xf32> to vector<1x1x4xf32>
    %224 = vector.broadcast %223 : vector<1x1x4xf32> to vector<16x16x4xf32>
    %225 = arith.mulf %221, %224 : vector<16x16x4xf32>
    %226 = arith.addf %220, %225 : vector<16x16x4xf32>
    %227 = arith.addf %197, %226 : vector<16x16x4xf32>
    %228 = vector.shape_cast %227 : vector<16x16x4xf32> to vector<256x4xf32>
    %cst_45 = arith.constant dense<0.000000e+00> : vector<256xf32>
    %229 = vector.multi_reduction <add>, %228, %cst_45 [1] : vector<256x4xf32> to vector<256xf32>
    %230 = vector.shape_cast %229 : vector<256xf32> to vector<256x1xf32>
    %cst_46 = arith.constant 4.000000e+00 : f32
    %231 = vector.broadcast %cst_46 : f32 to vector<256x1xf32>
    %232 = arith.divf %230, %231 : vector<256x1xf32>
    %233 = arith.mulf %228, %228 : vector<256x4xf32>
    %cst_47 = arith.constant dense<0.000000e+00> : vector<256xf32>
    %234 = vector.multi_reduction <add>, %233, %cst_47 [1] : vector<256x4xf32> to vector<256xf32>
    %235 = vector.shape_cast %234 : vector<256xf32> to vector<256x1xf32>
    %cst_48 = arith.constant 4.000000e+00 : f32
    %236 = vector.broadcast %cst_48 : f32 to vector<256x1xf32>
    %237 = arith.divf %235, %236 : vector<256x1xf32>
    %238 = arith.mulf %232, %232 : vector<256x1xf32>
    %239 = arith.subf %237, %238 : vector<256x1xf32>
    %cst_49 = arith.constant 0.000000e+00 : f32
    %240 = vector.broadcast %cst_49 : f32 to vector<256x1xf32>
    %241 = arith.maximumf %239, %240 : vector<256x1xf32>
    %242 = vector.broadcast %232 : vector<256x1xf32> to vector<256x4xf32>
    %243 = arith.subf %228, %242 : vector<256x4xf32>
    %cst_50 = arith.constant 9.99999974E-6 : f32
    %244 = vector.broadcast %cst_50 : f32 to vector<256x1xf32>
    %245 = arith.addf %241, %244 : vector<256x1xf32>
    %246 = math.rsqrt %245 : vector<256x1xf32>
    %247 = vector.broadcast %246 : vector<256x1xf32> to vector<256x4xf32>
    %248 = arith.mulf %243, %247 : vector<256x4xf32>
    %249 = vector.broadcast %1 : vector<1x4xf32> to vector<256x4xf32>
    %250 = arith.mulf %248, %249 : vector<256x4xf32>
    %251 = vector.broadcast %2 : vector<1x4xf32> to vector<256x4xf32>
    %252 = arith.addf %250, %251 : vector<256x4xf32>
    %253 = arith.truncf %252 : vector<256x4xf32> to vector<256x4xbf16>
    %cst_51 = arith.constant dense<0.000000e+00> : vector<256x16xf32>
    %254 = tpu.matmul %253, %3, %cst_51 {dimension_numbers = #tpu.dot_dimension_numbers<[1], [0], [0], [1], [0, 0, 1, 1], [], []>} : vector<256x4xbf16>, vector<4x16xbf16>, vector<256x16xf32> -> vector<256x16xf32>
    %255 = arith.addf %254, %10 : vector<256x16xf32>
    %cst_52 = arith.constant 5.000000e-01 : f32
    %256 = vector.broadcast %cst_52 : f32 to vector<256x16xf32>
    %257 = arith.mulf %256, %255 : vector<256x16xf32>
    %cst_53 = arith.constant 0.707106769 : f32
    %258 = vector.broadcast %cst_53 : f32 to vector<256x16xf32>
    %259 = arith.mulf %255, %258 : vector<256x16xf32>
    %260 = math.erf %259 : vector<256x16xf32>
    %cst_54 = arith.constant 1.000000e+00 : f32
    %261 = vector.broadcast %cst_54 : f32 to vector<256x16xf32>
    %262 = arith.addf %261, %260 : vector<256x16xf32>
    %263 = arith.mulf %257, %262 : vector<256x16xf32>
    %264 = arith.truncf %263 : vector<256x16xf32> to vector<256x16xbf16>
    %cst_55 = arith.constant dense<0.000000e+00> : vector<256x4xf32>
    %265 = tpu.matmul %264, %4, %cst_55 {dimension_numbers = #tpu.dot_dimension_numbers<[1], [0], [0], [1], [0, 0, 1, 1], [], []>} : vector<256x16xbf16>, vector<16x4xbf16>, vector<256x4xf32> -> vector<256x4xf32>
    %266 = arith.addf %265, %13 : vector<256x4xf32>
    %c0_56 = arith.constant 0 : index
    %c0_57 = arith.constant 0 : index
    %267 = vector.load %arg10[%c0_56, %c0_57] : memref<256x4xf32, #tpu.memory_space<vmem>>, vector<256x4xf32>
    tpu.vector_store %arg10[%c0_56, %c0_57], %266 {strides = array<i32>} : memref<256x4xf32, #tpu.memory_space<vmem>>, vector<256x4xf32>,
    return
  }
  func.func @transform_0(%arg0: i32) -> (i32, i32, i32) {
    %c0_i32 = arith.constant 0 : i32
    %c0_i32_0 = arith.constant 0 : i32
    %c0_i32_1 = arith.constant 0 : i32
    return %arg0, %c0_i32, %c0_i32_0 : i32, i32, i32
  }
  func.func @transform_1(%arg0: i32) -> (i32, i32) {
    %c0_i32 = arith.constant 0 : i32
    %c0_i32_0 = arith.constant 0 : i32
    %c0_i32_1 = arith.constant 0 : i32
    return %c0_i32, %c0_i32_0 : i32, i32
  }
  func.func @transform_2(%arg0: i32) -> (i32, i32) {
    %c0_i32 = arith.constant 0 : i32
    %c0_i32_0 = arith.constant 0 : i32
    %c0_i32_1 = arith.constant 0 : i32
    return %c0_i32, %c0_i32_0 : i32, i32
  }
  func.func @transform_3(%arg0: i32) -> (i32, i32) {
    %c0_i32 = arith.constant 0 : i32
    %c0_i32_0 = arith.constant 0 : i32
    %c0_i32_1 = arith.constant 0 : i32
    return %c0_i32, %c0_i32_0 : i32, i32
  }
  func.func @transform_4(%arg0: i32) -> (i32, i32) {
    %c0_i32 = arith.constant 0 : i32
    %c0_i32_0 = arith.constant 0 : i32
    %c0_i32_1 = arith.constant 0 : i32
    return %c0_i32, %c0_i32_0 : i32, i32
  }
  func.func @transform_5(%arg0: i32) -> (i32, i32) {
    %c0_i32 = arith.constant 0 : i32
    %c0_i32_0 = arith.constant 0 : i32
    %c0_i32_1 = arith.constant 0 : i32
    return %c0_i32, %c0_i32_0 : i32, i32
  }
  func.func @transform_6(%arg0: i32) -> (i32, i32) {
    %c0_i32 = arith.constant 0 : i32
    %c0_i32_0 = arith.constant 0 : i32
    %c0_i32_1 = arith.constant 0 : i32
    return %c0_i32, %c0_i32_0 : i32, i32
  }
  func.func @transform_7(%arg0: i32) -> (i32, i32) {
    %c0_i32 = arith.constant 0 : i32
    %c0_i32_0 = arith.constant 0 : i32
    %c0_i32_1 = arith.constant 0 : i32
    return %c0_i32, %c0_i32_0 : i32, i32
  }
  func.func @transform_8(%arg0: i32) -> (i32, i32) {
    %c0_i32 = arith.constant 0 : i32
    %c0_i32_0 = arith.constant 0 : i32
    %c0_i32_1 = arith.constant 0 : i32
    return %c0_i32, %c0_i32_0 : i32, i32
  }
  func.func @transform_9(%arg0: i32) -> (i32, i32) {
    %c0_i32 = arith.constant 0 : i32
    %c0_i32_0 = arith.constant 0 : i32
    return %arg0, %c0_i32 : i32, i32
  }
}

</mosaic_0001>

<llo_original>
// kernel: tpu_custom_call.1
$region0: #{tpu_custom_call.1}
  #allocation0 [shape = 'u32[]', space=smem, size = 0x4, offset = 0x4, fixed_abs, tag = 'smem constant byte address 0x4 - core index']
  #allocation1 [shape = 'u32[144,128]{1,0:T(1,128)}', space=vmem, size = 0x12000, scoped, tag = 'internal scratch']
  #allocation2 [shape = 'f32[20,16,4]{2,1,0:T(8,128)}', space=vmem, size = 0x28000, scoped, tag = 'scratch operand']
  %s0 = inlined_call_operand.vmem [shape: f32[32,16,4], index: 0, kind: input, shape index: {}]
  %s1 = inlined_call_operand.vmem [shape: f32[25,4], index: 1, kind: input, shape index: {}]
  %s2 = inlined_call_operand.vmem [shape: f32[1,4], index: 2, kind: input, shape index: {}]
  %s3 = inlined_call_operand.vmem [shape: f32[1,4], index: 3, kind: input, shape index: {}]
  %s4 = inlined_call_operand.vmem [shape: f32[1,4], index: 4, kind: input, shape index: {}]
  %s5 = inlined_call_operand.vmem [shape: bf16[4,16], index: 5, kind: input, shape index: {}]
  %s6 = inlined_call_operand.vmem [shape: f32[1,16], index: 6, kind: input, shape index: {}]
  %s7 = inlined_call_operand.vmem [shape: bf16[16,4], index: 7, kind: input, shape index: {}]
  %s8 = inlined_call_operand.vmem [shape: f32[1,4], index: 8, kind: input, shape index: {}]
  %s9 = inlined_call_operand.vmem [shape: f32[512,4], index: 9, kind: output, shape index: {}]
  %s10 = sld [smem:[#allocation0]]
  $region69: #{tpu_custom_call.1} parent=0
    _
  %s12 = ssub.s32 1, %s10
  %s13 = scalar_select 0, %s12, %s10
  loop: start=0, step=1, limit=4
  $region2: #{tpu_custom_call.1} parent=0 // loop_pre_header
    _
  $region3: #{tpu_custom_call.1} parent=0 // loop_header
    %s15 = sphi 0, %s19
    %p16 = scmp.ge.s32.totalorder %s15, 4
    %s25 = sphi 0, %s27
    %s28 = sphi 0, %s25
    %s29 = sphi 0, %s28
    %s45 = sphi 0, %s29
    %s49 = sphi 0, %s49
    %s51 = sphi 0, %s49
    %s52 = sphi 0, %s51
    %s66 = sphi 0, %s52
    %s70 = sphi 0, %s70
    %s72 = sphi 0, %s70
    %s73 = sphi 0, %s72
    %s87 = sphi 0, %s73
    %s91 = sphi 0, %s91
    %s93 = sphi 0, %s91
    %s94 = sphi 0, %s93
    %s108 = sphi 0, %s94
    %s112 = sphi 0, %s112
    %s114 = sphi 0, %s112
    %s115 = sphi 0, %s114
    %s129 = sphi 0, %s115
    %s133 = sphi 0, %s133
    %s135 = sphi 0, %s133
    %s136 = sphi 0, %s135
    %s150 = sphi 0, %s136
    %s154 = sphi 0, %s154
    %s156 = sphi 0, %s154
    %s157 = sphi 0, %s156
    %s171 = sphi 0, %s157
    %s175 = sphi 0, %s175
    %s177 = sphi 0, %s175
    %s178 = sphi 0, %s177
    %s192 = sphi 0, %s178
    %s196 = sphi 0, %s196
    %s198 = sphi 0, %s196
    %s199 = sphi 0, %s198
    %s213 = sphi 0, %s199
    %s219 = sphi 0, %s221
    %s222 = sphi 0, %s219
    %s223 = sphi 0, %s222
    %s239 = sphi 0, %s223
  $region4: #{tpu_custom_call.1} parent=0 // loop_header_branch
    %18 = sbr.rel (%p16) target = $region8
  $region5: #{tpu_custom_call.1} parent=0 // loop_body
    %s20 = ssub.s32 %s15, 1
    %s21 = ssub.s32 %s15, 2
    %s22 = sadd.s32 %s15, 1
    %s23 = ssub.s32 %s15, %s22
    %p24 = scmp.eq.s32.totalorder %s23, 0
    %s26 = sadd.s32 %s25, 1
    %s27 = scalar_select %p24, %s25, %s26
    %p30 = pneg %p24
    %p31 = scmp.eq.s32.totalorder %s15, 1
    %p32 = por %p30, %p31
    %p33 = scmp.ne.s32.totalorder %s25, %s28
    %p34 = scmp.eq.s32.totalorder %s15, 0
    %p35 = por %p33, %p34
    %p36 = scmp.ne.s32.totalorder %s25, %s28
    %p37 = scmp.eq.s32.totalorder %s20, 1
    %p38 = por %p36, %p37
    %p39 = scmp.ne.s32.totalorder %s28, %s29
    %p40 = scmp.eq.s32.totalorder %s20, 0
    %p41 = por %p39, %p40
    %p42 = scmp.ne.s32.totalorder %s28, %s29
    %p43 = scmp.eq.s32.totalorder %s21, 1
    %p44 = por %p42, %p43
    %p46 = scmp.ne.s32.totalorder %s29, %s45
    %p47 = scmp.eq.s32.totalorder %s21, 0
    %p48 = por %p46, %p47
    %s50 = sadd.s32 %s49, 1
    %p53 = scmp.eq.s32.totalorder %s15, 1
    %p54 = scmp.ne.s32.totalorder %s49, %s51
    %p55 = scmp.eq.s32.totalorder %s15, 0
    %p56 = por %p54, %p55
    %p57 = scmp.ne.s32.totalorder %s49, %s51
    %p58 = scmp.eq.s32.totalorder %s20, 1
    %p59 = por %p57, %p58
    %p60 = scmp.ne.s32.totalorder %s51, %s52
    %p61 = scmp.eq.s32.totalorder %s20, 0
    %p62 = por %p60, %p61
    %p63 = scmp.ne.s32.totalorder %s51, %s52
    %p64 = scmp.eq.s32.totalorder %s21, 1
    %p65 = por %p63, %p64
    %p67 = scmp.ne.s32.totalorder %s52, %s66
    %p68 = scmp.eq.s32.totalorder %s21, 0
    %p69 = por %p67, %p68
    %s71 = sadd.s32 %s70, 1
    %p74 = scmp.eq.s32.totalorder %s15, 1
    %p75 = scmp.ne.s32.totalorder %s70, %s72
    %p76 = scmp.eq.s32.totalorder %s15, 0
    %p77 = por %p75, %p76
    %p78 = scmp.ne.s32.totalorder %s70, %s72
    %p79 = scmp.eq.s32.totalorder %s20, 1
    %p80 = por %p78, %p79
    %p81 = scmp.ne.s32.totalorder %s72, %s73
    %p82 = scmp.eq.s32.totalorder %s20, 0
    %p83 = por %p81, %p82
    %p84 = scmp.ne.s32.totalorder %s72, %s73
    %p85 = scmp.eq.s32.totalorder %s21, 1
    %p86 = por %p84, %p85
    %p88 = scmp.ne.s32.totalorder %s73, %s87
    %p89 = scmp.eq.s32.totalorder %s21, 0
    %p90 = por %p88, %p89
    %s92 = sadd.s32 %s91, 1
    %p95 = scmp.eq.s32.totalorder %s15, 1
    %p96 = scmp.ne.s32.totalorder %s91, %s93
    %p97 = scmp.eq.s32.totalorder %s15, 0
    %p98 = por %p96, %p97
    %p99 = scmp.ne.s32.totalorder %s91, %s93
    %p100 = scmp.eq.s32.totalorder %s20, 1
    %p101 = por %p99, %p100
    %p102 = scmp.ne.s32.totalorder %s93, %s94
    %p103 = scmp.eq.s32.totalorder %s20, 0
    %p104 = por %p102, %p103
    %p105 = scmp.ne.s32.totalorder %s93, %s94
    %p106 = scmp.eq.s32.totalorder %s21, 1
    %p107 = por %p105, %p106
    %p109 = scmp.ne.s32.totalorder %s94, %s108
    %p110 = scmp.eq.s32.totalorder %s21, 0
    %p111 = por %p109, %p110
    %s113 = sadd.s32 %s112, 1
    %p116 = scmp.eq.s32.totalorder %s15, 1
    %p117 = scmp.ne.s32.totalorder %s112, %s114
    %p118 = scmp.eq.s32.totalorder %s15, 0
    %p119 = por %p117, %p118
    %p120 = scmp.ne.s32.totalorder %s112, %s114
    %p121 = scmp.eq.s32.totalorder %s20, 1
    %p122 = por %p120, %p121
    %p123 = scmp.ne.s32.totalorder %s114, %s115
    %p124 = scmp.eq.s32.totalorder %s20, 0
    %p125 = por %p123, %p124
    %p126 = scmp.ne.s32.totalorder %s114, %s115
    %p127 = scmp.eq.s32.totalorder %s21, 1
    %p128 = por %p126, %p127
    %p130 = scmp.ne.s32.totalorder %s115, %s129
    %p131 = scmp.eq.s32.totalorder %s21, 0
    %p132 = por %p130, %p131
    %s134 = sadd.s32 %s133, 1
    %p137 = scmp.eq.s32.totalorder %s15, 1
    %p138 = scmp.ne.s32.totalorder %s133, %s135
    %p139 = scmp.eq.s32.totalorder %s15, 0
    %p140 = por %p138, %p139
    %p141 = scmp.ne.s32.totalorder %s133, %s135
    %p142 = scmp.eq.s32.totalorder %s20, 1
    %p143 = por %p141, %p142
    %p144 = scmp.ne.s32.totalorder %s135, %s136
    %p145 = scmp.eq.s32.totalorder %s20, 0
    %p146 = por %p144, %p145
    %p147 = scmp.ne.s32.totalorder %s135, %s136
    %p148 = scmp.eq.s32.totalorder %s21, 1
    %p149 = por %p147, %p148
    %p151 = scmp.ne.s32.totalorder %s136, %s150
    %p152 = scmp.eq.s32.totalorder %s21, 0
    %p153 = por %p151, %p152
    %s155 = sadd.s32 %s154, 1
    %p158 = scmp.eq.s32.totalorder %s15, 1
    %p159 = scmp.ne.s32.totalorder %s154, %s156
    %p160 = scmp.eq.s32.totalorder %s15, 0
    %p161 = por %p159, %p160
    %p162 = scmp.ne.s32.totalorder %s154, %s156
    %p163 = scmp.eq.s32.totalorder %s20, 1
    %p164 = por %p162, %p163
    %p165 = scmp.ne.s32.totalorder %s156, %s157
    %p166 = scmp.eq.s32.totalorder %s20, 0
    %p167 = por %p165, %p166
    %p168 = scmp.ne.s32.totalorder %s156, %s157
    %p169 = scmp.eq.s32.totalorder %s21, 1
    %p170 = por %p168, %p169
    %p172 = scmp.ne.s32.totalorder %s157, %s171
    %p173 = scmp.eq.s32.totalorder %s21, 0
    %p174 = por %p172, %p173
    %s176 = sadd.s32 %s175, 1
    %p179 = scmp.eq.s32.totalorder %s15, 1
    %p180 = scmp.ne.s32.totalorder %s175, %s177
    %p181 = scmp.eq.s32.totalorder %s15, 0
    %p182 = por %p180, %p181
    %p183 = scmp.ne.s32.totalorder %s175, %s177
    %p184 = scmp.eq.s32.totalorder %s20, 1
    %p185 = por %p183, %p184
    %p186 = scmp.ne.s32.totalorder %s177, %s178
    %p187 = scmp.eq.s32.totalorder %s20, 0
    %p188 = por %p186, %p187
    %p189 = scmp.ne.s32.totalorder %s177, %s178
    %p190 = scmp.eq.s32.totalorder %s21, 1
    %p191 = por %p189, %p190
    %p193 = scmp.ne.s32.totalorder %s178, %s192
    %p194 = scmp.eq.s32.totalorder %s21, 0
    %p195 = por %p193, %p194
    %s197 = sadd.s32 %s196, 1
    %p200 = scmp.eq.s32.totalorder %s15, 1
    %p201 = scmp.ne.s32.totalorder %s196, %s198
    %p202 = scmp.eq.s32.totalorder %s15, 0
    %p203 = por %p201, %p202
    %p204 = scmp.ne.s32.totalorder %s196, %s198
    %p205 = scmp.eq.s32.totalorder %s20, 1
    %p206 = por %p204, %p205
    %p207 = scmp.ne.s32.totalorder %s198, %s199
    %p208 = scmp.eq.s32.totalorder %s20, 0
    %p209 = por %p207, %p208
    %p210 = scmp.ne.s32.totalorder %s198, %s199
    %p211 = scmp.eq.s32.totalorder %s21, 1
    %p212 = por %p210, %p211
    %p214 = scmp.ne.s32.totalorder %s199, %s213
    %p215 = scmp.eq.s32.totalorder %s21, 0
    %p216 = por %p214, %p215
    %s217 = ssub.s32 %s15, %s22
    %p218 = scmp.eq.s32.totalorder %s217, 0
    %s220 = sadd.s32 %s219, 1
    %s221 = scalar_select %p218, %s219, %s220
    %p224 = pneg %p218
    %p225 = scmp.eq.s32.totalorder %s15, 1
    %p226 = por %p224, %p225
    %p227 = scmp.ne.s32.totalorder %s219, %s222
    %p228 = scmp.eq.s32.totalorder %s15, 0
    %p229 = por %p227, %p228
    %p230 = scmp.ne.s32.totalorder %s219, %s222
    %p231 = scmp.eq.s32.totalorder %s20, 1
    %p232 = por %p230, %p231
    %p233 = scmp.ne.s32.totalorder %s222, %s223
    %p234 = scmp.eq.s32.totalorder %s20, 0
    %p235 = por %p233, %p234
    %p236 = scmp.ne.s32.totalorder %s222, %s223
    %p237 = scmp.eq.s32.totalorder %s21, 1
    %p238 = por %p236, %p237
    %p240 = scmp.ne.s32.totalorder %s223, %s239
    %p241 = scmp.eq.s32.totalorder %s21, 0
    %p242 = por %p240, %p241
    %p243 = scmp.le.s32.totalorder 1, %s15
    %p244 = scmp.lt.s32.totalorder %s15, 3
    %p245 = pnand %p243, %p244
    %p246 = pneg %p245
    // Predicated region
    $region9: #{tpu_custom_call.1} parent=5 // pred_check
      _
    $region10: #{tpu_custom_call.1} parent=5 // pred_check_branch
      %248 = sbr.rel (%p245) target = $region12
    $region11: #{tpu_custom_call.1} parent=5 // pred_region
      %s249 = ssub.s32 %s15, 1
      // Predicated region
      $region13: #{tpu_custom_call.1} parent=11 // pred_check
        %p250 = pneg %p62
      $region14: #{tpu_custom_call.1} parent=11 // pred_check_branch
        %252 = sbr.rel (%p250) target = $region16
      $region15: #{tpu_custom_call.1} parent=11 // pred_region
        _
      $region16: #{tpu_custom_call.1} parent=11 // pred_fallthru
        _
      // Predicated region
      $region17: #{tpu_custom_call.1} parent=11 // pred_check
        %p253 = pneg %p83
      $region18: #{tpu_custom_call.1} parent=11 // pred_check_branch
        %255 = sbr.rel (%p253) target = $region20
      $region19: #{tpu_custom_call.1} parent=11 // pred_region
        _
      $region20: #{tpu_custom_call.1} parent=11 // pred_fallthru
        _
      // Predicated region
      $region21: #{tpu_custom_call.1} parent=11 // pred_check
        %p256 = pneg %p104
      $region22: #{tpu_custom_call.1} parent=11 // pred_check_branch
        %258 = sbr.rel (%p256) target = $region24
      $region23: #{tpu_custom_call.1} parent=11 // pred_region
        _
      $region24: #{tpu_custom_call.1} parent=11 // pred_fallthru
        _
      // Predicated region
      $region25: #{tpu_custom_call.1} parent=11 // pred_check
        %p259 = pneg %p125
      $region26: #{tpu_custom_call.1} parent=11 // pred_check_branch
        %261 = sbr.rel (%p259) target = $region28
      $region27: #{tpu_custom_call.1} parent=11 // pred_region
        _
      $region28: #{tpu_custom_call.1} parent=11 // pred_fallthru
        _
      // Predicated region
      $region29: #{tpu_custom_call.1} parent=11 // pred_check
        %p262 = pneg %p146
      $region30: #{tpu_custom_call.1} parent=11 // pred_check_branch
        %264 = sbr.rel (%p262) target = $region32
      $region31: #{tpu_custom_call.1} parent=11 // pred_region
        _
      $region32: #{tpu_custom_call.1} parent=11 // pred_fallthru
        _
      // Predicated region
      $region33: #{tpu_custom_call.1} parent=11 // pred_check
        %p265 = pneg %p167
      $region34: #{tpu_custom_call.1} parent=11 // pred_check_branch
        %267 = sbr.rel (%p265) target = $region36
      $region35: #{tpu_custom_call.1} parent=11 // pred_region
        _
      $region36: #{tpu_custom_call.1} parent=11 // pred_fallthru
        _
      // Predicated region
      $region37: #{tpu_custom_call.1} parent=11 // pred_check
        %p268 = pneg %p188
      $region38: #{tpu_custom_call.1} parent=11 // pred_check_branch
        %270 = sbr.rel (%p268) target = $region40
      $region39: #{tpu_custom_call.1} parent=11 // pred_region
        _
      $region40: #{tpu_custom_call.1} parent=11 // pred_fallthru
        _
      // Predicated region
      $region41: #{tpu_custom_call.1} parent=11 // pred_check
        %p271 = pneg %p209
      $region42: #{tpu_custom_call.1} parent=11 // pred_check_branch
        %273 = sbr.rel (%p271) target = $region44
      $region43: #{tpu_custom_call.1} parent=11 // pred_region
        _
      $region44: #{tpu_custom_call.1} parent=11 // pred_fallthru
        _
    $region12: #{tpu_custom_call.1} parent=5 // pred_fallthru
      _
    %p274 = scmp.lt.s32.totalorder %s15, 2
    // Predicated region
    $region45: #{tpu_custom_call.1} parent=5 // pred_check
      %p275 = pneg %p274
    $region46: #{tpu_custom_call.1} parent=5 // pred_check_branch
      %277 = sbr.rel (%p275) target = $region48
    $region47: #{tpu_custom_call.1} parent=5 // pred_region
      // Predicated region
      $region49: #{tpu_custom_call.1} parent=47 // pred_check
        %p278 = pneg %p35
      $region50: #{tpu_custom_call.1} parent=47 // pred_check_branch
        %280 = sbr.rel (%p278) target = $region52
      $region51: #{tpu_custom_call.1} parent=47 // pred_region
        %s281 = smul.u32 16, %s15
        %p282 = scmp.lt.s32.totalorder %s281, 31
        %s283 = scalar_select %p282, %s281, 31
        %s284 = smul.addr %s283, 2
        %s285 = smul.addr %s284, 8
        %s286 = scalar_lea.vmem %s0, %s285
        %s287 = smul.u32 16, %s15
      $region52: #{tpu_custom_call.1} parent=47 // pred_fallthru
        _
    $region48: #{tpu_custom_call.1} parent=5 // pred_fallthru
      _
    %p288 = scmp.le.s32.totalorder 1, %s15
    %p289 = scmp.lt.s32.totalorder %s15, 3
    %p290 = pnand %p288, %p289
    %p291 = pneg %p290
    // Predicated region
    $region53: #{tpu_custom_call.1} parent=5 // pred_check
      _
    $region54: #{tpu_custom_call.1} parent=5 // pred_check_branch
      %293 = sbr.rel (%p290) target = $region56
    $region55: #{tpu_custom_call.1} parent=5 // pred_region
      %s294 = ssub.s32 %s15, 1
      %s295 = smul.u32 16, %s20
      %p296 = scmp.lt.s32.totalorder %s295, 31
      %s297 = scalar_select %p296, %s295, 31
      %s298 = smul.addr %s297, 2
      %s299 = smul.addr %s298, 8
      %s300 = scalar_lea.vmem %s0, %s299
      %p301 = pneg %p41
      %p302 = pneg %p38
      %p303 = pneg %p62
      %p304 = pneg %p59
      %p305 = pneg %p83
      %p306 = pneg %p80
      %p307 = pneg %p104
      %p308 = pneg %p101
      %p309 = pneg %p125
      %p310 = pneg %p122
      %p311 = pneg %p146
      %p312 = pneg %p143
      %p313 = pneg %p167
      %p314 = pneg %p164
      %p315 = pneg %p188
      %p316 = pneg %p185
      %p317 = pneg %p209
      %p318 = pneg %p206
      %p319 = pneg %p235
      %p320 = pneg %p232
      %s321 = smul.u32 32, %s20
      %p322 = scmp.lt.s32.totalorder %s321, 63
      %s323 = scalar_select %p322, %s321, 63
      %s324 = smul.addr %s323, 8
      %s325 = scalar_lea.vmem %s9, %s324
      %s326 = smul.u32 16, %s20
      %p327 = scmp.lt.s32.totalorder %s326, 31
      %s328 = scalar_select %p327, %s326, 31
      %s329 = smul.addr %s328, 2
      %s330 = smul.addr %s329, 8
      %s331 = scalar_lea.vmem %s0, %s330
      %s332 = smul.u32 16, %s20
      %s333 = smul.u32 32, %s20
      %p334 = scmp.lt.s32.totalorder %s333, 63
      %s335 = scalar_select %p334, %s333, 63
      %s336 = smul.addr %s335, 8
      %s337 = scalar_lea.vmem %s9, %s336
      %s338 = smul.u32 32, %s20
      %v340 = vld [vmem:[%s1] sm:$0xff]
      %v341 = vld [vmem:[%s1 + $0x8] sm:$0xff]
      %v342 = vld [vmem:[%s1 + $0x10] sm:$0xff]
      %v343 = vld [vmem:[%s1 + $0x18] sm:$0x1]
      %v344 = vld [vmem:[%s3] sm:$0x1]
      %v345 = vld [vmem:[%s4] sm:$0x1]
      %v346 = vld [vmem:[%s5] sm:$0x3]
      %v347 = vld [vmem:[%s7] sm:$0xf]
      %v348 = vld [vmem:[%s7 + $0x4] sm:$0xf]
      %v349 = vld [vmem:[%s2] sm:$0x1]
      %v351 = vlaneseq
      %v352 = vshrl.u32 %v351, 7
      %v353 = vsub.s32 0, %v352
      %v354 = vrot.slane %v349, %v353
      %v356 = vld [vmem:[%s6] sm:$0x1]
      %v358 = vlaneseq
      %v359 = vshrl.u32 %v358, 7
      %v360 = vsub.s32 0, %v359
      %v361 = vrot.slane %v356, %v360
      %v363 = vld [vmem:[%s8] sm:$0x1]
      %v365 = vlaneseq
      %v366 = vshrl.u32 %v365, 7
      %v367 = vsub.s32 0, %v366
      %v368 = vrot.slane %v363, %v367
      %v370 = vlaneseq
      %v371 = vshrl.u32 %v370, 7
      %v372 = vadd.s32 %v371, 8
      %vm373 = vcmask 31744
      %374 = vst.msk [vmem:[#allocation2] sm:$0xff] %vm373, 0.0
      %375 = vst.msk [vmem:[#allocation2 + $0x8] sm:$0xff] %vm373, 0.0
      %376 = vst.msk [vmem:[#allocation2 + $0x10] sm:$0xff] %vm373, 0.0
      %377 = vst.msk [vmem:[#allocation2 + $0x18] sm:$0xff] %vm373, 0.0
      %s378 = scalar_lea.vmem [#allocation2], 288
      %379 = vst.msk [vmem:[%s378] sm:$0xff] %vm373, 0.0
      %380 = vst.msk [vmem:[%s378 + $0x8] sm:$0xff] %vm373, 0.0
      %381 = vst.msk [vmem:[%s378 + $0x10] sm:$0xff] %vm373, 0.0
      %382 = vst.msk [vmem:[%s378 + $0x18] sm:$0xff] %vm373, 0.0
      %v383 = vld [vmem:[%s331] sm:$0xff]
      %v384 = vld [vmem:[%s331 + $0x8] sm:$0xff]
      %v385 = vld [vmem:[%s331 + $0x10] sm:$0xff]
      %v386 = vld [vmem:[%s331 + $0x18] sm:$0xff]
      %v387 = vld [vmem:[%s331 + $0x20] sm:$0xff]
      %v388 = vld [vmem:[%s331 + $0x28] sm:$0xff]
      %v389 = vld [vmem:[%s331 + $0x30] sm:$0xff]
      %v390 = vld [vmem:[%s331 + $0x38] sm:$0xff]
      %v391 = vld [vmem:[%s331 + $0x40] sm:$0xff]
      %v392 = vld [vmem:[%s331 + $0x48] sm:$0xff]
      %v393 = vld [vmem:[%s331 + $0x50] sm:$0xff]
      %v394 = vld [vmem:[%s331 + $0x58] sm:$0xff]
      %v395 = vld [vmem:[%s331 + $0x60] sm:$0xff]
      %v396 = vld [vmem:[%s331 + $0x68] sm:$0xff]
      %v397 = vld [vmem:[%s331 + $0x70] sm:$0xff]
      %v398 = vld [vmem:[%s331 + $0x78] sm:$0xff]
      %v399 = vld [vmem:[%s331 + $0x80] sm:$0xff]
      %v400 = vld [vmem:[%s331 + $0x88] sm:$0xff]
      %v401 = vld [vmem:[%s331 + $0x90] sm:$0xff]
      %v402 = vld [vmem:[%s331 + $0x98] sm:$0xff]
      %v403 = vld [vmem:[%s331 + $0xa0] sm:$0xff]
      %v404 = vld [vmem:[%s331 + $0xa8] sm:$0xff]
      %v405 = vld [vmem:[%s331 + $0xb0] sm:$0xff]
      %v406 = vld [vmem:[%s331 + $0xb8] sm:$0xff]
      %v407 = vld [vmem:[%s331 + $0xc0] sm:$0xff]
      %v408 = vld [vmem:[%s331 + $0xc8] sm:$0xff]
      %v409 = vld [vmem:[%s331 + $0xd0] sm:$0xff]
      %v410 = vld [vmem:[%s331 + $0xd8] sm:$0xff]
      %v411 = vld [vmem:[%s331 + $0xe0] sm:$0xff]
      %v412 = vld [vmem:[%s331 + $0xe8] sm:$0xff]
      %v413 = vld [vmem:[%s331 + $0xf0] sm:$0xff]
      %v414 = vld [vmem:[%s331 + $0xf8] sm:$0xff]
      %s415 = scalar_lea.vmem [#allocation2], 32
      %416 = vst.msk [vmem:[%s415] sm:$0xff] %vm373, %v383
      %417 = vst.msk [vmem:[%s415 + $0x8] sm:$0xff] %vm373, %v384
      %418 = vst.msk [vmem:[%s415 + $0x10] sm:$0xff] %vm373, %v385
      %419 = vst.msk [vmem:[%s415 + $0x18] sm:$0xff] %vm373, %v386
      %420 = vst.msk [vmem:[%s415 + $0x20] sm:$0xff] %vm373, %v387
      %421 = vst.msk [vmem:[%s415 + $0x28] sm:$0xff] %vm373, %v388
      %422 = vst.msk [vmem:[%s415 + $0x30] sm:$0xff] %vm373, %v389
      %423 = vst.msk [vmem:[%s415 + $0x38] sm:$0xff] %vm373, %v390
      %424 = vst.msk [vmem:[%s415 + $0x40] sm:$0xff] %vm373, %v391
      %425 = vst.msk [vmem:[%s415 + $0x48] sm:$0xff] %vm373, %v392
      %426 = vst.msk [vmem:[%s415 + $0x50] sm:$0xff] %vm373, %v393
      %427 = vst.msk [vmem:[%s415 + $0x58] sm:$0xff] %vm373, %v394
      %428 = vst.msk [vmem:[%s415 + $0x60] sm:$0xff] %vm373, %v395
      %429 = vst.msk [vmem:[%s415 + $0x68] sm:$0xff] %vm373, %v396
      %430 = vst.msk [vmem:[%s415 + $0x70] sm:$0xff] %vm373, %v397
      %431 = vst.msk [vmem:[%s415 + $0x78] sm:$0xff] %vm373, %v398
      %432 = vst.msk [vmem:[%s415 + $0x80] sm:$0xff] %vm373, %v399
      %433 = vst.msk [vmem:[%s415 + $0x88] sm:$0xff] %vm373, %v400
      %434 = vst.msk [vmem:[%s415 + $0x90] sm:$0xff] %vm373, %v401
      %435 = vst.msk [vmem:[%s415 + $0x98] sm:$0xff] %vm373, %v402
      %436 = vst.msk [vmem:[%s415 + $0xa0] sm:$0xff] %vm373, %v403
      %437 = vst.msk [vmem:[%s415 + $0xa8] sm:$0xff] %vm373, %v404
      %438 = vst.msk [vmem:[%s415 + $0xb0] sm:$0xff] %vm373, %v405
      %439 = vst.msk [vmem:[%s415 + $0xb8] sm:$0xff] %vm373, %v406
      %440 = vst.msk [vmem:[%s415 + $0xc0] sm:$0xff] %vm373, %v407
      %441 = vst.msk [vmem:[%s415 + $0xc8] sm:$0xff] %vm373, %v408
      %442 = vst.msk [vmem:[%s415 + $0xd0] sm:$0xff] %vm373, %v409
      %443 = vst.msk [vmem:[%s415 + $0xd8] sm:$0xff] %vm373, %v410
      %444 = vst.msk [vmem:[%s415 + $0xe0] sm:$0xff] %vm373, %v411
      %445 = vst.msk [vmem:[%s415 + $0xe8] sm:$0xff] %vm373, %v412
      %446 = vst.msk [vmem:[%s415 + $0xf0] sm:$0xff] %vm373, %v413
      %447 = vst.msk [vmem:[%s415 + $0xf8] sm:$0xff] %vm373, %v414
      %v448 = vld [vmem:[#allocation2] sm:$0xff]
      %v449 = vld [vmem:[#allocation2 + $0x8] sm:$0xff]
      %v450 = vld [vmem:[#allocation2 + $0x10] sm:$0xff]
      %v451 = vld [vmem:[#allocation2 + $0x18] sm:$0xff]
      %v452 = vld [vmem:[#allocation2 + $0x20] sm:$0xff]
      %v453 = vld [vmem:[#allocation2 + $0x28] sm:$0xff]
      %v454 = vld [vmem:[#allocation2 + $0x30] sm:$0xff]
      %v455 = vld [vmem:[#allocation2 + $0x38] sm:$0xff]
      %v456 = vld [vmem:[#allocation2 + $0x40] sm:$0xff]
      %v457 = vld [vmem:[#allocation2 + $0x48] sm:$0xff]
      %v458 = vld [vmem:[#allocation2 + $0x50] sm:$0xff]
      %v459 = vld [vmem:[#allocation2 + $0x58] sm:$0xff]
      %v460 = vld [vmem:[#allocation2 + $0x60] sm:$0xff]
      %v461 = vld [vmem:[#allocation2 + $0x68] sm:$0xff]
      %v462 = vld [vmem:[#allocation2 + $0x70] sm:$0xff]
      %v463 = vld [vmem:[#allocation2 + $0x78] sm:$0xff]
      %v464 = vld [vmem:[#allocation2 + $0x80] sm:$0xff]
      %v465 = vld [vmem:[#allocation2 + $0x88] sm:$0xff]
      %v466 = vld [vmem:[#allocation2 + $0x90] sm:$0xff]
      %v467 = vld [vmem:[#allocation2 + $0x98] sm:$0xff]
      %v468 = vld [vmem:[#allocation2 + $0xa0] sm:$0xff]
      %v469 = vld [vmem:[#allocation2 + $0xa8] sm:$0xff]
      %v470 = vld [vmem:[#allocation2 + $0xb0] sm:$0xff]
      %v471 = vld [vmem:[#allocation2 + $0xb8] sm:$0xff]
      %v472 = vld [vmem:[#allocation2 + $0xc0] sm:$0xff]
      %v473 = vld [vmem:[#allocation2 + $0xc8] sm:$0xff]
      %v474 = vld [vmem:[#allocation2 + $0xd0] sm:$0xff]
      %v475 = vld [vmem:[#allocation2 + $0xd8] sm:$0xff]
      %v476 = vld [vmem:[#allocation2 + $0xe0] sm:$0xff]
      %v477 = vld [vmem:[#allocation2 + $0xe8] sm:$0xff]
      %v478 = vld [vmem:[#allocation2 + $0xf0] sm:$0xff]
      %v479 = vld [vmem:[#allocation2 + $0xf8] sm:$0xff]
      %v480 = vld [vmem:[#allocation2 + $0x100] sm:$0xff]
      %v481 = vld [vmem:[#allocation2 + $0x108] sm:$0xff]
      %v482 = vld [vmem:[#allocation2 + $0x110] sm:$0xff]
      %v483 = vld [vmem:[#allocation2 + $0x118] sm:$0xff]
      %v484 = vld [vmem:[#allocation2 + $0x120] sm:$0xff]
      %v485 = vld [vmem:[#allocation2 + $0x128] sm:$0xff]
      %v486 = vld [vmem:[#allocation2 + $0x130] sm:$0xff]
      %v487 = vld [vmem:[#allocation2 + $0x138] sm:$0xff]
      %v488 = vrot.slane %v448, 6
      %v489 = vrot.slane %v450, 6
      %v490 = vrot.slane %v452, 6
      %v491 = vrot.slane %v454, 6
      %v492 = vrot.slane %v456, 6
      %v493 = vrot.slane %v458, 6
      %v494 = vrot.slane %v460, 6
      %v495 = vrot.slane %v462, 6
      %v496 = vrot.slane %v464, 6
      %v497 = vrot.slane %v466, 6
      %v498 = vrot.slane %v468, 6
      %v499 = vrot.slane %v470, 6
      %v500 = vrot.slane %v472, 6
      %v501 = vrot.slane %v474, 6
      %v502 = vrot.slane %v476, 6
      %v503 = vrot.slane %v478, 6
      %v504 = vrot.slane %v480, 6
      %v505 = vrot.slane %v482, 6
      %v506 = vrot.slane %v484, 6
      %v507 = vrot.slane %v486, 6
      %v508 = vrot.slane %v449, 6
      %v509 = vrot.slane %v451, 6
      %v510 = vrot.slane %v453, 6
      %v511 = vrot.slane %v455, 6
      %v512 = vrot.slane %v457, 6
      %v513 = vrot.slane %v459, 6
      %v514 = vrot.slane %v461, 6
      %v515 = vrot.slane %v463, 6
      %v516 = vrot.slane %v465, 6
      %v517 = vrot.slane %v467, 6
      %v518 = vrot.slane %v469, 6
      %v519 = vrot.slane %v471, 6
      %v520 = vrot.slane %v473, 6
      %v521 = vrot.slane %v475, 6
      %v522 = vrot.slane %v477, 6
      %v523 = vrot.slane %v479, 6
      %v524 = vrot.slane %v481, 6
      %v525 = vrot.slane %v483, 6
      %v526 = vrot.slane %v485, 6
      %v527 = vrot.slane %v487, 6
      %vm528 = vcmp.lt.s32.totalorder %v371, 2
      %v529 = vsel %vm528, %v488, %v508
      %v530 = vsel %vm528, %v489, %v509
      %v531 = vsel %vm528, %v490, %v510
      %v532 = vsel %vm528, %v491, %v511
      %v533 = vsel %vm528, %v492, %v512
      %v534 = vsel %vm528, %v493, %v513
      %v535 = vsel %vm528, %v494, %v514
      %v536 = vsel %vm528, %v495, %v515
      %v537 = vsel %vm528, %v496, %v516
      %v538 = vsel %vm528, %v497, %v517
      %v539 = vsel %vm528, %v498, %v518
      %v540 = vsel %vm528, %v499, %v519
      %v541 = vsel %vm528, %v500, %v520
      %v542 = vsel %vm528, %v501, %v521
      %v543 = vsel %vm528, %v502, %v522
      %v544 = vsel %vm528, %v503, %v523
      %v545 = vsel %vm528, %v504, %v524
      %v546 = vsel %vm528, %v505, %v525
      %v547 = vsel %vm528, %v506, %v526
      %v548 = vsel %vm528, %v507, %v527
      %v549 = vsel %vm528, %v508, %v488
      %v550 = vsel %vm528, %v509, %v489
      %v551 = vsel %vm528, %v510, %v490
      %v552 = vsel %vm528, %v511, %v491
      %v553 = vsel %vm528, %v512, %v492
      %v554 = vsel %vm528, %v513, %v493
      %v555 = vsel %vm528, %v514, %v494
      %v556 = vsel %vm528, %v515, %v495
      %v557 = vsel %vm528, %v516, %v496
      %v558 = vsel %vm528, %v517, %v497
      %v559 = vsel %vm528, %v518, %v498
      %v560 = vsel %vm528, %v519, %v499
      %v561 = vsel %vm528, %v520, %v500
      %v562 = vsel %vm528, %v521, %v501
      %v563 = vsel %vm528, %v522, %v502
      %v564 = vsel %vm528, %v523, %v503
      %v565 = vsel %vm528, %v524, %v504
      %v566 = vsel %vm528, %v525, %v505
      %v567 = vsel %vm528, %v526, %v506
      %v568 = vsel %vm528, %v527, %v507
      %v569 = vadd.s32 %v371, 4294967294
      %v570 = vadd.s32 %v372, 4294967294
      %vm571 = vcmp.ge.s32.totalorder %v569, 0
      %vm572 = vcmp.ge.s32.totalorder %v570, 0
      %vm573 = vcmp.lt.s32.totalorder %v569, 16
      %vm574 = vcmp.lt.s32.totalorder %v570, 16
      %vm575 = vmand %vm571, %vm573
      %vm576 = vmand %vm572, %vm574
      %v577 = vsel %vm575, 1, 0
      %v578 = vsel %vm576, 1, 0
      %vm579 = vcmp.eq.s32.totalorder %v577, 1
      %vm580 = vcmp.eq.s32.totalorder %v578, 1
      %v581 = vsel %vm579, %v549, 0.0
      %v582 = vsel %vm580, %v529, 0.0
      %v583 = vsel %vm579, %v550, 0.0
      %v584 = vsel %vm580, %v530, 0.0
      %v585 = vsel %vm579, %v551, 0.0
      %v586 = vsel %vm580, %v531, 0.0
      %v587 = vsel %vm579, %v552, 0.0
      %v588 = vsel %vm580, %v532, 0.0
      %v589 = vsel %vm579, %v553, 0.0
      %v590 = vsel %vm580, %v533, 0.0
      %v591 = vsel %vm579, %v554, 0.0
      %v592 = vsel %vm580, %v534, 0.0
      %v593 = vsel %vm579, %v555, 0.0
      %v594 = vsel %vm580, %v535, 0.0
      %v595 = vsel %vm579, %v556, 0.0
      %v596 = vsel %vm580, %v536, 0.0
      %v597 = vsel %vm579, %v557, 0.0
      %v598 = vsel %vm580, %v537, 0.0
      %v599 = vsel %vm579, %v558, 0.0
      %v600 = vsel %vm580, %v538, 0.0
      %v601 = vsel %vm579, %v559, 0.0
      %v602 = vsel %vm580, %v539, 0.0
      %v603 = vsel %vm579, %v560, 0.0
      %v604 = vsel %vm580, %v540, 0.0
      %v605 = vsel %vm579, %v561, 0.0
      %v606 = vsel %vm580, %v541, 0.0
      %v607 = vsel %vm579, %v562, 0.0
      %v608 = vsel %vm580, %v542, 0.0
      %v609 = vsel %vm579, %v563, 0.0
      %v610 = vsel %vm580, %v543, 0.0
      %v611 = vsel %vm579, %v564, 0.0
      %v612 = vsel %vm580, %v544, 0.0
      %v613 = vsel %vm579, %v565, 0.0
      %v614 = vsel %vm580, %v545, 0.0
      %v615 = vsel %vm579, %v566, 0.0
      %v616 = vsel %vm580, %v546, 0.0
      %v617 = vsel %vm579, %v567, 0.0
      %v618 = vsel %vm580, %v547, 0.0
      %v619 = vsel %vm579, %v568, 0.0
      %v620 = vsel %vm580, %v548, 0.0
      %v621 = vrot.slane %v448, 7
      %v622 = vrot.slane %v450, 7
      %v623 = vrot.slane %v452, 7
      %v624 = vrot.slane %v454, 7
      %v625 = vrot.slane %v456, 7
      %v626 = vrot.slane %v458, 7
      %v627 = vrot.slane %v460, 7
      %v628 = vrot.slane %v462, 7
      %v629 = vrot.slane %v464, 7
      %v630 = vrot.slane %v466, 7
      %v631 = vrot.slane %v468, 7
      %v632 = vrot.slane %v470, 7
      %v633 = vrot.slane %v472, 7
      %v634 = vrot.slane %v474, 7
      %v635 = vrot.slane %v476, 7
      %v636 = vrot.slane %v478, 7
      %v637 = vrot.slane %v480, 7
      %v638 = vrot.slane %v482, 7
      %v639 = vrot.slane %v484, 7
      %v640 = vrot.slane %v486, 7
      %v641 = vrot.slane %v449, 7
      %v642 = vrot.slane %v451, 7
      %v643 = vrot.slane %v453, 7
      %v644 = vrot.slane %v455, 7
      %v645 = vrot.slane %v457, 7
      %v646 = vrot.slane %v459, 7
      %v647 = vrot.slane %v461, 7
      %v648 = vrot.slane %v463, 7
      %v649 = vrot.slane %v465, 7
      %v650 = vrot.slane %v467, 7
      %v651 = vrot.slane %v469, 7
      %v652 = vrot.slane %v471, 7
      %v653 = vrot.slane %v473, 7
      %v654 = vrot.slane %v475, 7
      %v655 = vrot.slane %v477, 7
      %v656 = vrot.slane %v479, 7
      %v657 = vrot.slane %v481, 7
      %v658 = vrot.slane %v483, 7
      %v659 = vrot.slane %v485, 7
      %v660 = vrot.slane %v487, 7
      %vm661 = vcmp.lt.s32.totalorder %v371, 1
      %v662 = vsel %vm661, %v621, %v641
      %v663 = vsel %vm661, %v622, %v642
      %v664 = vsel %vm661, %v623, %v643
      %v665 = vsel %vm661, %v624, %v644
      %v666 = vsel %vm661, %v625, %v645
      %v667 = vsel %vm661, %v626, %v646
      %v668 = vsel %vm661, %v627, %v647
      %v669 = vsel %vm661, %v628, %v648
      %v670 = vsel %vm661, %v629, %v649
      %v671 = vsel %vm661, %v630, %v650
      %v672 = vsel %vm661, %v631, %v651
      %v673 = vsel %vm661, %v632, %v652
      %v674 = vsel %vm661, %v633, %v653
      %v675 = vsel %vm661, %v634, %v654
      %v676 = vsel %vm661, %v635, %v655
      %v677 = vsel %vm661, %v636, %v656
      %v678 = vsel %vm661, %v637, %v657
      %v679 = vsel %vm661, %v638, %v658
      %v680 = vsel %vm661, %v639, %v659
      %v681 = vsel %vm661, %v640, %v660
      %v682 = vsel %vm661, %v641, %v621
      %v683 = vsel %vm661, %v642, %v622
      %v684 = vsel %vm661, %v643, %v623
      %v685 = vsel %vm661, %v644, %v624
      %v686 = vsel %vm661, %v645, %v625
      %v687 = vsel %vm661, %v646, %v626
      %v688 = vsel %vm661, %v647, %v627
      %v689 = vsel %vm661, %v648, %v628
      %v690 = vsel %vm661, %v649, %v629
      %v691 = vsel %vm661, %v650, %v630
      %v692 = vsel %vm661, %v651, %v631
      %v693 = vsel %vm661, %v652, %v632
      %v694 = vsel %vm661, %v653, %v633
      %v695 = vsel %vm661, %v654, %v634
      %v696 = vsel %vm661, %v655, %v635
      %v697 = vsel %vm661, %v656, %v636
      %v698 = vsel %vm661, %v657, %v637
      %v699 = vsel %vm661, %v658, %v638
      %v700 = vsel %vm661, %v659, %v639
      %v701 = vsel %vm661, %v660, %v640
      %v702 = vadd.s32 %v371, 4294967295
      %v703 = vadd.s32 %v372, 4294967295
      %vm704 = vcmp.ge.s32.totalorder %v702, 0
      %vm705 = vcmp.ge.s32.totalorder %v703, 0
      %vm706 = vcmp.lt.s32.totalorder %v702, 16
      %vm707 = vcmp.lt.s32.totalorder %v703, 16
      %vm708 = vmand %vm704, %vm706
      %vm709 = vmand %vm705, %vm707
      %v710 = vsel %vm708, 1, 0
      %v711 = vsel %vm709, 1, 0
      %vm712 = vcmp.eq.s32.totalorder %v710, 1
      %vm713 = vcmp.eq.s32.totalorder %v711, 1
      %v714 = vsel %vm712, %v682, 0.0
      %v715 = vsel %vm713, %v662, 0.0
      %v716 = vsel %vm712, %v683, 0.0
      %v717 = vsel %vm713, %v663, 0.0
      %v718 = vsel %vm712, %v684, 0.0
      %v719 = vsel %vm713, %v664, 0.0
      %v720 = vsel %vm712, %v685, 0.0
      %v721 = vsel %vm713, %v665, 0.0
      %v722 = vsel %vm712, %v686, 0.0
      %v723 = vsel %vm713, %v666, 0.0
      %v724 = vsel %vm712, %v687, 0.0
      %v725 = vsel %vm713, %v667, 0.0
      %v726 = vsel %vm712, %v688, 0.0
      %v727 = vsel %vm713, %v668, 0.0
      %v728 = vsel %vm712, %v689, 0.0
      %v729 = vsel %vm713, %v669, 0.0
      %v730 = vsel %vm712, %v690, 0.0
      %v731 = vsel %vm713, %v670, 0.0
      %v732 = vsel %vm712, %v691, 0.0
      %v733 = vsel %vm713, %v671, 0.0
      %v734 = vsel %vm712, %v692, 0.0
      %v735 = vsel %vm713, %v672, 0.0
      %v736 = vsel %vm712, %v693, 0.0
      %v737 = vsel %vm713, %v673, 0.0
      %v738 = vsel %vm712, %v694, 0.0
      %v739 = vsel %vm713, %v674, 0.0
      %v740 = vsel %vm712, %v695, 0.0
      %v741 = vsel %vm713, %v675, 0.0
      %v742 = vsel %vm712, %v696, 0.0
      %v743 = vsel %vm713, %v676, 0.0
      %v744 = vsel %vm712, %v697, 0.0
      %v745 = vsel %vm713, %v677, 0.0
      %v746 = vsel %vm712, %v698, 0.0
      %v747 = vsel %vm713, %v678, 0.0
      %v748 = vsel %vm712, %v699, 0.0
      %v749 = vsel %vm713, %v679, 0.0
      %v750 = vsel %vm712, %v700, 0.0
      %v751 = vsel %vm713, %v680, 0.0
      %v752 = vsel %vm712, %v701, 0.0
      %v753 = vsel %vm713, %v681, 0.0
      %v754 = vrot.slane %v448, 1
      %v755 = vrot.slane %v450, 1
      %v756 = vrot.slane %v452, 1
      %v757 = vrot.slane %v454, 1
      %v758 = vrot.slane %v456, 1
      %v759 = vrot.slane %v458, 1
      %v760 = vrot.slane %v460, 1
      %v761 = vrot.slane %v462, 1
      %v762 = vrot.slane %v464, 1
      %v763 = vrot.slane %v466, 1
      %v764 = vrot.slane %v468, 1
      %v765 = vrot.slane %v470, 1
      %v766 = vrot.slane %v472, 1
      %v767 = vrot.slane %v474, 1
      %v768 = vrot.slane %v476, 1
      %v769 = vrot.slane %v478, 1
      %v770 = vrot.slane %v480, 1
      %v771 = vrot.slane %v482, 1
      %v772 = vrot.slane %v484, 1
      %v773 = vrot.slane %v486, 1
      %v774 = vrot.slane %v449, 1
      %v775 = vrot.slane %v451, 1
      %v776 = vrot.slane %v453, 1
      %v777 = vrot.slane %v455, 1
      %v778 = vrot.slane %v457, 1
      %v779 = vrot.slane %v459, 1
      %v780 = vrot.slane %v461, 1
      %v781 = vrot.slane %v463, 1
      %v782 = vrot.slane %v465, 1
      %v783 = vrot.slane %v467, 1
      %v784 = vrot.slane %v469, 1
      %v785 = vrot.slane %v471, 1
      %v786 = vrot.slane %v473, 1
      %v787 = vrot.slane %v475, 1
      %v788 = vrot.slane %v477, 1
      %v789 = vrot.slane %v479, 1
      %v790 = vrot.slane %v481, 1
      %v791 = vrot.slane %v483, 1
      %v792 = vrot.slane %v485, 1
      %v793 = vrot.slane %v487, 1
      %vm794 = vcmp.lt.s32.totalorder %v371, 7
      %v795 = vsel %vm794, %v754, %v774
      %v796 = vsel %vm794, %v755, %v775
      %v797 = vsel %vm794, %v756, %v776
      %v798 = vsel %vm794, %v757, %v777
      %v799 = vsel %vm794, %v758, %v778
      %v800 = vsel %vm794, %v759, %v779
      %v801 = vsel %vm794, %v760, %v780
      %v802 = vsel %vm794, %v761, %v781
      %v803 = vsel %vm794, %v762, %v782
      %v804 = vsel %vm794, %v763, %v783
      %v805 = vsel %vm794, %v764, %v784
      %v806 = vsel %vm794, %v765, %v785
      %v807 = vsel %vm794, %v766, %v786
      %v808 = vsel %vm794, %v767, %v787
      %v809 = vsel %vm794, %v768, %v788
      %v810 = vsel %vm794, %v769, %v789
      %v811 = vsel %vm794, %v770, %v790
      %v812 = vsel %vm794, %v771, %v791
      %v813 = vsel %vm794, %v772, %v792
      %v814 = vsel %vm794, %v773, %v793
      %v815 = vsel %vm794, %v774, %v754
      %v816 = vsel %vm794, %v775, %v755
      %v817 = vsel %vm794, %v776, %v756
      %v818 = vsel %vm794, %v777, %v757
      %v819 = vsel %vm794, %v778, %v758
      %v820 = vsel %vm794, %v779, %v759
      %v821 = vsel %vm794, %v780, %v760
      %v822 = vsel %vm794, %v781, %v761
      %v823 = vsel %vm794, %v782, %v762
      %v824 = vsel %vm794, %v783, %v763
      %v825 = vsel %vm794, %v784, %v764
      %v826 = vsel %vm794, %v785, %v765
      %v827 = vsel %vm794, %v786, %v766
      %v828 = vsel %vm794, %v787, %v767
      %v829 = vsel %vm794, %v788, %v768
      %v830 = vsel %vm794, %v789, %v769
      %v831 = vsel %vm794, %v790, %v770
      %v832 = vsel %vm794, %v791, %v771
      %v833 = vsel %vm794, %v792, %v772
      %v834 = vsel %vm794, %v793, %v773
      %v835 = vadd.s32 %v371, 1
      %v836 = vadd.s32 %v372, 1
      %vm837 = vcmp.ge.s32.totalorder %v835, 0
      %vm838 = vcmp.ge.s32.totalorder %v836, 0
      %vm839 = vcmp.lt.s32.totalorder %v835, 16
      %vm840 = vcmp.lt.s32.totalorder %v836, 16
      %vm841 = vmand %vm837, %vm839
      %vm842 = vmand %vm838, %vm840
      %v843 = vsel %vm841, 1, 0
      %v844 = vsel %vm842, 1, 0
      %vm845 = vcmp.eq.s32.totalorder %v843, 1
      %vm846 = vcmp.eq.s32.totalorder %v844, 1
      %v847 = vsel %vm845, %v795, 0.0
      %v848 = vsel %vm846, %v815, 0.0
      %v849 = vsel %vm845, %v796, 0.0
      %v850 = vsel %vm846, %v816, 0.0
      %v851 = vsel %vm845, %v797, 0.0
      %v852 = vsel %vm846, %v817, 0.0
      %v853 = vsel %vm845, %v798, 0.0
      %v854 = vsel %vm846, %v818, 0.0
      %v855 = vsel %vm845, %v799, 0.0
      %v856 = vsel %vm846, %v819, 0.0
      %v857 = vsel %vm845, %v800, 0.0
      %v858 = vsel %vm846, %v820, 0.0
      %v859 = vsel %vm845, %v801, 0.0
      %v860 = vsel %vm846, %v821, 0.0
      %v861 = vsel %vm845, %v802, 0.0
      %v862 = vsel %vm846, %v822, 0.0
      %v863 = vsel %vm845, %v803, 0.0
      %v864 = vsel %vm846, %v823, 0.0
      %v865 = vsel %vm845, %v804, 0.0
      %v866 = vsel %vm846, %v824, 0.0
      %v867 = vsel %vm845, %v805, 0.0
      %v868 = vsel %vm846, %v825, 0.0
      %v869 = vsel %vm845, %v806, 0.0
      %v870 = vsel %vm846, %v826, 0.0
      %v871 = vsel %vm845, %v807, 0.0
      %v872 = vsel %vm846, %v827, 0.0
      %v873 = vsel %vm845, %v808, 0.0
      %v874 = vsel %vm846, %v828, 0.0
      %v875 = vsel %vm845, %v809, 0.0
      %v876 = vsel %vm846, %v829, 0.0
      %v877 = vsel %vm845, %v810, 0.0
      %v878 = vsel %vm846, %v830, 0.0
      %v879 = vsel %vm845, %v811, 0.0
      %v880 = vsel %vm846, %v831, 0.0
      %v881 = vsel %vm845, %v812, 0.0
      %v882 = vsel %vm846, %v832, 0.0
      %v883 = vsel %vm845, %v813, 0.0
      %v884 = vsel %vm846, %v833, 0.0
      %v885 = vsel %vm845, %v814, 0.0
      %v886 = vsel %vm846, %v834, 0.0
      %v887 = vrot.slane %v448, 2
      %v888 = vrot.slane %v450, 2
      %v889 = vrot.slane %v452, 2
      %v890 = vrot.slane %v454, 2
      %v891 = vrot.slane %v456, 2
      %v892 = vrot.slane %v458, 2
      %v893 = vrot.slane %v460, 2
      %v894 = vrot.slane %v462, 2
      %v895 = vrot.slane %v464, 2
      %v896 = vrot.slane %v466, 2
      %v897 = vrot.slane %v468, 2
      %v898 = vrot.slane %v470, 2
      %v899 = vrot.slane %v472, 2
      %v900 = vrot.slane %v474, 2
      %v901 = vrot.slane %v476, 2
      %v902 = vrot.slane %v478, 2
      %v903 = vrot.slane %v480, 2
      %v904 = vrot.slane %v482, 2
      %v905 = vrot.slane %v484, 2
      %v906 = vrot.slane %v486, 2
      %v907 = vrot.slane %v449, 2
      %v908 = vrot.slane %v451, 2
      %v909 = vrot.slane %v453, 2
      %v910 = vrot.slane %v455, 2
      %v911 = vrot.slane %v457, 2
      %v912 = vrot.slane %v459, 2
      %v913 = vrot.slane %v461, 2
      %v914 = vrot.slane %v463, 2
      %v915 = vrot.slane %v465, 2
      %v916 = vrot.slane %v467, 2
      %v917 = vrot.slane %v469, 2
      %v918 = vrot.slane %v471, 2
      %v919 = vrot.slane %v473, 2
      %v920 = vrot.slane %v475, 2
      %v921 = vrot.slane %v477, 2
      %v922 = vrot.slane %v479, 2
      %v923 = vrot.slane %v481, 2
      %v924 = vrot.slane %v483, 2
      %v925 = vrot.slane %v485, 2
      %v926 = vrot.slane %v487, 2
      %vm927 = vcmp.lt.s32.totalorder %v371, 6
      %v928 = vsel %vm927, %v887, %v907
      %v929 = vsel %vm927, %v888, %v908
      %v930 = vsel %vm927, %v889, %v909
      %v931 = vsel %vm927, %v890, %v910
      %v932 = vsel %vm927, %v891, %v911
      %v933 = vsel %vm927, %v892, %v912
      %v934 = vsel %vm927, %v893, %v913
      %v935 = vsel %vm927, %v894, %v914
      %v936 = vsel %vm927, %v895, %v915
      %v937 = vsel %vm927, %v896, %v916
      %v938 = vsel %vm927, %v897, %v917
      %v939 = vsel %vm927, %v898, %v918
      %v940 = vsel %vm927, %v899, %v919
      %v941 = vsel %vm927, %v900, %v920
      %v942 = vsel %vm927, %v901, %v921
      %v943 = vsel %vm927, %v902, %v922
      %v944 = vsel %vm927, %v903, %v923
      %v945 = vsel %vm927, %v904, %v924
      %v946 = vsel %vm927, %v905, %v925
      %v947 = vsel %vm927, %v906, %v926
      %v948 = vsel %vm927, %v907, %v887
      %v949 = vsel %vm927, %v908, %v888
      %v950 = vsel %vm927, %v909, %v889
      %v951 = vsel %vm927, %v910, %v890
      %v952 = vsel %vm927, %v911, %v891
      %v953 = vsel %vm927, %v912, %v892
      %v954 = vsel %vm927, %v913, %v893
      %v955 = vsel %vm927, %v914, %v894
      %v956 = vsel %vm927, %v915, %v895
      %v957 = vsel %vm927, %v916, %v896
      %v958 = vsel %vm927, %v917, %v897
      %v959 = vsel %vm927, %v918, %v898
      %v960 = vsel %vm927, %v919, %v899
      %v961 = vsel %vm927, %v920, %v900
      %v962 = vsel %vm927, %v921, %v901
      %v963 = vsel %vm927, %v922, %v902
      %v964 = vsel %vm927, %v923, %v903
      %v965 = vsel %vm927, %v924, %v904
      %v966 = vsel %vm927, %v925, %v905
      %v967 = vsel %vm927, %v926, %v906
      %v968 = vadd.s32 %v371, 2
      %v969 = vadd.s32 %v372, 2
      %vm970 = vcmp.ge.s32.totalorder %v968, 0
      %vm971 = vcmp.ge.s32.totalorder %v969, 0
      %vm972 = vcmp.lt.s32.totalorder %v968, 16
      %vm973 = vcmp.lt.s32.totalorder %v969, 16
      %vm974 = vmand %vm970, %vm972
      %vm975 = vmand %vm971, %vm973
      %v976 = vsel %vm974, 1, 0
      %v977 = vsel %vm975, 1, 0
      %vm978 = vcmp.eq.s32.totalorder %v976, 1
      %vm979 = vcmp.eq.s32.totalorder %v977, 1
      %v980 = vsel %vm978, %v928, 0.0
      %v981 = vsel %vm979, %v948, 0.0
      %v982 = vsel %vm978, %v929, 0.0
      %v983 = vsel %vm979, %v949, 0.0
      %v984 = vsel %vm978, %v930, 0.0
      %v985 = vsel %vm979, %v950, 0.0
      %v986 = vsel %vm978, %v931, 0.0
      %v987 = vsel %vm979, %v951, 0.0
      %v988 = vsel %vm978, %v932, 0.0
      %v989 = vsel %vm979, %v952, 0.0
      %v990 = vsel %vm978, %v933, 0.0
      %v991 = vsel %vm979, %v953, 0.0
      %v992 = vsel %vm978, %v934, 0.0
      %v993 = vsel %vm979, %v954, 0.0
      %v994 = vsel %vm978, %v935, 0.0
      %v995 = vsel %vm979, %v955, 0.0
      %v996 = vsel %vm978, %v936, 0.0
      %v997 = vsel %vm979, %v956, 0.0
      %v998 = vsel %vm978, %v937, 0.0
      %v999 = vsel %vm979, %v957, 0.0
      %v1000 = vsel %vm978, %v938, 0.0
      %v1001 = vsel %vm979, %v958, 0.0
      %v1002 = vsel %vm978, %v939, 0.0
      %v1003 = vsel %vm979, %v959, 0.0
      %v1004 = vsel %vm978, %v940, 0.0
      %v1005 = vsel %vm979, %v960, 0.0
      %v1006 = vsel %vm978, %v941, 0.0
      %v1007 = vsel %vm979, %v961, 0.0
      %v1008 = vsel %vm978, %v942, 0.0
      %v1009 = vsel %vm979, %v962, 0.0
      %v1010 = vsel %vm978, %v943, 0.0
      %v1011 = vsel %vm979, %v963, 0.0
      %v1012 = vsel %vm978, %v944, 0.0
      %v1013 = vsel %vm979, %v964, 0.0
      %v1014 = vsel %vm978, %v945, 0.0
      %v1015 = vsel %vm979, %v965, 0.0
      %v1016 = vsel %vm978, %v946, 0.0
      %v1017 = vsel %vm979, %v966, 0.0
      %v1018 = vsel %vm978, %v947, 0.0
      %v1019 = vsel %vm979, %v967, 0.0
      %v1020 = vlaneseq
      %v1021 = vshrl.u32 %v1020, 7
      %v1022 = vsub.s32 0, %v1021
      %v1023 = vrot.slane %v340, %v1022
      %v1024 = vmul.f32 %v581, %v1023
      %v1025 = vmul.f32 %v582, %v1023
      %v1026 = vmul.f32 %v583, %v1023
      %v1027 = vmul.f32 %v584, %v1023
      %v1028 = vmul.f32 %v585, %v1023
      %v1029 = vmul.f32 %v586, %v1023
      %v1030 = vmul.f32 %v587, %v1023
      %v1031 = vmul.f32 %v588, %v1023
      %v1032 = vmul.f32 %v589, %v1023
      %v1033 = vmul.f32 %v590, %v1023
      %v1034 = vmul.f32 %v591, %v1023
      %v1035 = vmul.f32 %v592, %v1023
      %v1036 = vmul.f32 %v593, %v1023
      %v1037 = vmul.f32 %v594, %v1023
      %v1038 = vmul.f32 %v595, %v1023
      %v1039 = vmul.f32 %v596, %v1023
      %v1040 = vmul.f32 %v597, %v1023
      %v1041 = vmul.f32 %v598, %v1023
      %v1042 = vmul.f32 %v599, %v1023
      %v1043 = vmul.f32 %v600, %v1023
      %v1044 = vmul.f32 %v601, %v1023
      %v1045 = vmul.f32 %v602, %v1023
      %v1046 = vmul.f32 %v603, %v1023
      %v1047 = vmul.f32 %v604, %v1023
      %v1048 = vmul.f32 %v605, %v1023
      %v1049 = vmul.f32 %v606, %v1023
      %v1050 = vmul.f32 %v607, %v1023
      %v1051 = vmul.f32 %v608, %v1023
      %v1052 = vmul.f32 %v609, %v1023
      %v1053 = vmul.f32 %v610, %v1023
      %v1054 = vmul.f32 %v611, %v1023
      %v1055 = vmul.f32 %v612, %v1023
      %v1056 = vlaneseq
      %v1057 = vshrl.u32 %v1056, 7
      %v1058 = vsub.s32 1, %v1057
      %v1059 = vrot.slane %v340, %v1058
      %v1060 = vmul.f32 %v714, %v1059
      %v1061 = vmul.f32 %v715, %v1059
      %v1062 = vmul.f32 %v716, %v1059
      %v1063 = vmul.f32 %v717, %v1059
      %v1064 = vmul.f32 %v718, %v1059
      %v1065 = vmul.f32 %v719, %v1059
      %v1066 = vmul.f32 %v720, %v1059
      %v1067 = vmul.f32 %v721, %v1059
      %v1068 = vmul.f32 %v722, %v1059
      %v1069 = vmul.f32 %v723, %v1059
      %v1070 = vmul.f32 %v724, %v1059
      %v1071 = vmul.f32 %v725, %v1059
      %v1072 = vmul.f32 %v726, %v1059
      %v1073 = vmul.f32 %v727, %v1059
      %v1074 = vmul.f32 %v728, %v1059
      %v1075 = vmul.f32 %v729, %v1059
      %v1076 = vmul.f32 %v730, %v1059
      %v1077 = vmul.f32 %v731, %v1059
      %v1078 = vmul.f32 %v732, %v1059
      %v1079 = vmul.f32 %v733, %v1059
      %v1080 = vmul.f32 %v734, %v1059
      %v1081 = vmul.f32 %v735, %v1059
      %v1082 = vmul.f32 %v736, %v1059
      %v1083 = vmul.f32 %v737, %v1059
      %v1084 = vmul.f32 %v738, %v1059
      %v1085 = vmul.f32 %v739, %v1059
      %v1086 = vmul.f32 %v740, %v1059
      %v1087 = vmul.f32 %v741, %v1059
      %v1088 = vmul.f32 %v742, %v1059
      %v1089 = vmul.f32 %v743, %v1059
      %v1090 = vmul.f32 %v744, %v1059
      %v1091 = vmul.f32 %v745, %v1059
      %v1092 = vadd.f32 %v1024, %v1060
      %v1093 = vadd.f32 %v1025, %v1061
      %v1094 = vadd.f32 %v1026, %v1062
      %v1095 = vadd.f32 %v1027, %v1063
      %v1096 = vadd.f32 %v1028, %v1064
      %v1097 = vadd.f32 %v1029, %v1065
      %v1098 = vadd.f32 %v1030, %v1066
      %v1099 = vadd.f32 %v1031, %v1067
      %v1100 = vadd.f32 %v1032, %v1068
      %v1101 = vadd.f32 %v1033, %v1069
      %v1102 = vadd.f32 %v1034, %v1070
      %v1103 = vadd.f32 %v1035, %v1071
      %v1104 = vadd.f32 %v1036, %v1072
      %v1105 = vadd.f32 %v1037, %v1073
      %v1106 = vadd.f32 %v1038, %v1074
      %v1107 = vadd.f32 %v1039, %v1075
      %v1108 = vadd.f32 %v1040, %v1076
      %v1109 = vadd.f32 %v1041, %v1077
      %v1110 = vadd.f32 %v1042, %v1078
      %v1111 = vadd.f32 %v1043, %v1079
      %v1112 = vadd.f32 %v1044, %v1080
      %v1113 = vadd.f32 %v1045, %v1081
      %v1114 = vadd.f32 %v1046, %v1082
      %v1115 = vadd.f32 %v1047, %v1083
      %v1116 = vadd.f32 %v1048, %v1084
      %v1117 = vadd.f32 %v1049, %v1085
      %v1118 = vadd.f32 %v1050, %v1086
      %v1119 = vadd.f32 %v1051, %v1087
      %v1120 = vadd.f32 %v1052, %v1088
      %v1121 = vadd.f32 %v1053, %v1089
      %v1122 = vadd.f32 %v1054, %v1090
      %v1123 = vadd.f32 %v1055, %v1091
      %v1124 = vlaneseq
      %v1125 = vshrl.u32 %v1124, 7
      %v1126 = vsub.s32 2, %v1125
      %v1127 = vrot.slane %v340, %v1126
      %v1128 = vmul.f32 %v448, %v1127
      %v1129 = vmul.f32 %v449, %v1127
      %v1130 = vmul.f32 %v450, %v1127
      %v1131 = vmul.f32 %v451, %v1127
      %v1132 = vmul.f32 %v452, %v1127
      %v1133 = vmul.f32 %v453, %v1127
      %v1134 = vmul.f32 %v454, %v1127
      %v1135 = vmul.f32 %v455, %v1127
      %v1136 = vmul.f32 %v456, %v1127
      %v1137 = vmul.f32 %v457, %v1127
      %v1138 = vmul.f32 %v458, %v1127
      %v1139 = vmul.f32 %v459, %v1127
      %v1140 = vmul.f32 %v460, %v1127
      %v1141 = vmul.f32 %v461, %v1127
      %v1142 = vmul.f32 %v462, %v1127
      %v1143 = vmul.f32 %v463, %v1127
      %v1144 = vmul.f32 %v464, %v1127
      %v1145 = vmul.f32 %v465, %v1127
      %v1146 = vmul.f32 %v466, %v1127
      %v1147 = vmul.f32 %v467, %v1127
      %v1148 = vmul.f32 %v468, %v1127
      %v1149 = vmul.f32 %v469, %v1127
      %v1150 = vmul.f32 %v470, %v1127
      %v1151 = vmul.f32 %v471, %v1127
      %v1152 = vmul.f32 %v472, %v1127
      %v1153 = vmul.f32 %v473, %v1127
      %v1154 = vmul.f32 %v474, %v1127
      %v1155 = vmul.f32 %v475, %v1127
      %v1156 = vmul.f32 %v476, %v1127
      %v1157 = vmul.f32 %v477, %v1127
      %v1158 = vmul.f32 %v478, %v1127
      %v1159 = vmul.f32 %v479, %v1127
      %v1160 = vadd.f32 %v1092, %v1128
      %v1161 = vadd.f32 %v1093, %v1129
      %v1162 = vadd.f32 %v1094, %v1130
      %v1163 = vadd.f32 %v1095, %v1131
      %v1164 = vadd.f32 %v1096, %v1132
      %v1165 = vadd.f32 %v1097, %v1133
      %v1166 = vadd.f32 %v1098, %v1134
      %v1167 = vadd.f32 %v1099, %v1135
      %v1168 = vadd.f32 %v1100, %v1136
      %v1169 = vadd.f32 %v1101, %v1137
      %v1170 = vadd.f32 %v1102, %v1138
      %v1171 = vadd.f32 %v1103, %v1139
      %v1172 = vadd.f32 %v1104, %v1140
      %v1173 = vadd.f32 %v1105, %v1141
      %v1174 = vadd.f32 %v1106, %v1142
      %v1175 = vadd.f32 %v1107, %v1143
      %v1176 = vadd.f32 %v1108, %v1144
      %v1177 = vadd.f32 %v1109, %v1145
      %v1178 = vadd.f32 %v1110, %v1146
      %v1179 = vadd.f32 %v1111, %v1147
      %v1180 = vadd.f32 %v1112, %v1148
      %v1181 = vadd.f32 %v1113, %v1149
      %v1182 = vadd.f32 %v1114, %v1150
      %v1183 = vadd.f32 %v1115, %v1151
      %v1184 = vadd.f32 %v1116, %v1152
      %v1185 = vadd.f32 %v1117, %v1153
      %v1186 = vadd.f32 %v1118, %v1154
      %v1187 = vadd.f32 %v1119, %v1155
      %v1188 = vadd.f32 %v1120, %v1156
      %v1189 = vadd.f32 %v1121, %v1157
      %v1190 = vadd.f32 %v1122, %v1158
      %v1191 = vadd.f32 %v1123, %v1159
      %v1192 = vlaneseq
      %v1193 = vshrl.u32 %v1192, 7
      %v1194 = vsub.s32 3, %v1193
      %v1195 = vrot.slane %v340, %v1194
      %v1196 = vmul.f32 %v847, %v1195
      %v1197 = vmul.f32 %v848, %v1195
      %v1198 = vmul.f32 %v849, %v1195
      %v1199 = vmul.f32 %v850, %v1195
      %v1200 = vmul.f32 %v851, %v1195
      %v1201 = vmul.f32 %v852, %v1195
      %v1202 = vmul.f32 %v853, %v1195
      %v1203 = vmul.f32 %v854, %v1195
      %v1204 = vmul.f32 %v855, %v1195
      %v1205 = vmul.f32 %v856, %v1195
      %v1206 = vmul.f32 %v857, %v1195
      %v1207 = vmul.f32 %v858, %v1195
      %v1208 = vmul.f32 %v859, %v1195
      %v1209 = vmul.f32 %v860, %v1195
      %v1210 = vmul.f32 %v861, %v1195
      %v1211 = vmul.f32 %v862, %v1195
      %v1212 = vmul.f32 %v863, %v1195
      %v1213 = vmul.f32 %v864, %v1195
      %v1214 = vmul.f32 %v865, %v1195
      %v1215 = vmul.f32 %v866, %v1195
      %v1216 = vmul.f32 %v867, %v1195
      %v1217 = vmul.f32 %v868, %v1195
      %v1218 = vmul.f32 %v869, %v1195
      %v1219 = vmul.f32 %v870, %v1195
      %v1220 = vmul.f32 %v871, %v1195
      %v1221 = vmul.f32 %v872, %v1195
      %v1222 = vmul.f32 %v873, %v1195
      %v1223 = vmul.f32 %v874, %v1195
      %v1224 = vmul.f32 %v875, %v1195
      %v1225 = vmul.f32 %v876, %v1195
      %v1226 = vmul.f32 %v877, %v1195
      %v1227 = vmul.f32 %v878, %v1195
      %v1228 = vadd.f32 %v1160, %v1196
      %v1229 = vadd.f32 %v1161, %v1197
      %v1230 = vadd.f32 %v1162, %v1198
      %v1231 = vadd.f32 %v1163, %v1199
      %v1232 = vadd.f32 %v1164, %v1200
      %v1233 = vadd.f32 %v1165, %v1201
      %v1234 = vadd.f32 %v1166, %v1202
      %v1235 = vadd.f32 %v1167, %v1203
      %v1236 = vadd.f32 %v1168, %v1204
      %v1237 = vadd.f32 %v1169, %v1205
      %v1238 = vadd.f32 %v1170, %v1206
      %v1239 = vadd.f32 %v1171, %v1207
      %v1240 = vadd.f32 %v1172, %v1208
      %v1241 = vadd.f32 %v1173, %v1209
      %v1242 = vadd.f32 %v1174, %v1210
      %v1243 = vadd.f32 %v1175, %v1211
      %v1244 = vadd.f32 %v1176, %v1212
      %v1245 = vadd.f32 %v1177, %v1213
      %v1246 = vadd.f32 %v1178, %v1214
      %v1247 = vadd.f32 %v1179, %v1215
      %v1248 = vadd.f32 %v1180, %v1216
      %v1249 = vadd.f32 %v1181, %v1217
      %v1250 = vadd.f32 %v1182, %v1218
      %v1251 = vadd.f32 %v1183, %v1219
      %v1252 = vadd.f32 %v1184, %v1220
      %v1253 = vadd.f32 %v1185, %v1221
      %v1254 = vadd.f32 %v1186, %v1222
      %v1255 = vadd.f32 %v1187, %v1223
      %v1256 = vadd.f32 %v1188, %v1224
      %v1257 = vadd.f32 %v1189, %v1225
      %v1258 = vadd.f32 %v1190, %v1226
      %v1259 = vadd.f32 %v1191, %v1227
      %v1260 = vlaneseq
      %v1261 = vshrl.u32 %v1260, 7
      %v1262 = vsub.s32 4, %v1261
      %v1263 = vrot.slane %v340, %v1262
      %v1264 = vmul.f32 %v980, %v1263
      %v1265 = vmul.f32 %v981, %v1263
      %v1266 = vmul.f32 %v982, %v1263
      %v1267 = vmul.f32 %v983, %v1263
      %v1268 = vmul.f32 %v984, %v1263
      %v1269 = vmul.f32 %v985, %v1263
      %v1270 = vmul.f32 %v986, %v1263
      %v1271 = vmul.f32 %v987, %v1263
      %v1272 = vmul.f32 %v988, %v1263
      %v1273 = vmul.f32 %v989, %v1263
      %v1274 = vmul.f32 %v990, %v1263
      %v1275 = vmul.f32 %v991, %v1263
      %v1276 = vmul.f32 %v992, %v1263
      %v1277 = vmul.f32 %v993, %v1263
      %v1278 = vmul.f32 %v994, %v1263
      %v1279 = vmul.f32 %v995, %v1263
      %v1280 = vmul.f32 %v996, %v1263
      %v1281 = vmul.f32 %v997, %v1263
      %v1282 = vmul.f32 %v998, %v1263
      %v1283 = vmul.f32 %v999, %v1263
      %v1284 = vmul.f32 %v1000, %v1263
      %v1285 = vmul.f32 %v1001, %v1263
      %v1286 = vmul.f32 %v1002, %v1263
      %v1287 = vmul.f32 %v1003, %v1263
      %v1288 = vmul.f32 %v1004, %v1263
      %v1289 = vmul.f32 %v1005, %v1263
      %v1290 = vmul.f32 %v1006, %v1263
      %v1291 = vmul.f32 %v1007, %v1263
      %v1292 = vmul.f32 %v1008, %v1263
      %v1293 = vmul.f32 %v1009, %v1263
      %v1294 = vmul.f32 %v1010, %v1263
      %v1295 = vmul.f32 %v1011, %v1263
      %v1296 = vadd.f32 %v1228, %v1264
      %v1297 = vadd.f32 %v1229, %v1265
      %v1298 = vadd.f32 %v1230, %v1266
      %v1299 = vadd.f32 %v1231, %v1267
      %v1300 = vadd.f32 %v1232, %v1268
      %v1301 = vadd.f32 %v1233, %v1269
      %v1302 = vadd.f32 %v1234, %v1270
      %v1303 = vadd.f32 %v1235, %v1271
      %v1304 = vadd.f32 %v1236, %v1272
      %v1305 = vadd.f32 %v1237, %v1273
      %v1306 = vadd.f32 %v1238, %v1274
      %v1307 = vadd.f32 %v1239, %v1275
      %v1308 = vadd.f32 %v1240, %v1276
      %v1309 = vadd.f32 %v1241, %v1277
      %v1310 = vadd.f32 %v1242, %v1278
      %v1311 = vadd.f32 %v1243, %v1279
      %v1312 = vadd.f32 %v1244, %v1280
      %v1313 = vadd.f32 %v1245, %v1281
      %v1314 = vadd.f32 %v1246, %v1282
      %v1315 = vadd.f32 %v1247, %v1283
      %v1316 = vadd.f32 %v1248, %v1284
      %v1317 = vadd.f32 %v1249, %v1285
      %v1318 = vadd.f32 %v1250, %v1286
      %v1319 = vadd.f32 %v1251, %v1287
      %v1320 = vadd.f32 %v1252, %v1288
      %v1321 = vadd.f32 %v1253, %v1289
      %v1322 = vadd.f32 %v1254, %v1290
      %v1323 = vadd.f32 %v1255, %v1291
      %v1324 = vadd.f32 %v1256, %v1292
      %v1325 = vadd.f32 %v1257, %v1293
      %v1326 = vadd.f32 %v1258, %v1294
      %v1327 = vadd.f32 %v1259, %v1295
      %v1328 = vadd.f32 %v354, %v1296
      %v1329 = vadd.f32 %v354, %v1297
      %v1330 = vadd.f32 %v354, %v1298
      %v1331 = vadd.f32 %v354, %v1299
      %v1332 = vadd.f32 %v354, %v1300
      %v1333 = vadd.f32 %v354, %v1301
      %v1334 = vadd.f32 %v354, %v1302
      %v1335 = vadd.f32 %v354, %v1303
      %v1336 = vadd.f32 %v354, %v1304
      %v1337 = vadd.f32 %v354, %v1305
      %v1338 = vadd.f32 %v354, %v1306
      %v1339 = vadd.f32 %v354, %v1307
      %v1340 = vadd.f32 %v354, %v1308
      %v1341 = vadd.f32 %v354, %v1309
      %v1342 = vadd.f32 %v354, %v1310
      %v1343 = vadd.f32 %v354, %v1311
      %v1344 = vadd.f32 %v354, %v1312
      %v1345 = vadd.f32 %v354, %v1313
      %v1346 = vadd.f32 %v354, %v1314
      %v1347 = vadd.f32 %v354, %v1315
      %v1348 = vadd.f32 %v354, %v1316
      %v1349 = vadd.f32 %v354, %v1317
      %v1350 = vadd.f32 %v354, %v1318
      %v1351 = vadd.f32 %v354, %v1319
      %v1352 = vadd.f32 %v354, %v1320
      %v1353 = vadd.f32 %v354, %v1321
      %v1354 = vadd.f32 %v354, %v1322
      %v1355 = vadd.f32 %v354, %v1323
      %v1356 = vadd.f32 %v354, %v1324
      %v1357 = vadd.f32 %v354, %v1325
      %v1358 = vadd.f32 %v354, %v1326
      %v1359 = vadd.f32 %v354, %v1327
      %v1360 = vlaneseq
      %v1361 = vshrl.u32 %v1360, 7
      %v1362 = vsub.s32 5, %v1361
      %v1363 = vrot.slane %v340, %v1362
      %v1364 = vmul.f32 %v583, %v1363
      %v1365 = vmul.f32 %v584, %v1363
      %v1366 = vmul.f32 %v585, %v1363
      %v1367 = vmul.f32 %v586, %v1363
      %v1368 = vmul.f32 %v587, %v1363
      %v1369 = vmul.f32 %v588, %v1363
      %v1370 = vmul.f32 %v589, %v1363
      %v1371 = vmul.f32 %v590, %v1363
      %v1372 = vmul.f32 %v591, %v1363
      %v1373 = vmul.f32 %v592, %v1363
      %v1374 = vmul.f32 %v593, %v1363
      %v1375 = vmul.f32 %v594, %v1363
      %v1376 = vmul.f32 %v595, %v1363
      %v1377 = vmul.f32 %v596, %v1363
      %v1378 = vmul.f32 %v597, %v1363
      %v1379 = vmul.f32 %v598, %v1363
      %v1380 = vmul.f32 %v599, %v1363
      %v1381 = vmul.f32 %v600, %v1363
      %v1382 = vmul.f32 %v601, %v1363
      %v1383 = vmul.f32 %v602, %v1363
      %v1384 = vmul.f32 %v603, %v1363
      %v1385 = vmul.f32 %v604, %v1363
      %v1386 = vmul.f32 %v605, %v1363
      %v1387 = vmul.f32 %v606, %v1363
      %v1388 = vmul.f32 %v607, %v1363
      %v1389 = vmul.f32 %v608, %v1363
      %v1390 = vmul.f32 %v609, %v1363
      %v1391 = vmul.f32 %v610, %v1363
      %v1392 = vmul.f32 %v611, %v1363
      %v1393 = vmul.f32 %v612, %v1363
      %v1394 = vmul.f32 %v613, %v1363
      %v1395 = vmul.f32 %v614, %v1363
      %v1396 = vlaneseq
      %v1397 = vshrl.u32 %v1396, 7
      %v1398 = vsub.s32 6, %v1397
      %v1399 = vrot.slane %v340, %v1398
      %v1400 = vmul.f32 %v716, %v1399
      %v1401 = vmul.f32 %v717, %v1399
      %v1402 = vmul.f32 %v718, %v1399
      %v1403 = vmul.f32 %v719, %v1399
      %v1404 = vmul.f32 %v720, %v1399
      %v1405 = vmul.f32 %v721, %v1399
      %v1406 = vmul.f32 %v722, %v1399
      %v1407 = vmul.f32 %v723, %v1399
      %v1408 = vmul.f32 %v724, %v1399
      %v1409 = vmul.f32 %v725, %v1399
      %v1410 = vmul.f32 %v726, %v1399
      %v1411 = vmul.f32 %v727, %v1399
      %v1412 = vmul.f32 %v728, %v1399
      %v1413 = vmul.f32 %v729, %v1399
      %v1414 = vmul.f32 %v730, %v1399
      %v1415 = vmul.f32 %v731, %v1399
      %v1416 = vmul.f32 %v732, %v1399
      %v1417 = vmul.f32 %v733, %v1399
      %v1418 = vmul.f32 %v734, %v1399
      %v1419 = vmul.f32 %v735, %v1399
      %v1420 = vmul.f32 %v736, %v1399
      %v1421 = vmul.f32 %v737, %v1399
      %v1422 = vmul.f32 %v738, %v1399
      %v1423 = vmul.f32 %v739, %v1399
      %v1424 = vmul.f32 %v740, %v1399
      %v1425 = vmul.f32 %v741, %v1399
      %v1426 = vmul.f32 %v742, %v1399
      %v1427 = vmul.f32 %v743, %v1399
      %v1428 = vmul.f32 %v744, %v1399
      %v1429 = vmul.f32 %v745, %v1399
      %v1430 = vmul.f32 %v746, %v1399
      %v1431 = vmul.f32 %v747, %v1399
      %v1432 = vadd.f32 %v1364, %v1400
      %v1433 = vadd.f32 %v1365, %v1401
      %v1434 = vadd.f32 %v1366, %v1402
      %v1435 = vadd.f32 %v1367, %v1403
      %v1436 = vadd.f32 %v1368, %v1404
      %v1437 = vadd.f32 %v1369, %v1405
      %v1438 = vadd.f32 %v1370, %v1406
      %v1439 = vadd.f32 %v1371, %v1407
      %v1440 = vadd.f32 %v1372, %v1408
      %v1441 = vadd.f32 %v1373, %v1409
      %v1442 = vadd.f32 %v1374, %v1410
      %v1443 = vadd.f32 %v1375, %v1411
      %v1444 = vadd.f32 %v1376, %v1412
      %v1445 = vadd.f32 %v1377, %v1413
      %v1446 = vadd.f32 %v1378, %v1414
      %v1447 = vadd.f32 %v1379, %v1415
      %v1448 = vadd.f32 %v1380, %v1416
      %v1449 = vadd.f32 %v1381, %v1417
      %v1450 = vadd.f32 %v1382, %v1418
      %v1451 = vadd.f32 %v1383, %v1419
      %v1452 = vadd.f32 %v1384, %v1420
      %v1453 = vadd.f32 %v1385, %v1421
      %v1454 = vadd.f32 %v1386, %v1422
      %v1455 = vadd.f32 %v1387, %v1423
      %v1456 = vadd.f32 %v1388, %v1424
      %v1457 = vadd.f32 %v1389, %v1425
      %v1458 = vadd.f32 %v1390, %v1426
      %v1459 = vadd.f32 %v1391, %v1427
      %v1460 = vadd.f32 %v1392, %v1428
      %v1461 = vadd.f32 %v1393, %v1429
      %v1462 = vadd.f32 %v1394, %v1430
      %v1463 = vadd.f32 %v1395, %v1431
      %v1464 = vlaneseq
      %v1465 = vshrl.u32 %v1464, 7
      %v1466 = vsub.s32 7, %v1465
      %v1467 = vrot.slane %v340, %v1466
      %v1468 = vmul.f32 %v450, %v1467
      %v1469 = vmul.f32 %v451, %v1467
      %v1470 = vmul.f32 %v452, %v1467
      %v1471 = vmul.f32 %v453, %v1467
      %v1472 = vmul.f32 %v454, %v1467
      %v1473 = vmul.f32 %v455, %v1467
      %v1474 = vmul.f32 %v456, %v1467
      %v1475 = vmul.f32 %v457, %v1467
      %v1476 = vmul.f32 %v458, %v1467
      %v1477 = vmul.f32 %v459, %v1467
      %v1478 = vmul.f32 %v460, %v1467
      %v1479 = vmul.f32 %v461, %v1467
      %v1480 = vmul.f32 %v462, %v1467
      %v1481 = vmul.f32 %v463, %v1467
      %v1482 = vmul.f32 %v464, %v1467
      %v1483 = vmul.f32 %v465, %v1467
      %v1484 = vmul.f32 %v466, %v1467
      %v1485 = vmul.f32 %v467, %v1467
      %v1486 = vmul.f32 %v468, %v1467
      %v1487 = vmul.f32 %v469, %v1467
      %v1488 = vmul.f32 %v470, %v1467
      %v1489 = vmul.f32 %v471, %v1467
      %v1490 = vmul.f32 %v472, %v1467
      %v1491 = vmul.f32 %v473, %v1467
      %v1492 = vmul.f32 %v474, %v1467
      %v1493 = vmul.f32 %v475, %v1467
      %v1494 = vmul.f32 %v476, %v1467
      %v1495 = vmul.f32 %v477, %v1467
      %v1496 = vmul.f32 %v478, %v1467
      %v1497 = vmul.f32 %v479, %v1467
      %v1498 = vmul.f32 %v480, %v1467
      %v1499 = vmul.f32 %v481, %v1467
      %v1500 = vadd.f32 %v1432, %v1468
      %v1501 = vadd.f32 %v1433, %v1469
      %v1502 = vadd.f32 %v1434, %v1470
      %v1503 = vadd.f32 %v1435, %v1471
      %v1504 = vadd.f32 %v1436, %v1472
      %v1505 = vadd.f32 %v1437, %v1473
      %v1506 = vadd.f32 %v1438, %v1474
      %v1507 = vadd.f32 %v1439, %v1475
      %v1508 = vadd.f32 %v1440, %v1476
      %v1509 = vadd.f32 %v1441, %v1477
      %v1510 = vadd.f32 %v1442, %v1478
      %v1511 = vadd.f32 %v1443, %v1479
      %v1512 = vadd.f32 %v1444, %v1480
      %v1513 = vadd.f32 %v1445, %v1481
      %v1514 = vadd.f32 %v1446, %v1482
      %v1515 = vadd.f32 %v1447, %v1483
      %v1516 = vadd.f32 %v1448, %v1484
      %v1517 = vadd.f32 %v1449, %v1485
      %v1518 = vadd.f32 %v1450, %v1486
      %v1519 = vadd.f32 %v1451, %v1487
      %v1520 = vadd.f32 %v1452, %v1488
      %v1521 = vadd.f32 %v1453, %v1489
      %v1522 = vadd.f32 %v1454, %v1490
      %v1523 = vadd.f32 %v1455, %v1491
      %v1524 = vadd.f32 %v1456, %v1492
      %v1525 = vadd.f32 %v1457, %v1493
      %v1526 = vadd.f32 %v1458, %v1494
      %v1527 = vadd.f32 %v1459, %v1495
      %v1528 = vadd.f32 %v1460, %v1496
      %v1529 = vadd.f32 %v1461, %v1497
      %v1530 = vadd.f32 %v1462, %v1498
      %v1531 = vadd.f32 %v1463, %v1499
      %v1532 = vlaneseq
      %v1533 = vshrl.u32 %v1532, 7
      %v1534 = vsub.s32 0, %v1533
      %v1535 = vrot.slane %v341, %v1534
      %v1536 = vmul.f32 %v849, %v1535
      %v1537 = vmul.f32 %v850, %v1535
      %v1538 = vmul.f32 %v851, %v1535
      %v1539 = vmul.f32 %v852, %v1535
      %v1540 = vmul.f32 %v853, %v1535
      %v1541 = vmul.f32 %v854, %v1535
      %v1542 = vmul.f32 %v855, %v1535
      %v1543 = vmul.f32 %v856, %v1535
      %v1544 = vmul.f32 %v857, %v1535
      %v1545 = vmul.f32 %v858, %v1535
      %v1546 = vmul.f32 %v859, %v1535
      %v1547 = vmul.f32 %v860, %v1535
      %v1548 = vmul.f32 %v861, %v1535
      %v1549 = vmul.f32 %v862, %v1535
      %v1550 = vmul.f32 %v863, %v1535
      %v1551 = vmul.f32 %v864, %v1535
      %v1552 = vmul.f32 %v865, %v1535
      %v1553 = vmul.f32 %v866, %v1535
      %v1554 = vmul.f32 %v867, %v1535
      %v1555 = vmul.f32 %v868, %v1535
      %v1556 = vmul.f32 %v869, %v1535
      %v1557 = vmul.f32 %v870, %v1535
      %v1558 = vmul.f32 %v871, %v1535
      %v1559 = vmul.f32 %v872, %v1535
      %v1560 = vmul.f32 %v873, %v1535
      %v1561 = vmul.f32 %v874, %v1535
      %v1562 = vmul.f32 %v875, %v1535
      %v1563 = vmul.f32 %v876, %v1535
      %v1564 = vmul.f32 %v877, %v1535
      %v1565 = vmul.f32 %v878, %v1535
      %v1566 = vmul.f32 %v879, %v1535
      %v1567 = vmul.f32 %v880, %v1535
      %v1568 = vadd.f32 %v1500, %v1536
      %v1569 = vadd.f32 %v1501, %v1537
      %v1570 = vadd.f32 %v1502, %v1538
      %v1571 = vadd.f32 %v1503, %v1539
      %v1572 = vadd.f32 %v1504, %v1540
      %v1573 = vadd.f32 %v1505, %v1541
      %v1574 = vadd.f32 %v1506, %v1542
      %v1575 = vadd.f32 %v1507, %v1543
      %v1576 = vadd.f32 %v1508, %v1544
      %v1577 = vadd.f32 %v1509, %v1545
      %v1578 = vadd.f32 %v1510, %v1546
      %v1579 = vadd.f32 %v1511, %v1547
      %v1580 = vadd.f32 %v1512, %v1548
      %v1581 = vadd.f32 %v1513, %v1549
      %v1582 = vadd.f32 %v1514, %v1550
      %v1583 = vadd.f32 %v1515, %v1551
      %v1584 = vadd.f32 %v1516, %v1552
      %v1585 = vadd.f32 %v1517, %v1553
      %v1586 = vadd.f32 %v1518, %v1554
      %v1587 = vadd.f32 %v1519, %v1555
      %v1588 = vadd.f32 %v1520, %v1556
      %v1589 = vadd.f32 %v1521, %v1557
      %v1590 = vadd.f32 %v1522, %v1558
      %v1591 = vadd.f32 %v1523, %v1559
      %v1592 = vadd.f32 %v1524, %v1560
      %v1593 = vadd.f32 %v1525, %v1561
      %v1594 = vadd.f32 %v1526, %v1562
      %v1595 = vadd.f32 %v1527, %v1563
      %v1596 = vadd.f32 %v1528, %v1564
      %v1597 = vadd.f32 %v1529, %v1565
      %v1598 = vadd.f32 %v1530, %v1566
      %v1599 = vadd.f32 %v1531, %v1567
      %v1600 = vlaneseq
      %v1601 = vshrl.u32 %v1600, 7
      %v1602 = vsub.s32 1, %v1601
      %v1603 = vrot.slane %v341, %v1602
      %v1604 = vmul.f32 %v982, %v1603
      %v1605 = vmul.f32 %v983, %v1603
      %v1606 = vmul.f32 %v984, %v1603
      %v1607 = vmul.f32 %v985, %v1603
      %v1608 = vmul.f32 %v986, %v1603
      %v1609 = vmul.f32 %v987, %v1603
      %v1610 = vmul.f32 %v988, %v1603
      %v1611 = vmul.f32 %v989, %v1603
      %v1612 = vmul.f32 %v990, %v1603
      %v1613 = vmul.f32 %v991, %v1603
      %v1614 = vmul.f32 %v992, %v1603
      %v1615 = vmul.f32 %v993, %v1603
      %v1616 = vmul.f32 %v994, %v1603
      %v1617 = vmul.f32 %v995, %v1603
      %v1618 = vmul.f32 %v996, %v1603
      %v1619 = vmul.f32 %v997, %v1603
      %v1620 = vmul.f32 %v998, %v1603
      %v1621 = vmul.f32 %v999, %v1603
      %v1622 = vmul.f32 %v1000, %v1603
      %v1623 = vmul.f32 %v1001, %v1603
      %v1624 = vmul.f32 %v1002, %v1603
      %v1625 = vmul.f32 %v1003, %v1603
      %v1626 = vmul.f32 %v1004, %v1603
      %v1627 = vmul.f32 %v1005, %v1603
      %v1628 = vmul.f32 %v1006, %v1603
      %v1629 = vmul.f32 %v1007, %v1603
      %v1630 = vmul.f32 %v1008, %v1603
      %v1631 = vmul.f32 %v1009, %v1603
      %v1632 = vmul.f32 %v1010, %v1603
      %v1633 = vmul.f32 %v1011, %v1603
      %v1634 = vmul.f32 %v1012, %v1603
      %v1635 = vmul.f32 %v1013, %v1603
      %v1636 = vadd.f32 %v1568, %v1604
      %v1637 = vadd.f32 %v1569, %v1605
      %v1638 = vadd.f32 %v1570, %v1606
      %v1639 = vadd.f32 %v1571, %v1607
      %v1640 = vadd.f32 %v1572, %v1608
      %v1641 = vadd.f32 %v1573, %v1609
      %v1642 = vadd.f32 %v1574, %v1610
      %v1643 = vadd.f32 %v1575, %v1611
      %v1644 = vadd.f32 %v1576, %v1612
      %v1645 = vadd.f32 %v1577, %v1613
      %v1646 = vadd.f32 %v1578, %v1614
      %v1647 = vadd.f32 %v1579, %v1615
      %v1648 = vadd.f32 %v1580, %v1616
      %v1649 = vadd.f32 %v1581, %v1617
      %v1650 = vadd.f32 %v1582, %v1618
      %v1651 = vadd.f32 %v1583, %v1619
      %v1652 = vadd.f32 %v1584, %v1620
      %v1653 = vadd.f32 %v1585, %v1621
      %v1654 = vadd.f32 %v1586, %v1622
      %v1655 = vadd.f32 %v1587, %v1623
      %v1656 = vadd.f32 %v1588, %v1624
      %v1657 = vadd.f32 %v1589, %v1625
      %v1658 = vadd.f32 %v1590, %v1626
      %v1659 = vadd.f32 %v1591, %v1627
      %v1660 = vadd.f32 %v1592, %v1628
      %v1661 = vadd.f32 %v1593, %v1629
      %v1662 = vadd.f32 %v1594, %v1630
      %v1663 = vadd.f32 %v1595, %v1631
      %v1664 = vadd.f32 %v1596, %v1632
      %v1665 = vadd.f32 %v1597, %v1633
      %v1666 = vadd.f32 %v1598, %v1634
      %v1667 = vadd.f32 %v1599, %v1635
      %v1668 = vadd.f32 %v1328, %v1636
      %v1669 = vadd.f32 %v1329, %v1637
      %v1670 = vadd.f32 %v1330, %v1638
      %v1671 = vadd.f32 %v1331, %v1639
      %v1672 = vadd.f32 %v1332, %v1640
      %v1673 = vadd.f32 %v1333, %v1641
      %v1674 = vadd.f32 %v1334, %v1642
      %v1675 = vadd.f32 %v1335, %v1643
      %v1676 = vadd.f32 %v1336, %v1644
      %v1677 = vadd.f32 %v1337, %v1645
      %v1678 = vadd.f32 %v1338, %v1646
      %v1679 = vadd.f32 %v1339, %v1647
      %v1680 = vadd.f32 %v1340, %v1648
      %v1681 = vadd.f32 %v1341, %v1649
      %v1682 = vadd.f32 %v1342, %v1650
      %v1683 = vadd.f32 %v1343, %v1651
      %v1684 = vadd.f32 %v1344, %v1652
      %v1685 = vadd.f32 %v1345, %v1653
      %v1686 = vadd.f32 %v1346, %v1654
      %v1687 = vadd.f32 %v1347, %v1655
      %v1688 = vadd.f32 %v1348, %v1656
      %v1689 = vadd.f32 %v1349, %v1657
      %v1690 = vadd.f32 %v1350, %v1658
      %v1691 = vadd.f32 %v1351, %v1659
      %v1692 = vadd.f32 %v1352, %v1660
      %v1693 = vadd.f32 %v1353, %v1661
      %v1694 = vadd.f32 %v1354, %v1662
      %v1695 = vadd.f32 %v1355, %v1663
      %v1696 = vadd.f32 %v1356, %v1664
      %v1697 = vadd.f32 %v1357, %v1665
      %v1698 = vadd.f32 %v1358, %v1666
      %v1699 = vadd.f32 %v1359, %v1667
      %v1700 = vlaneseq
      %v1701 = vshrl.u32 %v1700, 7
      %v1702 = vsub.s32 2, %v1701
      %v1703 = vrot.slane %v341, %v1702
      %v1704 = vmul.f32 %v585, %v1703
      %v1705 = vmul.f32 %v586, %v1703
      %v1706 = vmul.f32 %v587, %v1703
      %v1707 = vmul.f32 %v588, %v1703
      %v1708 = vmul.f32 %v589, %v1703
      %v1709 = vmul.f32 %v590, %v1703
      %v1710 = vmul.f32 %v591, %v1703
      %v1711 = vmul.f32 %v592, %v1703
      %v1712 = vmul.f32 %v593, %v1703
      %v1713 = vmul.f32 %v594, %v1703
      %v1714 = vmul.f32 %v595, %v1703
      %v1715 = vmul.f32 %v596, %v1703
      %v1716 = vmul.f32 %v597, %v1703
      %v1717 = vmul.f32 %v598, %v1703
      %v1718 = vmul.f32 %v599, %v1703
      %v1719 = vmul.f32 %v600, %v1703
      %v1720 = vmul.f32 %v601, %v1703
      %v1721 = vmul.f32 %v602, %v1703
      %v1722 = vmul.f32 %v603, %v1703
      %v1723 = vmul.f32 %v604, %v1703
      %v1724 = vmul.f32 %v605, %v1703
      %v1725 = vmul.f32 %v606, %v1703
      %v1726 = vmul.f32 %v607, %v1703
      %v1727 = vmul.f32 %v608, %v1703
      %v1728 = vmul.f32 %v609, %v1703
      %v1729 = vmul.f32 %v610, %v1703
      %v1730 = vmul.f32 %v611, %v1703
      %v1731 = vmul.f32 %v612, %v1703
      %v1732 = vmul.f32 %v613, %v1703
      %v1733 = vmul.f32 %v614, %v1703
      %v1734 = vmul.f32 %v615, %v1703
      %v1735 = vmul.f32 %v616, %v1703
      %v1736 = vlaneseq
      %v1737 = vshrl.u32 %v1736, 7
      %v1738 = vsub.s32 3, %v1737
      %v1739 = vrot.slane %v341, %v1738
      %v1740 = vmul.f32 %v718, %v1739
      %v1741 = vmul.f32 %v719, %v1739
      %v1742 = vmul.f32 %v720, %v1739
      %v1743 = vmul.f32 %v721, %v1739
      %v1744 = vmul.f32 %v722, %v1739
      %v1745 = vmul.f32 %v723, %v1739
      %v1746 = vmul.f32 %v724, %v1739
      %v1747 = vmul.f32 %v725, %v1739
      %v1748 = vmul.f32 %v726, %v1739
      %v1749 = vmul.f32 %v727, %v1739
      %v1750 = vmul.f32 %v728, %v1739
      %v1751 = vmul.f32 %v729, %v1739
      %v1752 = vmul.f32 %v730, %v1739
      %v1753 = vmul.f32 %v731, %v1739
      %v1754 = vmul.f32 %v732, %v1739
      %v1755 = vmul.f32 %v733, %v1739
      %v1756 = vmul.f32 %v734, %v1739
      %v1757 = vmul.f32 %v735, %v1739
      %v1758 = vmul.f32 %v736, %v1739
      %v1759 = vmul.f32 %v737, %v1739
      %v1760 = vmul.f32 %v738, %v1739
      %v1761 = vmul.f32 %v739, %v1739
      %v1762 = vmul.f32 %v740, %v1739
      %v1763 = vmul.f32 %v741, %v1739
      %v1764 = vmul.f32 %v742, %v1739
      %v1765 = vmul.f32 %v743, %v1739
      %v1766 = vmul.f32 %v744, %v1739
      %v1767 = vmul.f32 %v745, %v1739
      %v1768 = vmul.f32 %v746, %v1739
      %v1769 = vmul.f32 %v747, %v1739
      %v1770 = vmul.f32 %v748, %v1739
      %v1771 = vmul.f32 %v749, %v1739
      %v1772 = vadd.f32 %v1704, %v1740
      %v1773 = vadd.f32 %v1705, %v1741
      %v1774 = vadd.f32 %v1706, %v1742
      %v1775 = vadd.f32 %v1707, %v1743
      %v1776 = vadd.f32 %v1708, %v1744
      %v1777 = vadd.f32 %v1709, %v1745
      %v1778 = vadd.f32 %v1710, %v1746
      %v1779 = vadd.f32 %v1711, %v1747
      %v1780 = vadd.f32 %v1712, %v1748
      %v1781 = vadd.f32 %v1713, %v1749
      %v1782 = vadd.f32 %v1714, %v1750
      %v1783 = vadd.f32 %v1715, %v1751
      %v1784 = vadd.f32 %v1716, %v1752
      %v1785 = vadd.f32 %v1717, %v1753
      %v1786 = vadd.f32 %v1718, %v1754
      %v1787 = vadd.f32 %v1719, %v1755
      %v1788 = vadd.f32 %v1720, %v1756
      %v1789 = vadd.f32 %v1721, %v1757
      %v1790 = vadd.f32 %v1722, %v1758
      %v1791 = vadd.f32 %v1723, %v1759
      %v1792 = vadd.f32 %v1724, %v1760
      %v1793 = vadd.f32 %v1725, %v1761
      %v1794 = vadd.f32 %v1726, %v1762
      %v1795 = vadd.f32 %v1727, %v1763
      %v1796 = vadd.f32 %v1728, %v1764
      %v1797 = vadd.f32 %v1729, %v1765
      %v1798 = vadd.f32 %v1730, %v1766
      %v1799 = vadd.f32 %v1731, %v1767
      %v1800 = vadd.f32 %v1732, %v1768
      %v1801 = vadd.f32 %v1733, %v1769
      %v1802 = vadd.f32 %v1734, %v1770
      %v1803 = vadd.f32 %v1735, %v1771
      %v1804 = vlaneseq
      %v1805 = vshrl.u32 %v1804, 7
      %v1806 = vsub.s32 4, %v1805
      %v1807 = vrot.slane %v341, %v1806
      %v1808 = vmul.f32 %v452, %v1807
      %v1809 = vmul.f32 %v453, %v1807
      %v1810 = vmul.f32 %v454, %v1807
      %v1811 = vmul.f32 %v455, %v1807
      %v1812 = vmul.f32 %v456, %v1807
      %v1813 = vmul.f32 %v457, %v1807
      %v1814 = vmul.f32 %v458, %v1807
      %v1815 = vmul.f32 %v459, %v1807
      %v1816 = vmul.f32 %v460, %v1807
      %v1817 = vmul.f32 %v461, %v1807
      %v1818 = vmul.f32 %v462, %v1807
      %v1819 = vmul.f32 %v463, %v1807
      %v1820 = vmul.f32 %v464, %v1807
      %v1821 = vmul.f32 %v465, %v1807
      %v1822 = vmul.f32 %v466, %v1807
      %v1823 = vmul.f32 %v467, %v1807
      %v1824 = vmul.f32 %v468, %v1807
      %v1825 = vmul.f32 %v469, %v1807
      %v1826 = vmul.f32 %v470, %v1807
      %v1827 = vmul.f32 %v471, %v1807
      %v1828 = vmul.f32 %v472, %v1807
      %v1829 = vmul.f32 %v473, %v1807
      %v1830 = vmul.f32 %v474, %v1807
      %v1831 = vmul.f32 %v475, %v1807
      %v1832 = vmul.f32 %v476, %v1807
      %v1833 = vmul.f32 %v477, %v1807
      %v1834 = vmul.f32 %v478, %v1807
      %v1835 = vmul.f32 %v479, %v1807
      %v1836 = vmul.f32 %v480, %v1807
      %v1837 = vmul.f32 %v481, %v1807
      %v1838 = vmul.f32 %v482, %v1807
      %v1839 = vmul.f32 %v483, %v1807
      %v1840 = vadd.f32 %v1772, %v1808
      %v1841 = vadd.f32 %v1773, %v1809
      %v1842 = vadd.f32 %v1774, %v1810
      %v1843 = vadd.f32 %v1775, %v1811
      %v1844 = vadd.f32 %v1776, %v1812
      %v1845 = vadd.f32 %v1777, %v1813
      %v1846 = vadd.f32 %v1778, %v1814
      %v1847 = vadd.f32 %v1779, %v1815
      %v1848 = vadd.f32 %v1780, %v1816
      %v1849 = vadd.f32 %v1781, %v1817
      %v1850 = vadd.f32 %v1782, %v1818
      %v1851 = vadd.f32 %v1783, %v1819
      %v1852 = vadd.f32 %v1784, %v1820
      %v1853 = vadd.f32 %v1785, %v1821
      %v1854 = vadd.f32 %v1786, %v1822
      %v1855 = vadd.f32 %v1787, %v1823
      %v1856 = vadd.f32 %v1788, %v1824
      %v1857 = vadd.f32 %v1789, %v1825
      %v1858 = vadd.f32 %v1790, %v1826
      %v1859 = vadd.f32 %v1791, %v1827
      %v1860 = vadd.f32 %v1792, %v1828
      %v1861 = vadd.f32 %v1793, %v1829
      %v1862 = vadd.f32 %v1794, %v1830
      %v1863 = vadd.f32 %v1795, %v1831
      %v1864 = vadd.f32 %v1796, %v1832
      %v1865 = vadd.f32 %v1797, %v1833
      %v1866 = vadd.f32 %v1798, %v1834
      %v1867 = vadd.f32 %v1799, %v1835
      %v1868 = vadd.f32 %v1800, %v1836
      %v1869 = vadd.f32 %v1801, %v1837
      %v1870 = vadd.f32 %v1802, %v1838
      %v1871 = vadd.f32 %v1803, %v1839
      %v1872 = vlaneseq
      %v1873 = vshrl.u32 %v1872, 7
      %v1874 = vsub.s32 5, %v1873
      %v1875 = vrot.slane %v341, %v1874
      %v1876 = vmul.f32 %v851, %v1875
      %v1877 = vmul.f32 %v852, %v1875
      %v1878 = vmul.f32 %v853, %v1875
      %v1879 = vmul.f32 %v854, %v1875
      %v1880 = vmul.f32 %v855, %v1875
      %v1881 = vmul.f32 %v856, %v1875
      %v1882 = vmul.f32 %v857, %v1875
      %v1883 = vmul.f32 %v858, %v1875
      %v1884 = vmul.f32 %v859, %v1875
      %v1885 = vmul.f32 %v860, %v1875
      %v1886 = vmul.f32 %v861, %v1875
      %v1887 = vmul.f32 %v862, %v1875
      %v1888 = vmul.f32 %v863, %v1875
      %v1889 = vmul.f32 %v864, %v1875
      %v1890 = vmul.f32 %v865, %v1875
      %v1891 = vmul.f32 %v866, %v1875
      %v1892 = vmul.f32 %v867, %v1875
      %v1893 = vmul.f32 %v868, %v1875
      %v1894 = vmul.f32 %v869, %v1875
      %v1895 = vmul.f32 %v870, %v1875
      %v1896 = vmul.f32 %v871, %v1875
      %v1897 = vmul.f32 %v872, %v1875
      %v1898 = vmul.f32 %v873, %v1875
      %v1899 = vmul.f32 %v874, %v1875
      %v1900 = vmul.f32 %v875, %v1875
      %v1901 = vmul.f32 %v876, %v1875
      %v1902 = vmul.f32 %v877, %v1875
      %v1903 = vmul.f32 %v878, %v1875
      %v1904 = vmul.f32 %v879, %v1875
      %v1905 = vmul.f32 %v880, %v1875
      %v1906 = vmul.f32 %v881, %v1875
      %v1907 = vmul.f32 %v882, %v1875
      %v1908 = vadd.f32 %v1840, %v1876
      %v1909 = vadd.f32 %v1841, %v1877
      %v1910 = vadd.f32 %v1842, %v1878
      %v1911 = vadd.f32 %v1843, %v1879
      %v1912 = vadd.f32 %v1844, %v1880
      %v1913 = vadd.f32 %v1845, %v1881
      %v1914 = vadd.f32 %v1846, %v1882
      %v1915 = vadd.f32 %v1847, %v1883
      %v1916 = vadd.f32 %v1848, %v1884
      %v1917 = vadd.f32 %v1849, %v1885
      %v1918 = vadd.f32 %v1850, %v1886
      %v1919 = vadd.f32 %v1851, %v1887
      %v1920 = vadd.f32 %v1852, %v1888
      %v1921 = vadd.f32 %v1853, %v1889
      %v1922 = vadd.f32 %v1854, %v1890
      %v1923 = vadd.f32 %v1855, %v1891
      %v1924 = vadd.f32 %v1856, %v1892
      %v1925 = vadd.f32 %v1857, %v1893
      %v1926 = vadd.f32 %v1858, %v1894
      %v1927 = vadd.f32 %v1859, %v1895
      %v1928 = vadd.f32 %v1860, %v1896
      %v1929 = vadd.f32 %v1861, %v1897
      %v1930 = vadd.f32 %v1862, %v1898
      %v1931 = vadd.f32 %v1863, %v1899
      %v1932 = vadd.f32 %v1864, %v1900
      %v1933 = vadd.f32 %v1865, %v1901
      %v1934 = vadd.f32 %v1866, %v1902
      %v1935 = vadd.f32 %v1867, %v1903
      %v1936 = vadd.f32 %v1868, %v1904
      %v1937 = vadd.f32 %v1869, %v1905
      %v1938 = vadd.f32 %v1870, %v1906
      %v1939 = vadd.f32 %v1871, %v1907
      %v1940 = vlaneseq
      %v1941 = vshrl.u32 %v1940, 7
      %v1942 = vsub.s32 6, %v1941
      %v1943 = vrot.slane %v341, %v1942
      %v1944 = vmul.f32 %v984, %v1943
      %v1945 = vmul.f32 %v985, %v1943
      %v1946 = vmul.f32 %v986, %v1943
      %v1947 = vmul.f32 %v987, %v1943
      %v1948 = vmul.f32 %v988, %v1943
      %v1949 = vmul.f32 %v989, %v1943
      %v1950 = vmul.f32 %v990, %v1943
      %v1951 = vmul.f32 %v991, %v1943
      %v1952 = vmul.f32 %v992, %v1943
      %v1953 = vmul.f32 %v993, %v1943
      %v1954 = vmul.f32 %v994, %v1943
      %v1955 = vmul.f32 %v995, %v1943
      %v1956 = vmul.f32 %v996, %v1943
      %v1957 = vmul.f32 %v997, %v1943
      %v1958 = vmul.f32 %v998, %v1943
      %v1959 = vmul.f32 %v999, %v1943
      %v1960 = vmul.f32 %v1000, %v1943
      %v1961 = vmul.f32 %v1001, %v1943
      %v1962 = vmul.f32 %v1002, %v1943
      %v1963 = vmul.f32 %v1003, %v1943
      %v1964 = vmul.f32 %v1004, %v1943
      %v1965 = vmul.f32 %v1005, %v1943
      %v1966 = vmul.f32 %v1006, %v1943
      %v1967 = vmul.f32 %v1007, %v1943
      %v1968 = vmul.f32 %v1008, %v1943
      %v1969 = vmul.f32 %v1009, %v1943
      %v1970 = vmul.f32 %v1010, %v1943
      %v1971 = vmul.f32 %v1011, %v1943
      %v1972 = vmul.f32 %v1012, %v1943
      %v1973 = vmul.f32 %v1013, %v1943
      %v1974 = vmul.f32 %v1014, %v1943
      %v1975 = vmul.f32 %v1015, %v1943
      %v1976 = vadd.f32 %v1908, %v1944
      %v1977 = vadd.f32 %v1909, %v1945
      %v1978 = vadd.f32 %v1910, %v1946
      %v1979 = vadd.f32 %v1911, %v1947
      %v1980 = vadd.f32 %v1912, %v1948
      %v1981 = vadd.f32 %v1913, %v1949
      %v1982 = vadd.f32 %v1914, %v1950
      %v1983 = vadd.f32 %v1915, %v1951
      %v1984 = vadd.f32 %v1916, %v1952
      %v1985 = vadd.f32 %v1917, %v1953
      %v1986 = vadd.f32 %v1918, %v1954
      %v1987 = vadd.f32 %v1919, %v1955
      %v1988 = vadd.f32 %v1920, %v1956
      %v1989 = vadd.f32 %v1921, %v1957
      %v1990 = vadd.f32 %v1922, %v1958
      %v1991 = vadd.f32 %v1923, %v1959
      %v1992 = vadd.f32 %v1924, %v1960
      %v1993 = vadd.f32 %v1925, %v1961
      %v1994 = vadd.f32 %v1926, %v1962
      %v1995 = vadd.f32 %v1927, %v1963
      %v1996 = vadd.f32 %v1928, %v1964
      %v1997 = vadd.f32 %v1929, %v1965
      %v1998 = vadd.f32 %v1930, %v1966
      %v1999 = vadd.f32 %v1931, %v1967
      %v2000 = vadd.f32 %v1932, %v1968
      %v2001 = vadd.f32 %v1933, %v1969
      %v2002 = vadd.f32 %v1934, %v1970
      %v2003 = vadd.f32 %v1935, %v1971
      %v2004 = vadd.f32 %v1936, %v1972
      %v2005 = vadd.f32 %v1937, %v1973
      %v2006 = vadd.f32 %v1938, %v1974
      %v2007 = vadd.f32 %v1939, %v1975
      %v2008 = vadd.f32 %v1668, %v1976
      %v2009 = vadd.f32 %v1669, %v1977
      %v2010 = vadd.f32 %v1670, %v1978
      %v2011 = vadd.f32 %v1671, %v1979
      %v2012 = vadd.f32 %v1672, %v1980
      %v2013 = vadd.f32 %v1673, %v1981
      %v2014 = vadd.f32 %v1674, %v1982
      %v2015 = vadd.f32 %v1675, %v1983
      %v2016 = vadd.f32 %v1676, %v1984
      %v2017 = vadd.f32 %v1677, %v1985
      %v2018 = vadd.f32 %v1678, %v1986
      %v2019 = vadd.f32 %v1679, %v1987
      %v2020 = vadd.f32 %v1680, %v1988
      %v2021 = vadd.f32 %v1681, %v1989
      %v2022 = vadd.f32 %v1682, %v1990
      %v2023 = vadd.f32 %v1683, %v1991
      %v2024 = vadd.f32 %v1684, %v1992
      %v2025 = vadd.f32 %v1685, %v1993
      %v2026 = vadd.f32 %v1686, %v1994
      %v2027 = vadd.f32 %v1687, %v1995
      %v2028 = vadd.f32 %v1688, %v1996
      %v2029 = vadd.f32 %v1689, %v1997
      %v2030 = vadd.f32 %v1690, %v1998
      %v2031 = vadd.f32 %v1691, %v1999
      %v2032 = vadd.f32 %v1692, %v2000
      %v2033 = vadd.f32 %v1693, %v2001
      %v2034 = vadd.f32 %v1694, %v2002
      %v2035 = vadd.f32 %v1695, %v2003
      %v2036 = vadd.f32 %v1696, %v2004
      %v2037 = vadd.f32 %v1697, %v2005
      %v2038 = vadd.f32 %v1698, %v2006
      %v2039 = vadd.f32 %v1699, %v2007
      %v2040 = vlaneseq
      %v2041 = vshrl.u32 %v2040, 7
      %v2042 = vsub.s32 7, %v2041
      %v2043 = vrot.slane %v341, %v2042
      %v2044 = vmul.f32 %v587, %v2043
      %v2045 = vmul.f32 %v588, %v2043
      %v2046 = vmul.f32 %v589, %v2043
      %v2047 = vmul.f32 %v590, %v2043
      %v2048 = vmul.f32 %v591, %v2043
      %v2049 = vmul.f32 %v592, %v2043
      %v2050 = vmul.f32 %v593, %v2043
      %v2051 = vmul.f32 %v594, %v2043
      %v2052 = vmul.f32 %v595, %v2043
      %v2053 = vmul.f32 %v596, %v2043
      %v2054 = vmul.f32 %v597, %v2043
      %v2055 = vmul.f32 %v598, %v2043
      %v2056 = vmul.f32 %v599, %v2043
      %v2057 = vmul.f32 %v600, %v2043
      %v2058 = vmul.f32 %v601, %v2043
      %v2059 = vmul.f32 %v602, %v2043
      %v2060 = vmul.f32 %v603, %v2043
      %v2061 = vmul.f32 %v604, %v2043
      %v2062 = vmul.f32 %v605, %v2043
      %v2063 = vmul.f32 %v606, %v2043
      %v2064 = vmul.f32 %v607, %v2043
      %v2065 = vmul.f32 %v608, %v2043
      %v2066 = vmul.f32 %v609, %v2043
      %v2067 = vmul.f32 %v610, %v2043
      %v2068 = vmul.f32 %v611, %v2043
      %v2069 = vmul.f32 %v612, %v2043
      %v2070 = vmul.f32 %v613, %v2043
      %v2071 = vmul.f32 %v614, %v2043
      %v2072 = vmul.f32 %v615, %v2043
      %v2073 = vmul.f32 %v616, %v2043
      %v2074 = vmul.f32 %v617, %v2043
      %v2075 = vmul.f32 %v618, %v2043
      %v2076 = vlaneseq
      %v2077 = vshrl.u32 %v2076, 7
      %v2078 = vsub.s32 0, %v2077
      %v2079 = vrot.slane %v342, %v2078
      %v2080 = vmul.f32 %v720, %v2079
      %v2081 = vmul.f32 %v721, %v2079
      %v2082 = vmul.f32 %v722, %v2079
      %v2083 = vmul.f32 %v723, %v2079
      %v2084 = vmul.f32 %v724, %v2079
      %v2085 = vmul.f32 %v725, %v2079
      %v2086 = vmul.f32 %v726, %v2079
      %v2087 = vmul.f32 %v727, %v2079
      %v2088 = vmul.f32 %v728, %v2079
      %v2089 = vmul.f32 %v729, %v2079
      %v2090 = vmul.f32 %v730, %v2079
      %v2091 = vmul.f32 %v731, %v2079
      %v2092 = vmul.f32 %v732, %v2079
      %v2093 = vmul.f32 %v733, %v2079
      %v2094 = vmul.f32 %v734, %v2079
      %v2095 = vmul.f32 %v735, %v2079
      %v2096 = vmul.f32 %v736, %v2079
      %v2097 = vmul.f32 %v737, %v2079
      %v2098 = vmul.f32 %v738, %v2079
      %v2099 = vmul.f32 %v739, %v2079
      %v2100 = vmul.f32 %v740, %v2079
      %v2101 = vmul.f32 %v741, %v2079
      %v2102 = vmul.f32 %v742, %v2079
      %v2103 = vmul.f32 %v743, %v2079
      %v2104 = vmul.f32 %v744, %v2079
      %v2105 = vmul.f32 %v745, %v2079
      %v2106 = vmul.f32 %v746, %v2079
      %v2107 = vmul.f32 %v747, %v2079
      %v2108 = vmul.f32 %v748, %v2079
      %v2109 = vmul.f32 %v749, %v2079
      %v2110 = vmul.f32 %v750, %v2079
      %v2111 = vmul.f32 %v751, %v2079
      %v2112 = vadd.f32 %v2044, %v2080
      %v2113 = vadd.f32 %v2045, %v2081
      %v2114 = vadd.f32 %v2046, %v2082
      %v2115 = vadd.f32 %v2047, %v2083
      %v2116 = vadd.f32 %v2048, %v2084
      %v2117 = vadd.f32 %v2049, %v2085
      %v2118 = vadd.f32 %v2050, %v2086
      %v2119 = vadd.f32 %v2051, %v2087
      %v2120 = vadd.f32 %v2052, %v2088
      %v2121 = vadd.f32 %v2053, %v2089
      %v2122 = vadd.f32 %v2054, %v2090
      %v2123 = vadd.f32 %v2055, %v2091
      %v2124 = vadd.f32 %v2056, %v2092
      %v2125 = vadd.f32 %v2057, %v2093
      %v2126 = vadd.f32 %v2058, %v2094
      %v2127 = vadd.f32 %v2059, %v2095
      %v2128 = vadd.f32 %v2060, %v2096
      %v2129 = vadd.f32 %v2061, %v2097
      %v2130 = vadd.f32 %v2062, %v2098
      %v2131 = vadd.f32 %v2063, %v2099
      %v2132 = vadd.f32 %v2064, %v2100
      %v2133 = vadd.f32 %v2065, %v2101
      %v2134 = vadd.f32 %v2066, %v2102
      %v2135 = vadd.f32 %v2067, %v2103
      %v2136 = vadd.f32 %v2068, %v2104
      %v2137 = vadd.f32 %v2069, %v2105
      %v2138 = vadd.f32 %v2070, %v2106
      %v2139 = vadd.f32 %v2071, %v2107
      %v2140 = vadd.f32 %v2072, %v2108
      %v2141 = vadd.f32 %v2073, %v2109
      %v2142 = vadd.f32 %v2074, %v2110
      %v2143 = vadd.f32 %v2075, %v2111
      %v2144 = vlaneseq
      %v2145 = vshrl.u32 %v2144, 7
      %v2146 = vsub.s32 1, %v2145
      %v2147 = vrot.slane %v342, %v2146
      %v2148 = vmul.f32 %v454, %v2147
      %v2149 = vmul.f32 %v455, %v2147
      %v2150 = vmul.f32 %v456, %v2147
      %v2151 = vmul.f32 %v457, %v2147
      %v2152 = vmul.f32 %v458, %v2147
      %v2153 = vmul.f32 %v459, %v2147
      %v2154 = vmul.f32 %v460, %v2147
      %v2155 = vmul.f32 %v461, %v2147
      %v2156 = vmul.f32 %v462, %v2147
      %v2157 = vmul.f32 %v463, %v2147
      %v2158 = vmul.f32 %v464, %v2147
      %v2159 = vmul.f32 %v465, %v2147
      %v2160 = vmul.f32 %v466, %v2147
      %v2161 = vmul.f32 %v467, %v2147
      %v2162 = vmul.f32 %v468, %v2147
      %v2163 = vmul.f32 %v469, %v2147
      %v2164 = vmul.f32 %v470, %v2147
      %v2165 = vmul.f32 %v471, %v2147
      %v2166 = vmul.f32 %v472, %v2147
      %v2167 = vmul.f32 %v473, %v2147
      %v2168 = vmul.f32 %v474, %v2147
      %v2169 = vmul.f32 %v475, %v2147
      %v2170 = vmul.f32 %v476, %v2147
      %v2171 = vmul.f32 %v477, %v2147
      %v2172 = vmul.f32 %v478, %v2147
      %v2173 = vmul.f32 %v479, %v2147
      %v2174 = vmul.f32 %v480, %v2147
      %v2175 = vmul.f32 %v481, %v2147
      %v2176 = vmul.f32 %v482, %v2147
      %v2177 = vmul.f32 %v483, %v2147
      %v2178 = vmul.f32 %v484, %v2147
      %v2179 = vmul.f32 %v485, %v2147
      %v2180 = vadd.f32 %v2112, %v2148
      %v2181 = vadd.f32 %v2113, %v2149
      %v2182 = vadd.f32 %v2114, %v2150
      %v2183 = vadd.f32 %v2115, %v2151
      %v2184 = vadd.f32 %v2116, %v2152
      %v2185 = vadd.f32 %v2117, %v2153
      %v2186 = vadd.f32 %v2118, %v2154
      %v2187 = vadd.f32 %v2119, %v2155
      %v2188 = vadd.f32 %v2120, %v2156
      %v2189 = vadd.f32 %v2121, %v2157
      %v2190 = vadd.f32 %v2122, %v2158
      %v2191 = vadd.f32 %v2123, %v2159
      %v2192 = vadd.f32 %v2124, %v2160
      %v2193 = vadd.f32 %v2125, %v2161
      %v2194 = vadd.f32 %v2126, %v2162
      %v2195 = vadd.f32 %v2127, %v2163
      %v2196 = vadd.f32 %v2128, %v2164
      %v2197 = vadd.f32 %v2129, %v2165
      %v2198 = vadd.f32 %v2130, %v2166
      %v2199 = vadd.f32 %v2131, %v2167
      %v2200 = vadd.f32 %v2132, %v2168
      %v2201 = vadd.f32 %v2133, %v2169
      %v2202 = vadd.f32 %v2134, %v2170
      %v2203 = vadd.f32 %v2135, %v2171
      %v2204 = vadd.f32 %v2136, %v2172
      %v2205 = vadd.f32 %v2137, %v2173
      %v2206 = vadd.f32 %v2138, %v2174
      %v2207 = vadd.f32 %v2139, %v2175
      %v2208 = vadd.f32 %v2140, %v2176
      %v2209 = vadd.f32 %v2141, %v2177
      %v2210 = vadd.f32 %v2142, %v2178
      %v2211 = vadd.f32 %v2143, %v2179
      %v2212 = vlaneseq
      %v2213 = vshrl.u32 %v2212, 7
      %v2214 = vsub.s32 2, %v2213
      %v2215 = vrot.slane %v342, %v2214
      %v2216 = vmul.f32 %v853, %v2215
      %v2217 = vmul.f32 %v854, %v2215
      %v2218 = vmul.f32 %v855, %v2215
      %v2219 = vmul.f32 %v856, %v2215
      %v2220 = vmul.f32 %v857, %v2215
      %v2221 = vmul.f32 %v858, %v2215
      %v2222 = vmul.f32 %v859, %v2215
      %v2223 = vmul.f32 %v860, %v2215
      %v2224 = vmul.f32 %v861, %v2215
      %v2225 = vmul.f32 %v862, %v2215
      %v2226 = vmul.f32 %v863, %v2215
      %v2227 = vmul.f32 %v864, %v2215
      %v2228 = vmul.f32 %v865, %v2215
      %v2229 = vmul.f32 %v866, %v2215
      %v2230 = vmul.f32 %v867, %v2215
      %v2231 = vmul.f32 %v868, %v2215
      %v2232 = vmul.f32 %v869, %v2215
      %v2233 = vmul.f32 %v870, %v2215
      %v2234 = vmul.f32 %v871, %v2215
      %v2235 = vmul.f32 %v872, %v2215
      %v2236 = vmul.f32 %v873, %v2215
      %v2237 = vmul.f32 %v874, %v2215
      %v2238 = vmul.f32 %v875, %v2215
      %v2239 = vmul.f32 %v876, %v2215
      %v2240 = vmul.f32 %v877, %v2215
      %v2241 = vmul.f32 %v878, %v2215
      %v2242 = vmul.f32 %v879, %v2215
      %v2243 = vmul.f32 %v880, %v2215
      %v2244 = vmul.f32 %v881, %v2215
      %v2245 = vmul.f32 %v882, %v2215
      %v2246 = vmul.f32 %v883, %v2215
      %v2247 = vmul.f32 %v884, %v2215
      %v2248 = vadd.f32 %v2180, %v2216
      %v2249 = vadd.f32 %v2181, %v2217
      %v2250 = vadd.f32 %v2182, %v2218
      %v2251 = vadd.f32 %v2183, %v2219
      %v2252 = vadd.f32 %v2184, %v2220
      %v2253 = vadd.f32 %v2185, %v2221
      %v2254 = vadd.f32 %v2186, %v2222
      %v2255 = vadd.f32 %v2187, %v2223
      %v2256 = vadd.f32 %v2188, %v2224
      %v2257 = vadd.f32 %v2189, %v2225
      %v2258 = vadd.f32 %v2190, %v2226
      %v2259 = vadd.f32 %v2191, %v2227
      %v2260 = vadd.f32 %v2192, %v2228
      %v2261 = vadd.f32 %v2193, %v2229
      %v2262 = vadd.f32 %v2194, %v2230
      %v2263 = vadd.f32 %v2195, %v2231
      %v2264 = vadd.f32 %v2196, %v2232
      %v2265 = vadd.f32 %v2197, %v2233
      %v2266 = vadd.f32 %v2198, %v2234
      %v2267 = vadd.f32 %v2199, %v2235
      %v2268 = vadd.f32 %v2200, %v2236
      %v2269 = vadd.f32 %v2201, %v2237
      %v2270 = vadd.f32 %v2202, %v2238
      %v2271 = vadd.f32 %v2203, %v2239
      %v2272 = vadd.f32 %v2204, %v2240
      %v2273 = vadd.f32 %v2205, %v2241
      %v2274 = vadd.f32 %v2206, %v2242
      %v2275 = vadd.f32 %v2207, %v2243
      %v2276 = vadd.f32 %v2208, %v2244
      %v2277 = vadd.f32 %v2209, %v2245
      %v2278 = vadd.f32 %v2210, %v2246
      %v2279 = vadd.f32 %v2211, %v2247
      %v2280 = vlaneseq
      %v2281 = vshrl.u32 %v2280, 7
      %v2282 = vsub.s32 3, %v2281
      %v2283 = vrot.slane %v342, %v2282
      %v2284 = vmul.f32 %v986, %v2283
      %v2285 = vmul.f32 %v987, %v2283
      %v2286 = vmul.f32 %v988, %v2283
      %v2287 = vmul.f32 %v989, %v2283
      %v2288 = vmul.f32 %v990, %v2283
      %v2289 = vmul.f32 %v991, %v2283
      %v2290 = vmul.f32 %v992, %v2283
      %v2291 = vmul.f32 %v993, %v2283
      %v2292 = vmul.f32 %v994, %v2283
      %v2293 = vmul.f32 %v995, %v2283
      %v2294 = vmul.f32 %v996, %v2283
      %v2295 = vmul.f32 %v997, %v2283
      %v2296 = vmul.f32 %v998, %v2283
      %v2297 = vmul.f32 %v999, %v2283
      %v2298 = vmul.f32 %v1000, %v2283
      %v2299 = vmul.f32 %v1001, %v2283
      %v2300 = vmul.f32 %v1002, %v2283
      %v2301 = vmul.f32 %v1003, %v2283
      %v2302 = vmul.f32 %v1004, %v2283
      %v2303 = vmul.f32 %v1005, %v2283
      %v2304 = vmul.f32 %v1006, %v2283
      %v2305 = vmul.f32 %v1007, %v2283
      %v2306 = vmul.f32 %v1008, %v2283
      %v2307 = vmul.f32 %v1009, %v2283
      %v2308 = vmul.f32 %v1010, %v2283
      %v2309 = vmul.f32 %v1011, %v2283
      %v2310 = vmul.f32 %v1012, %v2283
      %v2311 = vmul.f32 %v1013, %v2283
      %v2312 = vmul.f32 %v1014, %v2283
      %v2313 = vmul.f32 %v1015, %v2283
      %v2314 = vmul.f32 %v1016, %v2283
      %v2315 = vmul.f32 %v1017, %v2283
      %v2316 = vadd.f32 %v2248, %v2284
      %v2317 = vadd.f32 %v2249, %v2285
      %v2318 = vadd.f32 %v2250, %v2286
      %v2319 = vadd.f32 %v2251, %v2287
      %v2320 = vadd.f32 %v2252, %v2288
      %v2321 = vadd.f32 %v2253, %v2289
      %v2322 = vadd.f32 %v2254, %v2290
      %v2323 = vadd.f32 %v2255, %v2291
      %v2324 = vadd.f32 %v2256, %v2292
      %v2325 = vadd.f32 %v2257, %v2293
      %v2326 = vadd.f32 %v2258, %v2294
      %v2327 = vadd.f32 %v2259, %v2295
      %v2328 = vadd.f32 %v2260, %v2296
      %v2329 = vadd.f32 %v2261, %v2297
      %v2330 = vadd.f32 %v2262, %v2298
      %v2331 = vadd.f32 %v2263, %v2299
      %v2332 = vadd.f32 %v2264, %v2300
      %v2333 = vadd.f32 %v2265, %v2301
      %v2334 = vadd.f32 %v2266, %v2302
      %v2335 = vadd.f32 %v2267, %v2303
      %v2336 = vadd.f32 %v2268, %v2304
      %v2337 = vadd.f32 %v2269, %v2305
      %v2338 = vadd.f32 %v2270, %v2306
      %v2339 = vadd.f32 %v2271, %v2307
      %v2340 = vadd.f32 %v2272, %v2308
      %v2341 = vadd.f32 %v2273, %v2309
      %v2342 = vadd.f32 %v2274, %v2310
      %v2343 = vadd.f32 %v2275, %v2311
      %v2344 = vadd.f32 %v2276, %v2312
      %v2345 = vadd.f32 %v2277, %v2313
      %v2346 = vadd.f32 %v2278, %v2314
      %v2347 = vadd.f32 %v2279, %v2315
      %v2348 = vadd.f32 %v2008, %v2316
      %v2349 = vadd.f32 %v2009, %v2317
      %v2350 = vadd.f32 %v2010, %v2318
      %v2351 = vadd.f32 %v2011, %v2319
      %v2352 = vadd.f32 %v2012, %v2320
      %v2353 = vadd.f32 %v2013, %v2321
      %v2354 = vadd.f32 %v2014, %v2322
      %v2355 = vadd.f32 %v2015, %v2323
      %v2356 = vadd.f32 %v2016, %v2324
      %v2357 = vadd.f32 %v2017, %v2325
      %v2358 = vadd.f32 %v2018, %v2326
      %v2359 = vadd.f32 %v2019, %v2327
      %v2360 = vadd.f32 %v2020, %v2328
      %v2361 = vadd.f32 %v2021, %v2329
      %v2362 = vadd.f32 %v2022, %v2330
      %v2363 = vadd.f32 %v2023, %v2331
      %v2364 = vadd.f32 %v2024, %v2332
      %v2365 = vadd.f32 %v2025, %v2333
      %v2366 = vadd.f32 %v2026, %v2334
      %v2367 = vadd.f32 %v2027, %v2335
      %v2368 = vadd.f32 %v2028, %v2336
      %v2369 = vadd.f32 %v2029, %v2337
      %v2370 = vadd.f32 %v2030, %v2338
      %v2371 = vadd.f32 %v2031, %v2339
      %v2372 = vadd.f32 %v2032, %v2340
      %v2373 = vadd.f32 %v2033, %v2341
      %v2374 = vadd.f32 %v2034, %v2342
      %v2375 = vadd.f32 %v2035, %v2343
      %v2376 = vadd.f32 %v2036, %v2344
      %v2377 = vadd.f32 %v2037, %v2345
      %v2378 = vadd.f32 %v2038, %v2346
      %v2379 = vadd.f32 %v2039, %v2347
      %v2380 = vlaneseq
      %v2381 = vshrl.u32 %v2380, 7
      %v2382 = vsub.s32 4, %v2381
      %v2383 = vrot.slane %v342, %v2382
      %v2384 = vmul.f32 %v589, %v2383
      %v2385 = vmul.f32 %v590, %v2383
      %v2386 = vmul.f32 %v591, %v2383
      %v2387 = vmul.f32 %v592, %v2383
      %v2388 = vmul.f32 %v593, %v2383
      %v2389 = vmul.f32 %v594, %v2383
      %v2390 = vmul.f32 %v595, %v2383
      %v2391 = vmul.f32 %v596, %v2383
      %v2392 = vmul.f32 %v597, %v2383
      %v2393 = vmul.f32 %v598, %v2383
      %v2394 = vmul.f32 %v599, %v2383
      %v2395 = vmul.f32 %v600, %v2383
      %v2396 = vmul.f32 %v601, %v2383
      %v2397 = vmul.f32 %v602, %v2383
      %v2398 = vmul.f32 %v603, %v2383
      %v2399 = vmul.f32 %v604, %v2383
      %v2400 = vmul.f32 %v605, %v2383
      %v2401 = vmul.f32 %v606, %v2383
      %v2402 = vmul.f32 %v607, %v2383
      %v2403 = vmul.f32 %v608, %v2383
      %v2404 = vmul.f32 %v609, %v2383
      %v2405 = vmul.f32 %v610, %v2383
      %v2406 = vmul.f32 %v611, %v2383
      %v2407 = vmul.f32 %v612, %v2383
      %v2408 = vmul.f32 %v613, %v2383
      %v2409 = vmul.f32 %v614, %v2383
      %v2410 = vmul.f32 %v615, %v2383
      %v2411 = vmul.f32 %v616, %v2383
      %v2412 = vmul.f32 %v617, %v2383
      %v2413 = vmul.f32 %v618, %v2383
      %v2414 = vmul.f32 %v619, %v2383
      %v2415 = vmul.f32 %v620, %v2383
      %v2416 = vlaneseq
      %v2417 = vshrl.u32 %v2416, 7
      %v2418 = vsub.s32 5, %v2417
      %v2419 = vrot.slane %v342, %v2418
      %v2420 = vmul.f32 %v722, %v2419
      %v2421 = vmul.f32 %v723, %v2419
      %v2422 = vmul.f32 %v724, %v2419
      %v2423 = vmul.f32 %v725, %v2419
      %v2424 = vmul.f32 %v726, %v2419
      %v2425 = vmul.f32 %v727, %v2419
      %v2426 = vmul.f32 %v728, %v2419
      %v2427 = vmul.f32 %v729, %v2419
      %v2428 = vmul.f32 %v730, %v2419
      %v2429 = vmul.f32 %v731, %v2419
      %v2430 = vmul.f32 %v732, %v2419
      %v2431 = vmul.f32 %v733, %v2419
      %v2432 = vmul.f32 %v734, %v2419
      %v2433 = vmul.f32 %v735, %v2419
      %v2434 = vmul.f32 %v736, %v2419
      %v2435 = vmul.f32 %v737, %v2419
      %v2436 = vmul.f32 %v738, %v2419
      %v2437 = vmul.f32 %v739, %v2419
      %v2438 = vmul.f32 %v740, %v2419
      %v2439 = vmul.f32 %v741, %v2419
      %v2440 = vmul.f32 %v742, %v2419
      %v2441 = vmul.f32 %v743, %v2419
      %v2442 = vmul.f32 %v744, %v2419
      %v2443 = vmul.f32 %v745, %v2419
      %v2444 = vmul.f32 %v746, %v2419
      %v2445 = vmul.f32 %v747, %v2419
      %v2446 = vmul.f32 %v748, %v2419
      %v2447 = vmul.f32 %v749, %v2419
      %v2448 = vmul.f32 %v750, %v2419
      %v2449 = vmul.f32 %v751, %v2419
      %v2450 = vmul.f32 %v752, %v2419
      %v2451 = vmul.f32 %v753, %v2419
      %v2452 = vadd.f32 %v2384, %v2420
      %v2453 = vadd.f32 %v2385, %v2421
      %v2454 = vadd.f32 %v2386, %v2422
      %v2455 = vadd.f32 %v2387, %v2423
      %v2456 = vadd.f32 %v2388, %v2424
      %v2457 = vadd.f32 %v2389, %v2425
      %v2458 = vadd.f32 %v2390, %v2426
      %v2459 = vadd.f32 %v2391, %v2427
      %v2460 = vadd.f32 %v2392, %v2428
      %v2461 = vadd.f32 %v2393, %v2429
      %v2462 = vadd.f32 %v2394, %v2430
      %v2463 = vadd.f32 %v2395, %v2431
      %v2464 = vadd.f32 %v2396, %v2432
      %v2465 = vadd.f32 %v2397, %v2433
      %v2466 = vadd.f32 %v2398, %v2434
      %v2467 = vadd.f32 %v2399, %v2435
      %v2468 = vadd.f32 %v2400, %v2436
      %v2469 = vadd.f32 %v2401, %v2437
      %v2470 = vadd.f32 %v2402, %v2438
      %v2471 = vadd.f32 %v2403, %v2439
      %v2472 = vadd.f32 %v2404, %v2440
      %v2473 = vadd.f32 %v2405, %v2441
      %v2474 = vadd.f32 %v2406, %v2442
      %v2475 = vadd.f32 %v2407, %v2443
      %v2476 = vadd.f32 %v2408, %v2444
      %v2477 = vadd.f32 %v2409, %v2445
      %v2478 = vadd.f32 %v2410, %v2446
      %v2479 = vadd.f32 %v2411, %v2447
      %v2480 = vadd.f32 %v2412, %v2448
      %v2481 = vadd.f32 %v2413, %v2449
      %v2482 = vadd.f32 %v2414, %v2450
      %v2483 = vadd.f32 %v2415, %v2451
      %v2484 = vlaneseq
      %v2485 = vshrl.u32 %v2484, 7
      %v2486 = vsub.s32 6, %v2485
      %v2487 = vrot.slane %v342, %v2486
      %v2488 = vmul.f32 %v456, %v2487
      %v2489 = vmul.f32 %v457, %v2487
      %v2490 = vmul.f32 %v458, %v2487
      %v2491 = vmul.f32 %v459, %v2487
      %v2492 = vmul.f32 %v460, %v2487
      %v2493 = vmul.f32 %v461, %v2487
      %v2494 = vmul.f32 %v462, %v2487
      %v2495 = vmul.f32 %v463, %v2487
      %v2496 = vmul.f32 %v464, %v2487
      %v2497 = vmul.f32 %v465, %v2487
      %v2498 = vmul.f32 %v466, %v2487
      %v2499 = vmul.f32 %v467, %v2487
      %v2500 = vmul.f32 %v468, %v2487
      %v2501 = vmul.f32 %v469, %v2487
      %v2502 = vmul.f32 %v470, %v2487
      %v2503 = vmul.f32 %v471, %v2487
      %v2504 = vmul.f32 %v472, %v2487
      %v2505 = vmul.f32 %v473, %v2487
      %v2506 = vmul.f32 %v474, %v2487
      %v2507 = vmul.f32 %v475, %v2487
      %v2508 = vmul.f32 %v476, %v2487
      %v2509 = vmul.f32 %v477, %v2487
      %v2510 = vmul.f32 %v478, %v2487
      %v2511 = vmul.f32 %v479, %v2487
      %v2512 = vmul.f32 %v480, %v2487
      %v2513 = vmul.f32 %v481, %v2487
      %v2514 = vmul.f32 %v482, %v2487
      %v2515 = vmul.f32 %v483, %v2487
      %v2516 = vmul.f32 %v484, %v2487
      %v2517 = vmul.f32 %v485, %v2487
      %v2518 = vmul.f32 %v486, %v2487
      %v2519 = vmul.f32 %v487, %v2487
      %v2520 = vadd.f32 %v2452, %v2488
      %v2521 = vadd.f32 %v2453, %v2489
      %v2522 = vadd.f32 %v2454, %v2490
      %v2523 = vadd.f32 %v2455, %v2491
      %v2524 = vadd.f32 %v2456, %v2492
      %v2525 = vadd.f32 %v2457, %v2493
      %v2526 = vadd.f32 %v2458, %v2494
      %v2527 = vadd.f32 %v2459, %v2495
      %v2528 = vadd.f32 %v2460, %v2496
      %v2529 = vadd.f32 %v2461, %v2497
      %v2530 = vadd.f32 %v2462, %v2498
      %v2531 = vadd.f32 %v2463, %v2499
      %v2532 = vadd.f32 %v2464, %v2500
      %v2533 = vadd.f32 %v2465, %v2501
      %v2534 = vadd.f32 %v2466, %v2502
      %v2535 = vadd.f32 %v2467, %v2503
      %v2536 = vadd.f32 %v2468, %v2504
      %v2537 = vadd.f32 %v2469, %v2505
      %v2538 = vadd.f32 %v2470, %v2506
      %v2539 = vadd.f32 %v2471, %v2507
      %v2540 = vadd.f32 %v2472, %v2508
      %v2541 = vadd.f32 %v2473, %v2509
      %v2542 = vadd.f32 %v2474, %v2510
      %v2543 = vadd.f32 %v2475, %v2511
      %v2544 = vadd.f32 %v2476, %v2512
      %v2545 = vadd.f32 %v2477, %v2513
      %v2546 = vadd.f32 %v2478, %v2514
      %v2547 = vadd.f32 %v2479, %v2515
      %v2548 = vadd.f32 %v2480, %v2516
      %v2549 = vadd.f32 %v2481, %v2517
      %v2550 = vadd.f32 %v2482, %v2518
      %v2551 = vadd.f32 %v2483, %v2519
      %v2552 = vlaneseq
      %v2553 = vshrl.u32 %v2552, 7
      %v2554 = vsub.s32 7, %v2553
      %v2555 = vrot.slane %v342, %v2554
      %v2556 = vmul.f32 %v855, %v2555
      %v2557 = vmul.f32 %v856, %v2555
      %v2558 = vmul.f32 %v857, %v2555
      %v2559 = vmul.f32 %v858, %v2555
      %v2560 = vmul.f32 %v859, %v2555
      %v2561 = vmul.f32 %v860, %v2555
      %v2562 = vmul.f32 %v861, %v2555
      %v2563 = vmul.f32 %v862, %v2555
      %v2564 = vmul.f32 %v863, %v2555
      %v2565 = vmul.f32 %v864, %v2555
      %v2566 = vmul.f32 %v865, %v2555
      %v2567 = vmul.f32 %v866, %v2555
      %v2568 = vmul.f32 %v867, %v2555
      %v2569 = vmul.f32 %v868, %v2555
      %v2570 = vmul.f32 %v869, %v2555
      %v2571 = vmul.f32 %v870, %v2555
      %v2572 = vmul.f32 %v871, %v2555
      %v2573 = vmul.f32 %v872, %v2555
      %v2574 = vmul.f32 %v873, %v2555
      %v2575 = vmul.f32 %v874, %v2555
      %v2576 = vmul.f32 %v875, %v2555
      %v2577 = vmul.f32 %v876, %v2555
      %v2578 = vmul.f32 %v877, %v2555
      %v2579 = vmul.f32 %v878, %v2555
      %v2580 = vmul.f32 %v879, %v2555
      %v2581 = vmul.f32 %v880, %v2555
      %v2582 = vmul.f32 %v881, %v2555
      %v2583 = vmul.f32 %v882, %v2555
      %v2584 = vmul.f32 %v883, %v2555
      %v2585 = vmul.f32 %v884, %v2555
      %v2586 = vmul.f32 %v885, %v2555
      %v2587 = vmul.f32 %v886, %v2555
      %v2588 = vadd.f32 %v2520, %v2556
      %v2589 = vadd.f32 %v2521, %v2557
      %v2590 = vadd.f32 %v2522, %v2558
      %v2591 = vadd.f32 %v2523, %v2559
      %v2592 = vadd.f32 %v2524, %v2560
      %v2593 = vadd.f32 %v2525, %v2561
      %v2594 = vadd.f32 %v2526, %v2562
      %v2595 = vadd.f32 %v2527, %v2563
      %v2596 = vadd.f32 %v2528, %v2564
      %v2597 = vadd.f32 %v2529, %v2565
      %v2598 = vadd.f32 %v2530, %v2566
      %v2599 = vadd.f32 %v2531, %v2567
      %v2600 = vadd.f32 %v2532, %v2568
      %v2601 = vadd.f32 %v2533, %v2569
      %v2602 = vadd.f32 %v2534, %v2570
      %v2603 = vadd.f32 %v2535, %v2571
      %v2604 = vadd.f32 %v2536, %v2572
      %v2605 = vadd.f32 %v2537, %v2573
      %v2606 = vadd.f32 %v2538, %v2574
      %v2607 = vadd.f32 %v2539, %v2575
      %v2608 = vadd.f32 %v2540, %v2576
      %v2609 = vadd.f32 %v2541, %v2577
      %v2610 = vadd.f32 %v2542, %v2578
      %v2611 = vadd.f32 %v2543, %v2579
      %v2612 = vadd.f32 %v2544, %v2580
      %v2613 = vadd.f32 %v2545, %v2581
      %v2614 = vadd.f32 %v2546, %v2582
      %v2615 = vadd.f32 %v2547, %v2583
      %v2616 = vadd.f32 %v2548, %v2584
      %v2617 = vadd.f32 %v2549, %v2585
      %v2618 = vadd.f32 %v2550, %v2586
      %v2619 = vadd.f32 %v2551, %v2587
      %v2620 = vlaneseq
      %v2621 = vshrl.u32 %v2620, 7
      %v2622 = vsub.s32 0, %v2621
      %v2623 = vrot.slane %v343, %v2622
      %v2624 = vmul.f32 %v988, %v2623
      %v2625 = vmul.f32 %v989, %v2623
      %v2626 = vmul.f32 %v990, %v2623
      %v2627 = vmul.f32 %v991, %v2623
      %v2628 = vmul.f32 %v992, %v2623
      %v2629 = vmul.f32 %v993, %v2623
      %v2630 = vmul.f32 %v994, %v2623
      %v2631 = vmul.f32 %v995, %v2623
      %v2632 = vmul.f32 %v996, %v2623
      %v2633 = vmul.f32 %v997, %v2623
      %v2634 = vmul.f32 %v998, %v2623
      %v2635 = vmul.f32 %v999, %v2623
      %v2636 = vmul.f32 %v1000, %v2623
      %v2637 = vmul.f32 %v1001, %v2623
      %v2638 = vmul.f32 %v1002, %v2623
      %v2639 = vmul.f32 %v1003, %v2623
      %v2640 = vmul.f32 %v1004, %v2623
      %v2641 = vmul.f32 %v1005, %v2623
      %v2642 = vmul.f32 %v1006, %v2623
      %v2643 = vmul.f32 %v1007, %v2623
      %v2644 = vmul.f32 %v1008, %v2623
      %v2645 = vmul.f32 %v1009, %v2623
      %v2646 = vmul.f32 %v1010, %v2623
      %v2647 = vmul.f32 %v1011, %v2623
      %v2648 = vmul.f32 %v1012, %v2623
      %v2649 = vmul.f32 %v1013, %v2623
      %v2650 = vmul.f32 %v1014, %v2623
      %v2651 = vmul.f32 %v1015, %v2623
      %v2652 = vmul.f32 %v1016, %v2623
      %v2653 = vmul.f32 %v1017, %v2623
      %v2654 = vmul.f32 %v1018, %v2623
      %v2655 = vmul.f32 %v1019, %v2623
      %v2656 = vadd.f32 %v2588, %v2624
      %v2657 = vadd.f32 %v2589, %v2625
      %v2658 = vadd.f32 %v2590, %v2626
      %v2659 = vadd.f32 %v2591, %v2627
      %v2660 = vadd.f32 %v2592, %v2628
      %v2661 = vadd.f32 %v2593, %v2629
      %v2662 = vadd.f32 %v2594, %v2630
      %v2663 = vadd.f32 %v2595, %v2631
      %v2664 = vadd.f32 %v2596, %v2632
      %v2665 = vadd.f32 %v2597, %v2633
      %v2666 = vadd.f32 %v2598, %v2634
      %v2667 = vadd.f32 %v2599, %v2635
      %v2668 = vadd.f32 %v2600, %v2636
      %v2669 = vadd.f32 %v2601, %v2637
      %v2670 = vadd.f32 %v2602, %v2638
      %v2671 = vadd.f32 %v2603, %v2639
      %v2672 = vadd.f32 %v2604, %v2640
      %v2673 = vadd.f32 %v2605, %v2641
      %v2674 = vadd.f32 %v2606, %v2642
      %v2675 = vadd.f32 %v2607, %v2643
      %v2676 = vadd.f32 %v2608, %v2644
      %v2677 = vadd.f32 %v2609, %v2645
      %v2678 = vadd.f32 %v2610, %v2646
      %v2679 = vadd.f32 %v2611, %v2647
      %v2680 = vadd.f32 %v2612, %v2648
      %v2681 = vadd.f32 %v2613, %v2649
      %v2682 = vadd.f32 %v2614, %v2650
      %v2683 = vadd.f32 %v2615, %v2651
      %v2684 = vadd.f32 %v2616, %v2652
      %v2685 = vadd.f32 %v2617, %v2653
      %v2686 = vadd.f32 %v2618, %v2654
      %v2687 = vadd.f32 %v2619, %v2655
      %v2688 = vadd.f32 %v2348, %v2656
      %v2689 = vadd.f32 %v2349, %v2657
      %v2690 = vadd.f32 %v2350, %v2658
      %v2691 = vadd.f32 %v2351, %v2659
      %v2692 = vadd.f32 %v2352, %v2660
      %v2693 = vadd.f32 %v2353, %v2661
      %v2694 = vadd.f32 %v2354, %v2662
      %v2695 = vadd.f32 %v2355, %v2663
      %v2696 = vadd.f32 %v2356, %v2664
      %v2697 = vadd.f32 %v2357, %v2665
      %v2698 = vadd.f32 %v2358, %v2666
      %v2699 = vadd.f32 %v2359, %v2667
      %v2700 = vadd.f32 %v2360, %v2668
      %v2701 = vadd.f32 %v2361, %v2669
      %v2702 = vadd.f32 %v2362, %v2670
      %v2703 = vadd.f32 %v2363, %v2671
      %v2704 = vadd.f32 %v2364, %v2672
      %v2705 = vadd.f32 %v2365, %v2673
      %v2706 = vadd.f32 %v2366, %v2674
      %v2707 = vadd.f32 %v2367, %v2675
      %v2708 = vadd.f32 %v2368, %v2676
      %v2709 = vadd.f32 %v2369, %v2677
      %v2710 = vadd.f32 %v2370, %v2678
      %v2711 = vadd.f32 %v2371, %v2679
      %v2712 = vadd.f32 %v2372, %v2680
      %v2713 = vadd.f32 %v2373, %v2681
      %v2714 = vadd.f32 %v2374, %v2682
      %v2715 = vadd.f32 %v2375, %v2683
      %v2716 = vadd.f32 %v2376, %v2684
      %v2717 = vadd.f32 %v2377, %v2685
      %v2718 = vadd.f32 %v2378, %v2686
      %v2719 = vadd.f32 %v2379, %v2687
      %v2720 = vsel %vm373, %v2688, 0.0
      %2721 = vadd.xlane.f32.xlu0 %v2720
      %v2722 = vpop.xlane.xlu0 %2721
      %v2723 = vsel %vm373, %v2689, 0.0
      %2724 = vadd.xlane.f32.xlu0 %v2723
      %v2725 = vpop.xlane.xlu0 %2724
      %v2726 = vsel %vm373, %v2690, 0.0
      %2727 = vadd.xlane.f32.xlu0 %v2726
      %v2728 = vpop.xlane.xlu0 %2727
      %v2729 = vsel %vm373, %v2691, 0.0
      %2730 = vadd.xlane.f32.xlu0 %v2729
      %v2731 = vpop.xlane.xlu0 %2730
      %v2732 = vsel %vm373, %v2692, 0.0
      %2733 = vadd.xlane.f32.xlu0 %v2732
      %v2734 = vpop.xlane.xlu0 %2733
      %v2735 = vsel %vm373, %v2693, 0.0
      %2736 = vadd.xlane.f32.xlu0 %v2735
      %v2737 = vpop.xlane.xlu0 %2736
      %v2738 = vsel %vm373, %v2694, 0.0
      %2739 = vadd.xlane.f32.xlu0 %v2738
      %v2740 = vpop.xlane.xlu0 %2739
      %v2741 = vsel %vm373, %v2695, 0.0
      %2742 = vadd.xlane.f32.xlu0 %v2741
      %v2743 = vpop.xlane.xlu0 %2742
      %v2744 = vsel %vm373, %v2696, 0.0
      %2745 = vadd.xlane.f32.xlu0 %v2744
      %v2746 = vpop.xlane.xlu0 %2745
      %v2747 = vsel %vm373, %v2697, 0.0
      %2748 = vadd.xlane.f32.xlu0 %v2747
      %v2749 = vpop.xlane.xlu0 %2748
      %v2750 = vsel %vm373, %v2698, 0.0
      %2751 = vadd.xlane.f32.xlu0 %v2750
      %v2752 = vpop.xlane.xlu0 %2751
      %v2753 = vsel %vm373, %v2699, 0.0
      %2754 = vadd.xlane.f32.xlu0 %v2753
      %v2755 = vpop.xlane.xlu0 %2754
      %v2756 = vsel %vm373, %v2700, 0.0
      %2757 = vadd.xlane.f32.xlu0 %v2756
      %v2758 = vpop.xlane.xlu0 %2757
      %v2759 = vsel %vm373, %v2701, 0.0
      %2760 = vadd.xlane.f32.xlu0 %v2759
      %v2761 = vpop.xlane.xlu0 %2760
      %v2762 = vsel %vm373, %v2702, 0.0
      %2763 = vadd.xlane.f32.xlu0 %v2762
      %v2764 = vpop.xlane.xlu0 %2763
      %v2765 = vsel %vm373, %v2703, 0.0
      %2766 = vadd.xlane.f32.xlu0 %v2765
      %v2767 = vpop.xlane.xlu0 %2766
      %v2768 = vsel %vm373, %v2704, 0.0
      %2769 = vadd.xlane.f32.xlu0 %v2768
      %v2770 = vpop.xlane.xlu0 %2769
      %v2771 = vsel %vm373, %v2705, 0.0
      %2772 = vadd.xlane.f32.xlu0 %v2771
      %v2773 = vpop.xlane.xlu0 %2772
      %v2774 = vsel %vm373, %v2706, 0.0
      %2775 = vadd.xlane.f32.xlu0 %v2774
      %v2776 = vpop.xlane.xlu0 %2775
      %v2777 = vsel %vm373, %v2707, 0.0
      %2778 = vadd.xlane.f32.xlu0 %v2777
      %v2779 = vpop.xlane.xlu0 %2778
      %v2780 = vsel %vm373, %v2708, 0.0
      %2781 = vadd.xlane.f32.xlu0 %v2780
      %v2782 = vpop.xlane.xlu0 %2781
      %v2783 = vsel %vm373, %v2709, 0.0
      %2784 = vadd.xlane.f32.xlu0 %v2783
      %v2785 = vpop.xlane.xlu0 %2784
      %v2786 = vsel %vm373, %v2710, 0.0
      %2787 = vadd.xlane.f32.xlu0 %v2786
      %v2788 = vpop.xlane.xlu0 %2787
      %v2789 = vsel %vm373, %v2711, 0.0
      %2790 = vadd.xlane.f32.xlu0 %v2789
      %v2791 = vpop.xlane.xlu0 %2790
      %v2792 = vsel %vm373, %v2712, 0.0
      %2793 = vadd.xlane.f32.xlu0 %v2792
      %v2794 = vpop.xlane.xlu0 %2793
      %v2795 = vsel %vm373, %v2713, 0.0
      %2796 = vadd.xlane.f32.xlu0 %v2795
      %v2797 = vpop.xlane.xlu0 %2796
      %v2798 = vsel %vm373, %v2714, 0.0
      %2799 = vadd.xlane.f32.xlu0 %v2798
      %v2800 = vpop.xlane.xlu0 %2799
      %v2801 = vsel %vm373, %v2715, 0.0
      %2802 = vadd.xlane.f32.xlu0 %v2801
      %v2803 = vpop.xlane.xlu0 %2802
      %v2804 = vsel %vm373, %v2716, 0.0
      %2805 = vadd.xlane.f32.xlu0 %v2804
      %v2806 = vpop.xlane.xlu0 %2805
      %v2807 = vsel %vm373, %v2717, 0.0
      %2808 = vadd.xlane.f32.xlu0 %v2807
      %v2809 = vpop.xlane.xlu0 %2808
      %v2810 = vsel %vm373, %v2718, 0.0
      %2811 = vadd.xlane.f32.xlu0 %v2810
      %v2812 = vpop.xlane.xlu0 %2811
      %v2813 = vsel %vm373, %v2719, 0.0
      %2814 = vadd.xlane.f32.xlu0 %v2813
      %v2815 = vpop.xlane.xlu0 %2814
      %v2816 = vrcp.pop 4.0
      %v2817 = vmul.f32 %v2722, %v2816
      %v2818 = vmul.f32 %v2725, %v2816
      %v2819 = vmul.f32 %v2728, %v2816
      %v2820 = vmul.f32 %v2731, %v2816
      %v2821 = vmul.f32 %v2734, %v2816
      %v2822 = vmul.f32 %v2737, %v2816
      %v2823 = vmul.f32 %v2740, %v2816
      %v2824 = vmul.f32 %v2743, %v2816
      %v2825 = vmul.f32 %v2746, %v2816
      %v2826 = vmul.f32 %v2749, %v2816
      %v2827 = vmul.f32 %v2752, %v2816
      %v2828 = vmul.f32 %v2755, %v2816
      %v2829 = vmul.f32 %v2758, %v2816
      %v2830 = vmul.f32 %v2761, %v2816
      %v2831 = vmul.f32 %v2764, %v2816
      %v2832 = vmul.f32 %v2767, %v2816
      %v2833 = vmul.f32 %v2770, %v2816
      %v2834 = vmul.f32 %v2773, %v2816
      %v2835 = vmul.f32 %v2776, %v2816
      %v2836 = vmul.f32 %v2779, %v2816
      %v2837 = vmul.f32 %v2782, %v2816
      %v2838 = vmul.f32 %v2785, %v2816
      %v2839 = vmul.f32 %v2788, %v2816
      %v2840 = vmul.f32 %v2791, %v2816
      %v2841 = vmul.f32 %v2794, %v2816
      %v2842 = vmul.f32 %v2797, %v2816
      %v2843 = vmul.f32 %v2800, %v2816
      %v2844 = vmul.f32 %v2803, %v2816
      %v2845 = vmul.f32 %v2806, %v2816
      %v2846 = vmul.f32 %v2809, %v2816
      %v2847 = vmul.f32 %v2812, %v2816
      %v2848 = vmul.f32 %v2815, %v2816
      %v2849 = vmul.f32 %v2688, %v2688
      %v2850 = vmul.f32 %v2689, %v2689
      %v2851 = vmul.f32 %v2690, %v2690
      %v2852 = vmul.f32 %v2691, %v2691
      %v2853 = vmul.f32 %v2692, %v2692
      %v2854 = vmul.f32 %v2693, %v2693
      %v2855 = vmul.f32 %v2694, %v2694
      %v2856 = vmul.f32 %v2695, %v2695
      %v2857 = vmul.f32 %v2696, %v2696
      %v2858 = vmul.f32 %v2697, %v2697
      %v2859 = vmul.f32 %v2698, %v2698
      %v2860 = vmul.f32 %v2699, %v2699
      %v2861 = vmul.f32 %v2700, %v2700
      %v2862 = vmul.f32 %v2701, %v2701
      %v2863 = vmul.f32 %v2702, %v2702
      %v2864 = vmul.f32 %v2703, %v2703
      %v2865 = vmul.f32 %v2704, %v2704
      %v2866 = vmul.f32 %v2705, %v2705
      %v2867 = vmul.f32 %v2706, %v2706
      %v2868 = vmul.f32 %v2707, %v2707
      %v2869 = vmul.f32 %v2708, %v2708
      %v2870 = vmul.f32 %v2709, %v2709
      %v2871 = vmul.f32 %v2710, %v2710
      %v2872 = vmul.f32 %v2711, %v2711
      %v2873 = vmul.f32 %v2712, %v2712
      %v2874 = vmul.f32 %v2713, %v2713
      %v2875 = vmul.f32 %v2714, %v2714
      %v2876 = vmul.f32 %v2715, %v2715
      %v2877 = vmul.f32 %v2716, %v2716
      %v2878 = vmul.f32 %v2717, %v2717
      %v2879 = vmul.f32 %v2718, %v2718
      %v2880 = vmul.f32 %v2719, %v2719
      %v2881 = vsel %vm373, %v2849, 0.0
      %2882 = vadd.xlane.f32.xlu0 %v2881
      %v2883 = vpop.xlane.xlu0 %2882
      %v2884 = vsel %vm373, %v2850, 0.0
      %2885 = vadd.xlane.f32.xlu0 %v2884
      %v2886 = vpop.xlane.xlu0 %2885
      %v2887 = vsel %vm373, %v2851, 0.0
      %2888 = vadd.xlane.f32.xlu0 %v2887
      %v2889 = vpop.xlane.xlu0 %2888
      %v2890 = vsel %vm373, %v2852, 0.0
      %2891 = vadd.xlane.f32.xlu0 %v2890
      %v2892 = vpop.xlane.xlu0 %2891
      %v2893 = vsel %vm373, %v2853, 0.0
      %2894 = vadd.xlane.f32.xlu0 %v2893
      %v2895 = vpop.xlane.xlu0 %2894
      %v2896 = vsel %vm373, %v2854, 0.0
      %2897 = vadd.xlane.f32.xlu0 %v2896
      %v2898 = vpop.xlane.xlu0 %2897
      %v2899 = vsel %vm373, %v2855, 0.0
      %2900 = vadd.xlane.f32.xlu0 %v2899
      %v2901 = vpop.xlane.xlu0 %2900
      %v2902 = vsel %vm373, %v2856, 0.0
      %2903 = vadd.xlane.f32.xlu0 %v2902
      %v2904 = vpop.xlane.xlu0 %2903
      %v2905 = vsel %vm373, %v2857, 0.0
      %2906 = vadd.xlane.f32.xlu0 %v2905
      %v2907 = vpop.xlane.xlu0 %2906
      %v2908 = vsel %vm373, %v2858, 0.0
      %2909 = vadd.xlane.f32.xlu0 %v2908
      %v2910 = vpop.xlane.xlu0 %2909
      %v2911 = vsel %vm373, %v2859, 0.0
      %2912 = vadd.xlane.f32.xlu0 %v2911
      %v2913 = vpop.xlane.xlu0 %2912
      %v2914 = vsel %vm373, %v2860, 0.0
      %2915 = vadd.xlane.f32.xlu0 %v2914
      %v2916 = vpop.xlane.xlu0 %2915
      %v2917 = vsel %vm373, %v2861, 0.0
      %2918 = vadd.xlane.f32.xlu0 %v2917
      %v2919 = vpop.xlane.xlu0 %2918
      %v2920 = vsel %vm373, %v2862, 0.0
      %2921 = vadd.xlane.f32.xlu0 %v2920
      %v2922 = vpop.xlane.xlu0 %2921
      %v2923 = vsel %vm373, %v2863, 0.0
      %2924 = vadd.xlane.f32.xlu0 %v2923
      %v2925 = vpop.xlane.xlu0 %2924
      %v2926 = vsel %vm373, %v2864, 0.0
      %2927 = vadd.xlane.f32.xlu0 %v2926
      %v2928 = vpop.xlane.xlu0 %2927
      %v2929 = vsel %vm373, %v2865, 0.0
      %2930 = vadd.xlane.f32.xlu0 %v2929
      %v2931 = vpop.xlane.xlu0 %2930
      %v2932 = vsel %vm373, %v2866, 0.0
      %2933 = vadd.xlane.f32.xlu0 %v2932
      %v2934 = vpop.xlane.xlu0 %2933
      %v2935 = vsel %vm373, %v2867, 0.0
      %2936 = vadd.xlane.f32.xlu0 %v2935
      %v2937 = vpop.xlane.xlu0 %2936
      %v2938 = vsel %vm373, %v2868, 0.0
      %2939 = vadd.xlane.f32.xlu0 %v2938
      %v2940 = vpop.xlane.xlu0 %2939
      %v2941 = vsel %vm373, %v2869, 0.0
      %2942 = vadd.xlane.f32.xlu0 %v2941
      %v2943 = vpop.xlane.xlu0 %2942
      %v2944 = vsel %vm373, %v2870, 0.0
      %2945 = vadd.xlane.f32.xlu0 %v2944
      %v2946 = vpop.xlane.xlu0 %2945
      %v2947 = vsel %vm373, %v2871, 0.0
      %2948 = vadd.xlane.f32.xlu0 %v2947
      %v2949 = vpop.xlane.xlu0 %2948
      %v2950 = vsel %vm373, %v2872, 0.0
      %2951 = vadd.xlane.f32.xlu0 %v2950
      %v2952 = vpop.xlane.xlu0 %2951
      %v2953 = vsel %vm373, %v2873, 0.0
      %2954 = vadd.xlane.f32.xlu0 %v2953
      %v2955 = vpop.xlane.xlu0 %2954
      %v2956 = vsel %vm373, %v2874, 0.0
      %2957 = vadd.xlane.f32.xlu0 %v2956
      %v2958 = vpop.xlane.xlu0 %2957
      %v2959 = vsel %vm373, %v2875, 0.0
      %2960 = vadd.xlane.f32.xlu0 %v2959
      %v2961 = vpop.xlane.xlu0 %2960
      %v2962 = vsel %vm373, %v2876, 0.0
      %2963 = vadd.xlane.f32.xlu0 %v2962
      %v2964 = vpop.xlane.xlu0 %2963
      %v2965 = vsel %vm373, %v2877, 0.0
      %2966 = vadd.xlane.f32.xlu0 %v2965
      %v2967 = vpop.xlane.xlu0 %2966
      %v2968 = vsel %vm373, %v2878, 0.0
      %2969 = vadd.xlane.f32.xlu0 %v2968
      %v2970 = vpop.xlane.xlu0 %2969
      %v2971 = vsel %vm373, %v2879, 0.0
      %2972 = vadd.xlane.f32.xlu0 %v2971
      %v2973 = vpop.xlane.xlu0 %2972
      %v2974 = vsel %vm373, %v2880, 0.0
      %2975 = vadd.xlane.f32.xlu0 %v2974
      %v2976 = vpop.xlane.xlu0 %2975
      %v2977 = vmul.f32 %v2883, %v2816
      %v2978 = vmul.f32 %v2886, %v2816
      %v2979 = vmul.f32 %v2889, %v2816
      %v2980 = vmul.f32 %v2892, %v2816
      %v2981 = vmul.f32 %v2895, %v2816
      %v2982 = vmul.f32 %v2898, %v2816
      %v2983 = vmul.f32 %v2901, %v2816
      %v2984 = vmul.f32 %v2904, %v2816
      %v2985 = vmul.f32 %v2907, %v2816
      %v2986 = vmul.f32 %v2910, %v2816
      %v2987 = vmul.f32 %v2913, %v2816
      %v2988 = vmul.f32 %v2916, %v2816
      %v2989 = vmul.f32 %v2919, %v2816
      %v2990 = vmul.f32 %v2922, %v2816
      %v2991 = vmul.f32 %v2925, %v2816
      %v2992 = vmul.f32 %v2928, %v2816
      %v2993 = vmul.f32 %v2931, %v2816
      %v2994 = vmul.f32 %v2934, %v2816
      %v2995 = vmul.f32 %v2937, %v2816
      %v2996 = vmul.f32 %v2940, %v2816
      %v2997 = vmul.f32 %v2943, %v2816
      %v2998 = vmul.f32 %v2946, %v2816
      %v2999 = vmul.f32 %v2949, %v2816
      %v3000 = vmul.f32 %v2952, %v2816
      %v3001 = vmul.f32 %v2955, %v2816
      %v3002 = vmul.f32 %v2958, %v2816
      %v3003 = vmul.f32 %v2961, %v2816
      %v3004 = vmul.f32 %v2964, %v2816
      %v3005 = vmul.f32 %v2967, %v2816
      %v3006 = vmul.f32 %v2970, %v2816
      %v3007 = vmul.f32 %v2973, %v2816
      %v3008 = vmul.f32 %v2976, %v2816
      %v3009 = vmul.f32 %v2817, %v2817
      %v3010 = vmul.f32 %v2818, %v2818
      %v3011 = vmul.f32 %v2819, %v2819
      %v3012 = vmul.f32 %v2820, %v2820
      %v3013 = vmul.f32 %v2821, %v2821
      %v3014 = vmul.f32 %v2822, %v2822
      %v3015 = vmul.f32 %v2823, %v2823
      %v3016 = vmul.f32 %v2824, %v2824
      %v3017 = vmul.f32 %v2825, %v2825
      %v3018 = vmul.f32 %v2826, %v2826
      %v3019 = vmul.f32 %v2827, %v2827
      %v3020 = vmul.f32 %v2828, %v2828
      %v3021 = vmul.f32 %v2829, %v2829
      %v3022 = vmul.f32 %v2830, %v2830
      %v3023 = vmul.f32 %v2831, %v2831
      %v3024 = vmul.f32 %v2832, %v2832
      %v3025 = vmul.f32 %v2833, %v2833
      %v3026 = vmul.f32 %v2834, %v2834
      %v3027 = vmul.f32 %v2835, %v2835
      %v3028 = vmul.f32 %v2836, %v2836
      %v3029 = vmul.f32 %v2837, %v2837
      %v3030 = vmul.f32 %v2838, %v2838
      %v3031 = vmul.f32 %v2839, %v2839
      %v3032 = vmul.f32 %v2840, %v2840
      %v3033 = vmul.f32 %v2841, %v2841
      %v3034 = vmul.f32 %v2842, %v2842
      %v3035 = vmul.f32 %v2843, %v2843
      %v3036 = vmul.f32 %v2844, %v2844
      %v3037 = vmul.f32 %v2845, %v2845
      %v3038 = vmul.f32 %v2846, %v2846
      %v3039 = vmul.f32 %v2847, %v2847
      %v3040 = vmul.f32 %v2848, %v2848
      %v3041 = vsub.f32 %v2977, %v3009
      %v3042 = vsub.f32 %v2978, %v3010
      %v3043 = vsub.f32 %v2979, %v3011
      %v3044 = vsub.f32 %v2980, %v3012
      %v3045 = vsub.f32 %v2981, %v3013
      %v3046 = vsub.f32 %v2982, %v3014
      %v3047 = vsub.f32 %v2983, %v3015
      %v3048 = vsub.f32 %v2984, %v3016
      %v3049 = vsub.f32 %v2985, %v3017
      %v3050 = vsub.f32 %v2986, %v3018
      %v3051 = vsub.f32 %v2987, %v3019
      %v3052 = vsub.f32 %v2988, %v3020
      %v3053 = vsub.f32 %v2989, %v3021
      %v3054 = vsub.f32 %v2990, %v3022
      %v3055 = vsub.f32 %v2991, %v3023
      %v3056 = vsub.f32 %v2992, %v3024
      %v3057 = vsub.f32 %v2993, %v3025
      %v3058 = vsub.f32 %v2994, %v3026
      %v3059 = vsub.f32 %v2995, %v3027
      %v3060 = vsub.f32 %v2996, %v3028
      %v3061 = vsub.f32 %v2997, %v3029
      %v3062 = vsub.f32 %v2998, %v3030
      %v3063 = vsub.f32 %v2999, %v3031
      %v3064 = vsub.f32 %v3000, %v3032
      %v3065 = vsub.f32 %v3001, %v3033
      %v3066 = vsub.f32 %v3002, %v3034
      %v3067 = vsub.f32 %v3003, %v3035
      %v3068 = vsub.f32 %v3004, %v3036
      %v3069 = vsub.f32 %v3005, %v3037
      %v3070 = vsub.f32 %v3006, %v3038
      %v3071 = vsub.f32 %v3007, %v3039
      %v3072 = vsub.f32 %v3008, %v3040
      %v3073 = vmax.f32 %v3041, 0.0
      %v3074 = vmax.f32 %v3042, 0.0
      %v3075 = vmax.f32 %v3043, 0.0
      %v3076 = vmax.f32 %v3044, 0.0
      %v3077 = vmax.f32 %v3045, 0.0
      %v3078 = vmax.f32 %v3046, 0.0
      %v3079 = vmax.f32 %v3047, 0.0
      %v3080 = vmax.f32 %v3048, 0.0
      %v3081 = vmax.f32 %v3049, 0.0
      %v3082 = vmax.f32 %v3050, 0.0
      %v3083 = vmax.f32 %v3051, 0.0
      %v3084 = vmax.f32 %v3052, 0.0
      %v3085 = vmax.f32 %v3053, 0.0
      %v3086 = vmax.f32 %v3054, 0.0
      %v3087 = vmax.f32 %v3055, 0.0
      %v3088 = vmax.f32 %v3056, 0.0
      %v3089 = vmax.f32 %v3057, 0.0
      %v3090 = vmax.f32 %v3058, 0.0
      %v3091 = vmax.f32 %v3059, 0.0
      %v3092 = vmax.f32 %v3060, 0.0
      %v3093 = vmax.f32 %v3061, 0.0
      %v3094 = vmax.f32 %v3062, 0.0
      %v3095 = vmax.f32 %v3063, 0.0
      %v3096 = vmax.f32 %v3064, 0.0
      %v3097 = vmax.f32 %v3065, 0.0
      %v3098 = vmax.f32 %v3066, 0.0
      %v3099 = vmax.f32 %v3067, 0.0
      %v3100 = vmax.f32 %v3068, 0.0
      %v3101 = vmax.f32 %v3069, 0.0
      %v3102 = vmax.f32 %v3070, 0.0
      %v3103 = vmax.f32 %v3071, 0.0
      %v3104 = vmax.f32 %v3072, 0.0
      %v3105 = vsub.f32 %v2688, %v2817
      %v3106 = vsub.f32 %v2689, %v2818
      %v3107 = vsub.f32 %v2690, %v2819
      %v3108 = vsub.f32 %v2691, %v2820
      %v3109 = vsub.f32 %v2692, %v2821
      %v3110 = vsub.f32 %v2693, %v2822
      %v3111 = vsub.f32 %v2694, %v2823
      %v3112 = vsub.f32 %v2695, %v2824
      %v3113 = vsub.f32 %v2696, %v2825
      %v3114 = vsub.f32 %v2697, %v2826
      %v3115 = vsub.f32 %v2698, %v2827
      %v3116 = vsub.f32 %v2699, %v2828
      %v3117 = vsub.f32 %v2700, %v2829
      %v3118 = vsub.f32 %v2701, %v2830
      %v3119 = vsub.f32 %v2702, %v2831
      %v3120 = vsub.f32 %v2703, %v2832
      %v3121 = vsub.f32 %v2704, %v2833
      %v3122 = vsub.f32 %v2705, %v2834
      %v3123 = vsub.f32 %v2706, %v2835
      %v3124 = vsub.f32 %v2707, %v2836
      %v3125 = vsub.f32 %v2708, %v2837
      %v3126 = vsub.f32 %v2709, %v2838
      %v3127 = vsub.f32 %v2710, %v2839
      %v3128 = vsub.f32 %v2711, %v2840
      %v3129 = vsub.f32 %v2712, %v2841
      %v3130 = vsub.f32 %v2713, %v2842
      %v3131 = vsub.f32 %v2714, %v2843
      %v3132 = vsub.f32 %v2715, %v2844
      %v3133 = vsub.f32 %v2716, %v2845
      %v3134 = vsub.f32 %v2717, %v2846
      %v3135 = vsub.f32 %v2718, %v2847
      %v3136 = vsub.f32 %v2719, %v2848
      %v3137 = vadd.f32 %v3073, 1e-05
      %v3138 = vadd.f32 %v3074, 1e-05
      %v3139 = vadd.f32 %v3075, 1e-05
      %v3140 = vadd.f32 %v3076, 1e-05
      %v3141 = vadd.f32 %v3077, 1e-05
      %v3142 = vadd.f32 %v3078, 1e-05
      %v3143 = vadd.f32 %v3079, 1e-05
      %v3144 = vadd.f32 %v3080, 1e-05
      %v3145 = vadd.f32 %v3081, 1e-05
      %v3146 = vadd.f32 %v3082, 1e-05
      %v3147 = vadd.f32 %v3083, 1e-05
      %v3148 = vadd.f32 %v3084, 1e-05
      %v3149 = vadd.f32 %v3085, 1e-05
      %v3150 = vadd.f32 %v3086, 1e-05
      %v3151 = vadd.f32 %v3087, 1e-05
      %v3152 = vadd.f32 %v3088, 1e-05
      %v3153 = vadd.f32 %v3089, 1e-05
      %v3154 = vadd.f32 %v3090, 1e-05
      %v3155 = vadd.f32 %v3091, 1e-05
      %v3156 = vadd.f32 %v3092, 1e-05
      %v3157 = vadd.f32 %v3093, 1e-05
      %v3158 = vadd.f32 %v3094, 1e-05
      %v3159 = vadd.f32 %v3095, 1e-05
      %v3160 = vadd.f32 %v3096, 1e-05
      %v3161 = vadd.f32 %v3097, 1e-05
      %v3162 = vadd.f32 %v3098, 1e-05
      %v3163 = vadd.f32 %v3099, 1e-05
      %v3164 = vadd.f32 %v3100, 1e-05
      %v3165 = vadd.f32 %v3101, 1e-05
      %v3166 = vadd.f32 %v3102, 1e-05
      %v3167 = vadd.f32 %v3103, 1e-05
      %v3168 = vadd.f32 %v3104, 1e-05
      %v3169 = vrsqrt.pop %v3137
      %v3170 = vrsqrt.pop %v3138
      %v3171 = vrsqrt.pop %v3139
      %v3172 = vrsqrt.pop %v3140
      %v3173 = vrsqrt.pop %v3141
      %v3174 = vrsqrt.pop %v3142
      %v3175 = vrsqrt.pop %v3143
      %v3176 = vrsqrt.pop %v3144
      %v3177 = vrsqrt.pop %v3145
      %v3178 = vrsqrt.pop %v3146
      %v3179 = vrsqrt.pop %v3147
      %v3180 = vrsqrt.pop %v3148
      %v3181 = vrsqrt.pop %v3149
      %v3182 = vrsqrt.pop %v3150
      %v3183 = vrsqrt.pop %v3151
      %v3184 = vrsqrt.pop %v3152
      %v3185 = vrsqrt.pop %v3153
      %v3186 = vrsqrt.pop %v3154
      %v3187 = vrsqrt.pop %v3155
      %v3188 = vrsqrt.pop %v3156
      %v3189 = vrsqrt.pop %v3157
      %v3190 = vrsqrt.pop %v3158
      %v3191 = vrsqrt.pop %v3159
      %v3192 = vrsqrt.pop %v3160
      %v3193 = vrsqrt.pop %v3161
      %v3194 = vrsqrt.pop %v3162
      %v3195 = vrsqrt.pop %v3163
      %v3196 = vrsqrt.pop %v3164
      %v3197 = vrsqrt.pop %v3165
      %v3198 = vrsqrt.pop %v3166
      %v3199 = vrsqrt.pop %v3167
      %v3200 = vrsqrt.pop %v3168
      %v3201 = vmul.f32 %v3105, %v3169
      %v3202 = vmul.f32 %v3106, %v3170
      %v3203 = vmul.f32 %v3107, %v3171
      %v3204 = vmul.f32 %v3108, %v3172
      %v3205 = vmul.f32 %v3109, %v3173
      %v3206 = vmul.f32 %v3110, %v3174
      %v3207 = vmul.f32 %v3111, %v3175
      %v3208 = vmul.f32 %v3112, %v3176
      %v3209 = vmul.f32 %v3113, %v3177
      %v3210 = vmul.f32 %v3114, %v3178
      %v3211 = vmul.f32 %v3115, %v3179
      %v3212 = vmul.f32 %v3116, %v3180
      %v3213 = vmul.f32 %v3117, %v3181
      %v3214 = vmul.f32 %v3118, %v3182
      %v3215 = vmul.f32 %v3119, %v3183
      %v3216 = vmul.f32 %v3120, %v3184
      %v3217 = vmul.f32 %v3121, %v3185
      %v3218 = vmul.f32 %v3122, %v3186
      %v3219 = vmul.f32 %v3123, %v3187
      %v3220 = vmul.f32 %v3124, %v3188
      %v3221 = vmul.f32 %v3125, %v3189
      %v3222 = vmul.f32 %v3126, %v3190
      %v3223 = vmul.f32 %v3127, %v3191
      %v3224 = vmul.f32 %v3128, %v3192
      %v3225 = vmul.f32 %v3129, %v3193
      %v3226 = vmul.f32 %v3130, %v3194
      %v3227 = vmul.f32 %v3131, %v3195
      %v3228 = vmul.f32 %v3132, %v3196
      %v3229 = vmul.f32 %v3133, %v3197
      %v3230 = vmul.f32 %v3134, %v3198
      %v3231 = vmul.f32 %v3135, %v3199
      %v3232 = vmul.f32 %v3136, %v3200
      %v3234 = vlaneseq
      %v3235 = vshrl.u32 %v3234, 7
      %v3236 = vsub.s32 0, %v3235
      %v3237 = vrot.slane %v344, %v3236
      %v3239 = vmul.f32 %v3201, %v3237
      %v3240 = vmul.f32 %v3202, %v3237
      %v3241 = vmul.f32 %v3203, %v3237
      %v3242 = vmul.f32 %v3204, %v3237
      %v3243 = vmul.f32 %v3205, %v3237
      %v3244 = vmul.f32 %v3206, %v3237
      %v3245 = vmul.f32 %v3207, %v3237
      %v3246 = vmul.f32 %v3208, %v3237
      %v3247 = vmul.f32 %v3209, %v3237
      %v3248 = vmul.f32 %v3210, %v3237
      %v3249 = vmul.f32 %v3211, %v3237
      %v3250 = vmul.f32 %v3212, %v3237
      %v3251 = vmul.f32 %v3213, %v3237
      %v3252 = vmul.f32 %v3214, %v3237
      %v3253 = vmul.f32 %v3215, %v3237
      %v3254 = vmul.f32 %v3216, %v3237
      %v3255 = vmul.f32 %v3217, %v3237
      %v3256 = vmul.f32 %v3218, %v3237
      %v3257 = vmul.f32 %v3219, %v3237
      %v3258 = vmul.f32 %v3220, %v3237
      %v3259 = vmul.f32 %v3221, %v3237
      %v3260 = vmul.f32 %v3222, %v3237
      %v3261 = vmul.f32 %v3223, %v3237
      %v3262 = vmul.f32 %v3224, %v3237
      %v3263 = vmul.f32 %v3225, %v3237
      %v3264 = vmul.f32 %v3226, %v3237
      %v3265 = vmul.f32 %v3227, %v3237
      %v3266 = vmul.f32 %v3228, %v3237
      %v3267 = vmul.f32 %v3229, %v3237
      %v3268 = vmul.f32 %v3230, %v3237
      %v3269 = vmul.f32 %v3231, %v3237
      %v3270 = vmul.f32 %v3232, %v3237
      %v3272 = vlaneseq
      %v3273 = vshrl.u32 %v3272, 7
      %v3274 = vsub.s32 0, %v3273
      %v3275 = vrot.slane %v345, %v3274
      %v3277 = vadd.f32 %v3239, %v3275
      %v3278 = vadd.f32 %v3240, %v3275
      %v3279 = vadd.f32 %v3241, %v3275
      %v3280 = vadd.f32 %v3242, %v3275
      %v3281 = vadd.f32 %v3243, %v3275
      %v3282 = vadd.f32 %v3244, %v3275
      %v3283 = vadd.f32 %v3245, %v3275
      %v3284 = vadd.f32 %v3246, %v3275
      %v3285 = vadd.f32 %v3247, %v3275
      %v3286 = vadd.f32 %v3248, %v3275
      %v3287 = vadd.f32 %v3249, %v3275
      %v3288 = vadd.f32 %v3250, %v3275
      %v3289 = vadd.f32 %v3251, %v3275
      %v3290 = vadd.f32 %v3252, %v3275
      %v3291 = vadd.f32 %v3253, %v3275
      %v3292 = vadd.f32 %v3254, %v3275
      %v3293 = vadd.f32 %v3255, %v3275
      %v3294 = vadd.f32 %v3256, %v3275
      %v3295 = vadd.f32 %v3257, %v3275
      %v3296 = vadd.f32 %v3258, %v3275
      %v3297 = vadd.f32 %v3259, %v3275
      %v3298 = vadd.f32 %v3260, %v3275
      %v3299 = vadd.f32 %v3261, %v3275
      %v3300 = vadd.f32 %v3262, %v3275
      %v3301 = vadd.f32 %v3263, %v3275
      %v3302 = vadd.f32 %v3264, %v3275
      %v3303 = vadd.f32 %v3265, %v3275
      %v3304 = vadd.f32 %v3266, %v3275
      %v3305 = vadd.f32 %v3267, %v3275
      %v3306 = vadd.f32 %v3268, %v3275
      %v3307 = vadd.f32 %v3269, %v3275
      %v3308 = vadd.f32 %v3270, %v3275
      %v3309 = vpack.c.bf16 %v3278, %v3277
      %v3310 = vpack.c.bf16 %v3280, %v3279
      %v3311 = vpack.c.bf16 %v3282, %v3281
      %v3312 = vpack.c.bf16 %v3284, %v3283
      %v3313 = vpack.c.bf16 %v3286, %v3285
      %v3314 = vpack.c.bf16 %v3288, %v3287
      %v3315 = vpack.c.bf16 %v3290, %v3289
      %v3316 = vpack.c.bf16 %v3292, %v3291
      %v3317 = vpack.c.bf16 %v3294, %v3293
      %v3318 = vpack.c.bf16 %v3296, %v3295
      %v3319 = vpack.c.bf16 %v3298, %v3297
      %v3320 = vpack.c.bf16 %v3300, %v3299
      %v3321 = vpack.c.bf16 %v3302, %v3301
      %v3322 = vpack.c.bf16 %v3304, %v3303
      %v3323 = vpack.c.bf16 %v3306, %v3305
      %v3324 = vpack.c.bf16 %v3308, %v3307
      %v3326 = vsel %vm373, %v3309, 0
      %v3329 = vsel %vm373, %v3310, 0
      %v3332 = vsel %vm373, %v3311, 0
      %v3335 = vsel %vm373, %v3312, 0
      %v3338 = vsel %vm373, %v3313, 0
      %v3341 = vsel %vm373, %v3314, 0
      %v3344 = vsel %vm373, %v3315, 0
      %v3347 = vsel %vm373, %v3316, 0
      %v3350 = vsel %vm373, %v3317, 0
      %v3353 = vsel %vm373, %v3318, 0
      %v3356 = vsel %vm373, %v3319, 0
      %v3359 = vsel %vm373, %v3320, 0
      %v3362 = vsel %vm373, %v3321, 0
      %v3365 = vsel %vm373, %v3322, 0
      %v3368 = vsel %vm373, %v3323, 0
      %v3371 = vsel %vm373, %v3324, 0
      %vm3373 = vcmask 1041408
      %v3375 = vsel %vm3373, %v346, 0
      %3377 = vmatprep.subr.bf16.mxu0 0
      %3378 = vmatpush1.bf16.msra.mxu0 %v3375
      %3379 = vmatprep.subr.bf16.mxu0 0
      %3380 = vmatpush1.bf16.msra.mxu0 0
      %3381 = vmatprep.subr.bf16.mxu0 0
      %3382 = vmatpush1.bf16.msra.mxu0 0
      %3383 = vmatprep.subr.bf16.mxu0 0
      %3384 = vmatpush1.bf16.msra.mxu0 0
      %3385 = vmatprep.subr.bf16.mxu0 0
      %3386 = vmatpush1.bf16.msra.mxu0 0
      %3387 = vmatprep.subr.bf16.mxu0 0
      %3388 = vmatpush1.bf16.msra.mxu0 0
      %3389 = vmatprep.subr.bf16.mxu0 0
      %3390 = vmatpush1.bf16.msra.mxu0 0
      %3391 = vmatprep.subr.bf16.mxu0 0
      %3392 = vmatpush1.bf16.msra.mxu0 0
      %3393 = vmatprep.subr.bf16.mxu0 0
      %3394 = vmatpush1.bf16.msra.mxu0 0
      %3395 = vmatprep.subr.bf16.mxu0 0
      %3396 = vmatpush1.bf16.msra.mxu0 0
      %3397 = vmatprep.subr.bf16.mxu0 0
      %3398 = vmatpush1.bf16.msra.mxu0 0
      %3399 = vmatprep.subr.bf16.mxu0 0
      %3400 = vmatpush1.bf16.msra.mxu0 0
      %3401 = vmatprep.subr.bf16.mxu0 0
      %3402 = vmatpush1.bf16.msra.mxu0 0
      %3403 = vmatprep.subr.bf16.mxu0 0
      %3404 = vmatpush1.bf16.msra.mxu0 0
      %3405 = vmatprep.subr.bf16.mxu0 0
      %3406 = vmatpush1.bf16.msra.mxu0 0
      %3407 = vmatprep.subr.bf16.mxu0 0
      %3408 = vmatpush1.bf16.msra.mxu0 0
      %3409 = vmatprep.mubr.bf16.mxu0 0
      %3410 = vmatmul.mubr.bf16.gmra.mrb[0].mxu0 %v3326
      %v3411 = vpop.f32.mrb[0].mxu0
      %v3412 = vadd.f32 %v361, %v3411
      %v3413 = vpop.f32.mrb[0].mxu0
      %v3414 = vpop.f32.mrb[0].mxu0
      %v3415 = vadd.f32 %v361, %v3414
      %v3416 = vpop.f32.mrb[0].mxu0
      %3417 = vmatprep.mubr.bf16.mxu0 0
      %3418 = vmatmul.mubr.bf16.gmra.mrb[0].mxu0 %v3329
      %v3419 = vpop.f32.mrb[0].mxu0
      %v3420 = vadd.f32 %v361, %v3419
      %v3421 = vpop.f32.mrb[0].mxu0
      %v3422 = vpop.f32.mrb[0].mxu0
      %v3423 = vadd.f32 %v361, %v3422
      %v3424 = vpop.f32.mrb[0].mxu0
      %3425 = vmatprep.mubr.bf16.mxu0 0
      %3426 = vmatmul.mubr.bf16.gmra.mrb[0].mxu0 %v3332
      %v3427 = vpop.f32.mrb[0].mxu0
      %v3428 = vadd.f32 %v361, %v3427
      %v3429 = vpop.f32.mrb[0].mxu0
      %v3430 = vpop.f32.mrb[0].mxu0
      %v3431 = vadd.f32 %v361, %v3430
      %v3432 = vpop.f32.mrb[0].mxu0
      %3433 = vmatprep.mubr.bf16.mxu0 0
      %3434 = vmatmul.mubr.bf16.gmra.mrb[0].mxu0 %v3335
      %v3435 = vpop.f32.mrb[0].mxu0
      %v3436 = vadd.f32 %v361, %v3435
      %v3437 = vpop.f32.mrb[0].mxu0
      %v3438 = vpop.f32.mrb[0].mxu0
      %v3439 = vadd.f32 %v361, %v3438
      %v3440 = vpop.f32.mrb[0].mxu0
      %3441 = vmatprep.mubr.bf16.mxu0 0
      %3442 = vmatmul.mubr.bf16.gmra.mrb[0].mxu0 %v3338
      %v3443 = vpop.f32.mrb[0].mxu0
      %v3444 = vadd.f32 %v361, %v3443
      %v3445 = vpop.f32.mrb[0].mxu0
      %v3446 = vpop.f32.mrb[0].mxu0
      %v3447 = vadd.f32 %v361, %v3446
      %v3448 = vpop.f32.mrb[0].mxu0
      %3449 = vmatprep.mubr.bf16.mxu0 0
      %3450 = vmatmul.mubr.bf16.gmra.mrb[0].mxu0 %v3341
      %v3451 = vpop.f32.mrb[0].mxu0
      %v3452 = vadd.f32 %v361, %v3451
      %v3453 = vpop.f32.mrb[0].mxu0
      %v3454 = vpop.f32.mrb[0].mxu0
      %v3455 = vadd.f32 %v361, %v3454
      %v3456 = vpop.f32.mrb[0].mxu0
      %3457 = vmatprep.mubr.bf16.mxu0 0
      %3458 = vmatmul.mubr.bf16.gmra.mrb[0].mxu0 %v3344
      %v3459 = vpop.f32.mrb[0].mxu0
      %v3460 = vadd.f32 %v361, %v3459
      %v3461 = vpop.f32.mrb[0].mxu0
      %v3462 = vpop.f32.mrb[0].mxu0
      %v3463 = vadd.f32 %v361, %v3462
      %v3464 = vpop.f32.mrb[0].mxu0
      %3465 = vmatprep.mubr.bf16.mxu0 0
      %3466 = vmatmul.mubr.bf16.gmra.mrb[0].mxu0 %v3347
      %v3467 = vpop.f32.mrb[0].mxu0
      %v3468 = vadd.f32 %v361, %v3467
      %v3469 = vpop.f32.mrb[0].mxu0
      %v3470 = vpop.f32.mrb[0].mxu0
      %v3471 = vadd.f32 %v361, %v3470
      %v3472 = vpop.f32.mrb[0].mxu0
      %3473 = vmatprep.mubr.bf16.mxu0 0
      %3474 = vmatmul.mubr.bf16.gmra.mrb[0].mxu0 %v3350
      %v3475 = vpop.f32.mrb[0].mxu0
      %v3476 = vadd.f32 %v361, %v3475
      %v3477 = vpop.f32.mrb[0].mxu0
      %v3478 = vpop.f32.mrb[0].mxu0
      %v3479 = vadd.f32 %v361, %v3478
      %v3480 = vpop.f32.mrb[0].mxu0
      %3481 = vmatprep.mubr.bf16.mxu0 0
      %3482 = vmatmul.mubr.bf16.gmra.mrb[0].mxu0 %v3353
      %v3483 = vpop.f32.mrb[0].mxu0
      %v3484 = vadd.f32 %v361, %v3483
      %v3485 = vpop.f32.mrb[0].mxu0
      %v3486 = vpop.f32.mrb[0].mxu0
      %v3487 = vadd.f32 %v361, %v3486
      %v3488 = vpop.f32.mrb[0].mxu0
      %3489 = vmatprep.mubr.bf16.mxu0 0
      %3490 = vmatmul.mubr.bf16.gmra.mrb[0].mxu0 %v3356
      %v3491 = vpop.f32.mrb[0].mxu0
      %v3492 = vadd.f32 %v361, %v3491
      %v3493 = vpop.f32.mrb[0].mxu0
      %v3494 = vpop.f32.mrb[0].mxu0
      %v3495 = vadd.f32 %v361, %v3494
      %v3496 = vpop.f32.mrb[0].mxu0
      %3497 = vmatprep.mubr.bf16.mxu0 0
      %3498 = vmatmul.mubr.bf16.gmra.mrb[0].mxu0 %v3359
      %v3499 = vpop.f32.mrb[0].mxu0
      %v3500 = vadd.f32 %v361, %v3499
      %v3501 = vpop.f32.mrb[0].mxu0
      %v3502 = vpop.f32.mrb[0].mxu0
      %v3503 = vadd.f32 %v361, %v3502
      %v3504 = vpop.f32.mrb[0].mxu0
      %3505 = vmatprep.mubr.bf16.mxu0 0
      %3506 = vmatmul.mubr.bf16.gmra.mrb[0].mxu0 %v3362
      %v3507 = vpop.f32.mrb[0].mxu0
      %v3508 = vadd.f32 %v361, %v3507
      %v3509 = vpop.f32.mrb[0].mxu0
      %v3510 = vpop.f32.mrb[0].mxu0
      %v3511 = vadd.f32 %v361, %v3510
      %v3512 = vpop.f32.mrb[0].mxu0
      %3513 = vmatprep.mubr.bf16.mxu0 0
      %3514 = vmatmul.mubr.bf16.gmra.mrb[0].mxu0 %v3365
      %v3515 = vpop.f32.mrb[0].mxu0
      %v3516 = vadd.f32 %v361, %v3515
      %v3517 = vpop.f32.mrb[0].mxu0
      %v3518 = vpop.f32.mrb[0].mxu0
      %v3519 = vadd.f32 %v361, %v3518
      %v3520 = vpop.f32.mrb[0].mxu0
      %3521 = vmatprep.mubr.bf16.mxu0 0
      %3522 = vmatmul.mubr.bf16.gmra.mrb[0].mxu0 %v3368
      %v3523 = vpop.f32.mrb[0].mxu0
      %v3524 = vadd.f32 %v361, %v3523
      %v3525 = vpop.f32.mrb[0].mxu0
      %v3526 = vpop.f32.mrb[0].mxu0
      %v3527 = vadd.f32 %v361, %v3526
      %v3528 = vpop.f32.mrb[0].mxu0
      %3529 = vmatprep.mubr.bf16.mxu0 0
      %3530 = vmatmul.mubr.bf16.gmra.mrb[0].mxu0 %v3371
      %v3531 = vpop.f32.mrb[0].mxu0
      %v3532 = vadd.f32 %v361, %v3531
      %v3533 = vpop.f32.mrb[0].mxu0
      %v3534 = vpop.f32.mrb[0].mxu0
      %v3535 = vadd.f32 %v361, %v3534
      %v3536 = vpop.f32.mrb[0].mxu0
      %3537 = vdwg.mxu0
      %v3538 = vmul.f32 %v3412, 0.5
      %v3539 = vmul.f32 %v3415, 0.5
      %v3540 = vmul.f32 %v3420, 0.5
      %v3541 = vmul.f32 %v3423, 0.5
      %v3542 = vmul.f32 %v3428, 0.5
      %v3543 = vmul.f32 %v3431, 0.5
      %v3544 = vmul.f32 %v3436, 0.5
      %v3545 = vmul.f32 %v3439, 0.5
      %v3546 = vmul.f32 %v3444, 0.5
      %v3547 = vmul.f32 %v3447, 0.5
      %v3548 = vmul.f32 %v3452, 0.5
      %v3549 = vmul.f32 %v3455, 0.5
      %v3550 = vmul.f32 %v3460, 0.5
      %v3551 = vmul.f32 %v3463, 0.5
      %v3552 = vmul.f32 %v3468, 0.5
      %v3553 = vmul.f32 %v3471, 0.5
      %v3554 = vmul.f32 %v3476, 0.5
      %v3555 = vmul.f32 %v3479, 0.5
      %v3556 = vmul.f32 %v3484, 0.5
      %v3557 = vmul.f32 %v3487, 0.5
      %v3558 = vmul.f32 %v3492, 0.5
      %v3559 = vmul.f32 %v3495, 0.5
      %v3560 = vmul.f32 %v3500, 0.5
      %v3561 = vmul.f32 %v3503, 0.5
      %v3562 = vmul.f32 %v3508, 0.5
      %v3563 = vmul.f32 %v3511, 0.5
      %v3564 = vmul.f32 %v3516, 0.5
      %v3565 = vmul.f32 %v3519, 0.5
      %v3566 = vmul.f32 %v3524, 0.5
      %v3567 = vmul.f32 %v3527, 0.5
      %v3568 = vmul.f32 %v3532, 0.5
      %v3569 = vmul.f32 %v3535, 0.5
      %v3570 = vmul.f32 %v3412, 0.70710677
      %v3571 = vmul.f32 %v3415, 0.70710677
      %v3572 = vmul.f32 %v3420, 0.70710677
      %v3573 = vmul.f32 %v3423, 0.70710677
      %v3574 = vmul.f32 %v3428, 0.70710677
      %v3575 = vmul.f32 %v3431, 0.70710677
      %v3576 = vmul.f32 %v3436, 0.70710677
      %v3577 = vmul.f32 %v3439, 0.70710677
      %v3578 = vmul.f32 %v3444, 0.70710677
      %v3579 = vmul.f32 %v3447, 0.70710677
      %v3580 = vmul.f32 %v3452, 0.70710677
      %v3581 = vmul.f32 %v3455, 0.70710677
      %v3582 = vmul.f32 %v3460, 0.70710677
      %v3583 = vmul.f32 %v3463, 0.70710677
      %v3584 = vmul.f32 %v3468, 0.70710677
      %v3585 = vmul.f32 %v3471, 0.70710677
      %v3586 = vmul.f32 %v3476, 0.70710677
      %v3587 = vmul.f32 %v3479, 0.70710677
      %v3588 = vmul.f32 %v3484, 0.70710677
      %v3589 = vmul.f32 %v3487, 0.70710677
      %v3590 = vmul.f32 %v3492, 0.70710677
      %v3591 = vmul.f32 %v3495, 0.70710677
      %v3592 = vmul.f32 %v3500, 0.70710677
      %v3593 = vmul.f32 %v3503, 0.70710677
      %v3594 = vmul.f32 %v3508, 0.70710677
      %v3595 = vmul.f32 %v3511, 0.70710677
      %v3596 = vmul.f32 %v3516, 0.70710677
      %v3597 = vmul.f32 %v3519, 0.70710677
      %v3598 = vmul.f32 %v3524, 0.70710677
      %v3599 = vmul.f32 %v3527, 0.70710677
      %v3600 = vmul.f32 %v3532, 0.70710677
      %v3601 = vmul.f32 %v3535, 0.70710677
      %v3602 = verf.f32.pop %v3570
      %v3603 = verf.f32.pop %v3571
      %v3604 = verf.f32.pop %v3572
      %v3605 = verf.f32.pop %v3573
      %v3606 = verf.f32.pop %v3574
      %v3607 = verf.f32.pop %v3575
      %v3608 = verf.f32.pop %v3576
      %v3609 = verf.f32.pop %v3577
      %v3610 = verf.f32.pop %v3578
      %v3611 = verf.f32.pop %v3579
      %v3612 = verf.f32.pop %v3580
      %v3613 = verf.f32.pop %v3581
      %v3614 = verf.f32.pop %v3582
      %v3615 = verf.f32.pop %v3583
      %v3616 = verf.f32.pop %v3584
      %v3617 = verf.f32.pop %v3585
      %v3618 = verf.f32.pop %v3586
      %v3619 = verf.f32.pop %v3587
      %v3620 = verf.f32.pop %v3588
      %v3621 = verf.f32.pop %v3589
      %v3622 = verf.f32.pop %v3590
      %v3623 = verf.f32.pop %v3591
      %v3624 = verf.f32.pop %v3592
      %v3625 = verf.f32.pop %v3593
      %v3626 = verf.f32.pop %v3594
      %v3627 = verf.f32.pop %v3595
      %v3628 = verf.f32.pop %v3596
      %v3629 = verf.f32.pop %v3597
      %v3630 = verf.f32.pop %v3598
      %v3631 = verf.f32.pop %v3599
      %v3632 = verf.f32.pop %v3600
      %v3633 = verf.f32.pop %v3601
      %v3634 = vadd.f32 %v3602, 1.0
      %v3635 = vadd.f32 %v3603, 1.0
      %v3636 = vadd.f32 %v3604, 1.0
      %v3637 = vadd.f32 %v3605, 1.0
      %v3638 = vadd.f32 %v3606, 1.0
      %v3639 = vadd.f32 %v3607, 1.0
      %v3640 = vadd.f32 %v3608, 1.0
      %v3641 = vadd.f32 %v3609, 1.0
      %v3642 = vadd.f32 %v3610, 1.0
      %v3643 = vadd.f32 %v3611, 1.0
      %v3644 = vadd.f32 %v3612, 1.0
      %v3645 = vadd.f32 %v3613, 1.0
      %v3646 = vadd.f32 %v3614, 1.0
      %v3647 = vadd.f32 %v3615, 1.0
      %v3648 = vadd.f32 %v3616, 1.0
      %v3649 = vadd.f32 %v3617, 1.0
      %v3650 = vadd.f32 %v3618, 1.0
      %v3651 = vadd.f32 %v3619, 1.0
      %v3652 = vadd.f32 %v3620, 1.0
      %v3653 = vadd.f32 %v3621, 1.0
      %v3654 = vadd.f32 %v3622, 1.0
      %v3655 = vadd.f32 %v3623, 1.0
      %v3656 = vadd.f32 %v3624, 1.0
      %v3657 = vadd.f32 %v3625, 1.0
      %v3658 = vadd.f32 %v3626, 1.0
      %v3659 = vadd.f32 %v3627, 1.0
      %v3660 = vadd.f32 %v3628, 1.0
      %v3661 = vadd.f32 %v3629, 1.0
      %v3662 = vadd.f32 %v3630, 1.0
      %v3663 = vadd.f32 %v3631, 1.0
      %v3664 = vadd.f32 %v3632, 1.0
      %v3665 = vadd.f32 %v3633, 1.0
      %v3666 = vmul.f32 %v3538, %v3634
      %v3667 = vmul.f32 %v3539, %v3635
      %v3668 = vmul.f32 %v3540, %v3636
      %v3669 = vmul.f32 %v3541, %v3637
      %v3670 = vmul.f32 %v3542, %v3638
      %v3671 = vmul.f32 %v3543, %v3639
      %v3672 = vmul.f32 %v3544, %v3640
      %v3673 = vmul.f32 %v3545, %v3641
      %v3674 = vmul.f32 %v3546, %v3642
      %v3675 = vmul.f32 %v3547, %v3643
      %v3676 = vmul.f32 %v3548, %v3644
      %v3677 = vmul.f32 %v3549, %v3645
      %v3678 = vmul.f32 %v3550, %v3646
      %v3679 = vmul.f32 %v3551, %v3647
      %v3680 = vmul.f32 %v3552, %v3648
      %v3681 = vmul.f32 %v3553, %v3649
      %v3682 = vmul.f32 %v3554, %v3650
      %v3683 = vmul.f32 %v3555, %v3651
      %v3684 = vmul.f32 %v3556, %v3652
      %v3685 = vmul.f32 %v3557, %v3653
      %v3686 = vmul.f32 %v3558, %v3654
      %v3687 = vmul.f32 %v3559, %v3655
      %v3688 = vmul.f32 %v3560, %v3656
      %v3689 = vmul.f32 %v3561, %v3657
      %v3690 = vmul.f32 %v3562, %v3658
      %v3691 = vmul.f32 %v3563, %v3659
      %v3692 = vmul.f32 %v3564, %v3660
      %v3693 = vmul.f32 %v3565, %v3661
      %v3694 = vmul.f32 %v3566, %v3662
      %v3695 = vmul.f32 %v3567, %v3663
      %v3696 = vmul.f32 %v3568, %v3664
      %v3697 = vmul.f32 %v3569, %v3665
      %v3698 = vpack.c.bf16 %v3667, %v3666
      %v3699 = vpack.c.bf16 %v3669, %v3668
      %v3700 = vpack.c.bf16 %v3671, %v3670
      %v3701 = vpack.c.bf16 %v3673, %v3672
      %v3702 = vpack.c.bf16 %v3675, %v3674
      %v3703 = vpack.c.bf16 %v3677, %v3676
      %v3704 = vpack.c.bf16 %v3679, %v3678
      %v3705 = vpack.c.bf16 %v3681, %v3680
      %v3706 = vpack.c.bf16 %v3683, %v3682
      %v3707 = vpack.c.bf16 %v3685, %v3684
      %v3708 = vpack.c.bf16 %v3687, %v3686
      %v3709 = vpack.c.bf16 %v3689, %v3688
      %v3710 = vpack.c.bf16 %v3691, %v3690
      %v3711 = vpack.c.bf16 %v3693, %v3692
      %v3712 = vpack.c.bf16 %v3695, %v3694
      %v3713 = vpack.c.bf16 %v3697, %v3696
      %v3716 = vunpack.c.l.b16 %v347
      %v3717 = vunpack.c.l.b16 %v348
      %v3718 = vpack.c.b16 %v3717, %v3716
      %vm3720 = vcmask 130048
      %v3722 = vsel %vm3720, %v3698, 0
      %v3725 = vsel %vm3720, %v3699, 0
      %v3728 = vsel %vm3720, %v3700, 0
      %v3731 = vsel %vm3720, %v3701, 0
      %v3734 = vsel %vm3720, %v3702, 0
      %v3737 = vsel %vm3720, %v3703, 0
      %v3740 = vsel %vm3720, %v3704, 0
      %v3743 = vsel %vm3720, %v3705, 0
      %v3746 = vsel %vm3720, %v3706, 0
      %v3749 = vsel %vm3720, %v3707, 0
      %v3752 = vsel %vm3720, %v3708, 0
      %v3755 = vsel %vm3720, %v3709, 0
      %v3758 = vsel %vm3720, %v3710, 0
      %v3761 = vsel %vm3720, %v3711, 0
      %v3764 = vsel %vm3720, %v3712, 0
      %v3767 = vsel %vm3720, %v3713, 0
      %3769 = vmatprep.subr.bf16.mxu0 0
      %3770 = vmatpush1.bf16.msra.mxu0 %v3718
      %3771 = vmatprep.subr.bf16.mxu0 0
      %3772 = vmatpush1.bf16.msra.mxu0 0
      %3773 = vmatprep.subr.bf16.mxu0 0
      %3774 = vmatpush1.bf16.msra.mxu0 0
      %3775 = vmatprep.subr.bf16.mxu0 0
      %3776 = vmatpush1.bf16.msra.mxu0 0
      %3777 = vmatprep.subr.bf16.mxu0 0
      %3778 = vmatpush1.bf16.msra.mxu0 0
      %3779 = vmatprep.subr.bf16.mxu0 0
      %3780 = vmatpush1.bf16.msra.mxu0 0
      %3781 = vmatprep.subr.bf16.mxu0 0
      %3782 = vmatpush1.bf16.msra.mxu0 0
      %3783 = vmatprep.subr.bf16.mxu0 0
      %3784 = vmatpush1.bf16.msra.mxu0 0
      %3785 = vmatprep.subr.bf16.mxu0 0
      %3786 = vmatpush1.bf16.msra.mxu0 0
      %3787 = vmatprep.subr.bf16.mxu0 0
      %3788 = vmatpush1.bf16.msra.mxu0 0
      %3789 = vmatprep.subr.bf16.mxu0 0
      %3790 = vmatpush1.bf16.msra.mxu0 0
      %3791 = vmatprep.subr.bf16.mxu0 0
      %3792 = vmatpush1.bf16.msra.mxu0 0
      %3793 = vmatprep.subr.bf16.mxu0 0
      %3794 = vmatpush1.bf16.msra.mxu0 0
      %3795 = vmatprep.subr.bf16.mxu0 0
      %3796 = vmatpush1.bf16.msra.mxu0 0
      %3797 = vmatprep.subr.bf16.mxu0 0
      %3798 = vmatpush1.bf16.msra.mxu0 0
      %3799 = vmatprep.subr.bf16.mxu0 0
      %3800 = vmatpush1.bf16.msra.mxu0 0
      %3801 = vmatprep.mubr.bf16.mxu0 0
      %3802 = vmatmul.mubr.bf16.gmra.mrb[0].mxu0 %v3722
      %v3803 = vpop.f32.mrb[0].mxu0
      %v3804 = vadd.f32 %v368, %v3803
      %v3805 = vpop.f32.mrb[0].mxu0
      %v3806 = vpop.f32.mrb[0].mxu0
      %v3807 = vadd.f32 %v368, %v3806
      %v3808 = vpop.f32.mrb[0].mxu0
      %3809 = vmatprep.mubr.bf16.mxu0 0
      %3810 = vmatmul.mubr.bf16.gmra.mrb[0].mxu0 %v3725
      %v3811 = vpop.f32.mrb[0].mxu0
      %v3812 = vadd.f32 %v368, %v3811
      %v3813 = vpop.f32.mrb[0].mxu0
      %v3814 = vpop.f32.mrb[0].mxu0
      %v3815 = vadd.f32 %v368, %v3814
      %v3816 = vpop.f32.mrb[0].mxu0
      %3817 = vmatprep.mubr.bf16.mxu0 0
      %3818 = vmatmul.mubr.bf16.gmra.mrb[0].mxu0 %v3728
      %v3819 = vpop.f32.mrb[0].mxu0
      %v3820 = vadd.f32 %v368, %v3819
      %v3821 = vpop.f32.mrb[0].mxu0
      %v3822 = vpop.f32.mrb[0].mxu0
      %v3823 = vadd.f32 %v368, %v3822
      %v3824 = vpop.f32.mrb[0].mxu0
      %3825 = vmatprep.mubr.bf16.mxu0 0
      %3826 = vmatmul.mubr.bf16.gmra.mrb[0].mxu0 %v3731
      %v3827 = vpop.f32.mrb[0].mxu0
      %v3828 = vadd.f32 %v368, %v3827
      %v3829 = vpop.f32.mrb[0].mxu0
      %v3830 = vpop.f32.mrb[0].mxu0
      %v3831 = vadd.f32 %v368, %v3830
      %v3832 = vpop.f32.mrb[0].mxu0
      %3833 = vmatprep.mubr.bf16.mxu0 0
      %3834 = vmatmul.mubr.bf16.gmra.mrb[0].mxu0 %v3734
      %v3835 = vpop.f32.mrb[0].mxu0
      %v3836 = vadd.f32 %v368, %v3835
      %v3837 = vpop.f32.mrb[0].mxu0
      %v3838 = vpop.f32.mrb[0].mxu0
      %v3839 = vadd.f32 %v368, %v3838
      %v3840 = vpop.f32.mrb[0].mxu0
      %3841 = vmatprep.mubr.bf16.mxu0 0
      %3842 = vmatmul.mubr.bf16.gmra.mrb[0].mxu0 %v3737
      %v3843 = vpop.f32.mrb[0].mxu0
      %v3844 = vadd.f32 %v368, %v3843
      %v3845 = vpop.f32.mrb[0].mxu0
      %v3846 = vpop.f32.mrb[0].mxu0
      %v3847 = vadd.f32 %v368, %v3846
      %v3848 = vpop.f32.mrb[0].mxu0
      %3849 = vmatprep.mubr.bf16.mxu0 0
      %3850 = vmatmul.mubr.bf16.gmra.mrb[0].mxu0 %v3740
      %v3851 = vpop.f32.mrb[0].mxu0
      %v3852 = vadd.f32 %v368, %v3851
      %v3853 = vpop.f32.mrb[0].mxu0
      %v3854 = vpop.f32.mrb[0].mxu0
      %v3855 = vadd.f32 %v368, %v3854
      %v3856 = vpop.f32.mrb[0].mxu0
      %3857 = vmatprep.mubr.bf16.mxu0 0
      %3858 = vmatmul.mubr.bf16.gmra.mrb[0].mxu0 %v3743
      %v3859 = vpop.f32.mrb[0].mxu0
      %v3860 = vadd.f32 %v368, %v3859
      %v3861 = vpop.f32.mrb[0].mxu0
      %v3862 = vpop.f32.mrb[0].mxu0
      %v3863 = vadd.f32 %v368, %v3862
      %v3864 = vpop.f32.mrb[0].mxu0
      %3865 = vmatprep.mubr.bf16.mxu0 0
      %3866 = vmatmul.mubr.bf16.gmra.mrb[0].mxu0 %v3746
      %v3867 = vpop.f32.mrb[0].mxu0
      %v3868 = vadd.f32 %v368, %v3867
      %v3869 = vpop.f32.mrb[0].mxu0
      %v3870 = vpop.f32.mrb[0].mxu0
      %v3871 = vadd.f32 %v368, %v3870
      %v3872 = vpop.f32.mrb[0].mxu0
      %3873 = vmatprep.mubr.bf16.mxu0 0
      %3874 = vmatmul.mubr.bf16.gmra.mrb[0].mxu0 %v3749
      %v3875 = vpop.f32.mrb[0].mxu0
      %v3876 = vadd.f32 %v368, %v3875
      %v3877 = vpop.f32.mrb[0].mxu0
      %v3878 = vpop.f32.mrb[0].mxu0
      %v3879 = vadd.f32 %v368, %v3878
      %v3880 = vpop.f32.mrb[0].mxu0
      %3881 = vmatprep.mubr.bf16.mxu0 0
      %3882 = vmatmul.mubr.bf16.gmra.mrb[0].mxu0 %v3752
      %v3883 = vpop.f32.mrb[0].mxu0
      %v3884 = vadd.f32 %v368, %v3883
      %v3885 = vpop.f32.mrb[0].mxu0
      %v3886 = vpop.f32.mrb[0].mxu0
      %v3887 = vadd.f32 %v368, %v3886
      %v3888 = vpop.f32.mrb[0].mxu0
      %3889 = vmatprep.mubr.bf16.mxu0 0
      %3890 = vmatmul.mubr.bf16.gmra.mrb[0].mxu0 %v3755
      %v3891 = vpop.f32.mrb[0].mxu0
      %v3892 = vadd.f32 %v368, %v3891
      %v3893 = vpop.f32.mrb[0].mxu0
      %v3894 = vpop.f32.mrb[0].mxu0
      %v3895 = vadd.f32 %v368, %v3894
      %v3896 = vpop.f32.mrb[0].mxu0
      %3897 = vmatprep.mubr.bf16.mxu0 0
      %3898 = vmatmul.mubr.bf16.gmra.mrb[0].mxu0 %v3758
      %v3899 = vpop.f32.mrb[0].mxu0
      %v3900 = vadd.f32 %v368, %v3899
      %v3901 = vpop.f32.mrb[0].mxu0
      %v3902 = vpop.f32.mrb[0].mxu0
      %v3903 = vadd.f32 %v368, %v3902
      %v3904 = vpop.f32.mrb[0].mxu0
      %3905 = vmatprep.mubr.bf16.mxu0 0
      %3906 = vmatmul.mubr.bf16.gmra.mrb[0].mxu0 %v3761
      %v3907 = vpop.f32.mrb[0].mxu0
      %v3908 = vadd.f32 %v368, %v3907
      %v3909 = vpop.f32.mrb[0].mxu0
      %v3910 = vpop.f32.mrb[0].mxu0
      %v3911 = vadd.f32 %v368, %v3910
      %v3912 = vpop.f32.mrb[0].mxu0
      %3913 = vmatprep.mubr.bf16.mxu0 0
      %3914 = vmatmul.mubr.bf16.gmra.mrb[0].mxu0 %v3764
      %v3915 = vpop.f32.mrb[0].mxu0
      %v3916 = vadd.f32 %v368, %v3915
      %v3917 = vpop.f32.mrb[0].mxu0
      %v3918 = vpop.f32.mrb[0].mxu0
      %v3919 = vadd.f32 %v368, %v3918
      %v3920 = vpop.f32.mrb[0].mxu0
      %3921 = vmatprep.mubr.bf16.mxu0 0
      %3922 = vmatmul.mubr.bf16.gmra.mrb[0].mxu0 %v3767
      %v3923 = vpop.f32.mrb[0].mxu0
      %v3924 = vadd.f32 %v368, %v3923
      %v3925 = vpop.f32.mrb[0].mxu0
      %v3926 = vpop.f32.mrb[0].mxu0
      %v3927 = vadd.f32 %v368, %v3926
      %v3928 = vpop.f32.mrb[0].mxu0
      %3929 = vdwg.mxu0
      %3930 = vst.msk [vmem:[%s337] sm:$0xff] %vm373, %v3804
      %3931 = vst.msk [vmem:[%s337 + $0x8] sm:$0xff] %vm373, %v3807
      %3932 = vst.msk [vmem:[%s337 + $0x10] sm:$0xff] %vm373, %v3812
      %3933 = vst.msk [vmem:[%s337 + $0x18] sm:$0xff] %vm373, %v3815
      %3934 = vst.msk [vmem:[%s337 + $0x20] sm:$0xff] %vm373, %v3820
      %3935 = vst.msk [vmem:[%s337 + $0x28] sm:$0xff] %vm373, %v3823
      %3936 = vst.msk [vmem:[%s337 + $0x30] sm:$0xff] %vm373, %v3828
      %3937 = vst.msk [vmem:[%s337 + $0x38] sm:$0xff] %vm373, %v3831
      %3938 = vst.msk [vmem:[%s337 + $0x40] sm:$0xff] %vm373, %v3836
      %3939 = vst.msk [vmem:[%s337 + $0x48] sm:$0xff] %vm373, %v3839
      %3940 = vst.msk [vmem:[%s337 + $0x50] sm:$0xff] %vm373, %v3844
      %3941 = vst.msk [vmem:[%s337 + $0x58] sm:$0xff] %vm373, %v3847
      %3942 = vst.msk [vmem:[%s337 + $0x60] sm:$0xff] %vm373, %v3852
      %3943 = vst.msk [vmem:[%s337 + $0x68] sm:$0xff] %vm373, %v3855
      %3944 = vst.msk [vmem:[%s337 + $0x70] sm:$0xff] %vm373, %v3860
      %3945 = vst.msk [vmem:[%s337 + $0x78] sm:$0xff] %vm373, %v3863
      %3946 = vst.msk [vmem:[%s337 + $0x80] sm:$0xff] %vm373, %v3868
      %3947 = vst.msk [vmem:[%s337 + $0x88] sm:$0xff] %vm373, %v3871
      %3948 = vst.msk [vmem:[%s337 + $0x90] sm:$0xff] %vm373, %v3876
      %3949 = vst.msk [vmem:[%s337 + $0x98] sm:$0xff] %vm373, %v3879
      %3950 = vst.msk [vmem:[%s337 + $0xa0] sm:$0xff] %vm373, %v3884
      %3951 = vst.msk [vmem:[%s337 + $0xa8] sm:$0xff] %vm373, %v3887
      %3952 = vst.msk [vmem:[%s337 + $0xb0] sm:$0xff] %vm373, %v3892
      %3953 = vst.msk [vmem:[%s337 + $0xb8] sm:$0xff] %vm373, %v3895
      %3954 = vst.msk [vmem:[%s337 + $0xc0] sm:$0xff] %vm373, %v3900
      %3955 = vst.msk [vmem:[%s337 + $0xc8] sm:$0xff] %vm373, %v3903
      %3956 = vst.msk [vmem:[%s337 + $0xd0] sm:$0xff] %vm373, %v3908
      %3957 = vst.msk [vmem:[%s337 + $0xd8] sm:$0xff] %vm373, %v3911
      %3958 = vst.msk [vmem:[%s337 + $0xe0] sm:$0xff] %vm373, %v3916
      %3959 = vst.msk [vmem:[%s337 + $0xe8] sm:$0xff] %vm373, %v3919
      %3960 = vst.msk [vmem:[%s337 + $0xf0] sm:$0xff] %vm373, %v3924
      %3961 = vst.msk [vmem:[%s337 + $0xf8] sm:$0xff] %vm373, %v3927
      %s3962 = smul.u32 32, %s20
      %p3963 = scmp.lt.s32.totalorder %s3962, 63
      %s3964 = scalar_select %p3963, %s3962, 63
      %s3965 = smul.addr %s3964, 8
      %s3966 = scalar_lea.vmem %s9, %s3965
      // Predicated region
      $region57: #{tpu_custom_call.1} parent=55 // pred_check
        %p3967 = pneg %p232
      $region58: #{tpu_custom_call.1} parent=55 // pred_check_branch
        %3969 = sbr.rel (%p3967) target = $region60
      $region59: #{tpu_custom_call.1} parent=55 // pred_region
        %s3970 = smul.u32 32, %s20
      $region60: #{tpu_custom_call.1} parent=55 // pred_fallthru
        _
    $region56: #{tpu_custom_call.1} parent=5 // pred_fallthru
      _
    %p3971 = scmp.le.s32.totalorder 2, %s15
    // Predicated region
    $region61: #{tpu_custom_call.1} parent=5 // pred_check
      %p3972 = pneg %p3971
    $region62: #{tpu_custom_call.1} parent=5 // pred_check_branch
      %3974 = sbr.rel (%p3972) target = $region64
    $region63: #{tpu_custom_call.1} parent=5 // pred_region
      %s3975 = ssub.s32 %s15, 2
      // Predicated region
      $region65: #{tpu_custom_call.1} parent=63 // pred_check
        %p3976 = pneg %p238
      $region66: #{tpu_custom_call.1} parent=63 // pred_check_branch
        %3978 = sbr.rel (%p3976) target = $region68
      $region67: #{tpu_custom_call.1} parent=63 // pred_region
        %s3979 = smul.u32 32, %s21
        %p3980 = scmp.lt.s32.totalorder %s3979, 63
        %s3981 = scalar_select %p3980, %s3979, 63
        %s3982 = smul.addr %s3981, 8
        %s3983 = scalar_lea.vmem %s9, %s3982
      $region68: #{tpu_custom_call.1} parent=63 // pred_fallthru
        _
    $region64: #{tpu_custom_call.1} parent=5 // pred_fallthru
      _
  $region6: #{tpu_custom_call.1} parent=0 // loop_footer
    %s19 = sadd.s32 1, %s15
  $region7: #{tpu_custom_call.1} parent=0 // loop_footer_branch
    %14 = sbr.rel target = $region3
  $region8: #{tpu_custom_call.1} parent=0 // loop_exit
    _

</llo_original>
